<compile_context>
chip_gen: v5e
topology: v5e:2x2
jax: 0.10.0
libtpu: 0.0.40
codegen_flags: <defaults>
</compile_context>

<pallas_src>
import functools

import jax
import jax.numpy as jnp
from jax.experimental import pallas as pl
from jax.experimental.pallas import tpu as pltpu


# ------------------------------ helpers ------------------------------------ #

def _round_up(x, m):
    return ((x + m - 1) // m) * m


# PyTorch packs LSTM gates as [i, f, g, o]; the kernel uses [i, f, o, g] so the
# three sigmoid gates form one contiguous (bp, 3*hp) slab and tanh one (bp, hp).
_GATE_PERM = (0, 1, 3, 2)

_BUFFERED_1_OK = None  # set once by _probe_buffered_weights()


def _probe_buffered_weights():
    """Eagerly (outside any jit trace) check whether pipeline_mode=pl.Buffered(1)
    lowers on this jax/libtpu.  Single-buffering the loop-invariant weights halves
    their VMEM footprint (matters for v7x's 64 MiB VMEM at large hidden sizes)."""
    global _BUFFERED_1_OK
    if _BUFFERED_1_OK is not None:
        return _BUFFERED_1_OK
    try:
        def _k(x_ref, o_ref):
            o_ref[...] = x_ref[...] + 1.0

        f = pl.pallas_call(
            _k,
            out_shape=jax.ShapeDtypeStruct((8, 128), jnp.float32),
            grid_spec=pltpu.PrefetchScalarGridSpec(
                num_scalar_prefetch=0,
                grid=(2,),
                in_specs=[pl.BlockSpec((8, 128), lambda i: (0, 0),
                                       pipeline_mode=pl.Buffered(1))],
                out_specs=pl.BlockSpec((8, 128), lambda i: (0, 0)),
            ),
        )
        jax.block_until_ready(f(jnp.zeros((8, 128), jnp.float32)))
        _BUFFERED_1_OK = True
    except Exception:
        _BUFFERED_1_OK = False
    return _BUFFERED_1_OK


def _pick_time_chunk(T, bp, hp, d_in, budget_bytes=4 << 20):
    """Time-chunk length: as large as possible (amortizes ~0.35us per-grid-step
    pipeline overhead) while the chunk-resident activations (gx + act + 2x input
    block) stay under a budget that fits every generation (v5e/v6e/v7x VMEM).
    tc does NOT have to divide T: the grid uses cdiv and the tail is masked."""
    per_t = bp * (4 * hp + hp + 2 * max(d_in, 1)) * 4
    return int(max(1, min(T, 32, budget_bytes // per_t)))


# ----------------------------- Pallas kernel -------------------------------- #

def _fused_lstm_fc_kernel(*refs, num_layers, tc, bp, hp, seq_len, mask_tail):
    """All LSTM layers + the final Linear, for one time chunk.

    refs layout (positional):
      [0]                 x chunk            (tc*bp, D_in)  time-major rows (row = t*bp + b)
      [1 .. 3L]           per layer: wih_t (D_l, 4hp), whh_t (hp, 4hp), bias (1, 4hp)
      [3L+1], [3L+2]      fc_w_t (hp, O_pad), fc_b (1, O_pad)
      [3L+3]              out                (bp, O_pad)   written on the last chunk only
      scratch:            h_0, c_0, ..., h_{L-1}, c_{L-1}  (bp, hp)  carry across chunks
                          act (tc*bp, hp), gx (tc*bp, 4hp)
    """
    n_w = 3 * num_layers
    x_ref = refs[0]
    layer_refs = refs[1:1 + n_w]
    fcw_ref = refs[1 + n_w]
    fcb_ref = refs[2 + n_w]
    out_ref = refs[3 + n_w]
    scratch = refs[4 + n_w:]
    hc_refs = scratch[:2 * num_layers]
    act_sc = scratch[2 * num_layers]
    gx_sc = scratch[2 * num_layers + 1]

    t = pl.program_id(0)
    chunk0 = t * tc  # global timestep index of the first row of this chunk

    @pl.when(t == 0)
    def _():
        for r in hc_refs:
            r[...] = jnp.zeros_like(r)

    for l in range(num_layers):
        wih_ref = layer_refs[3 * l + 0]
        whh_ref = layer_refs[3 * l + 1]
        b_ref = layer_refs[3 * l + 2]
        h_ref = hc_refs[2 * l + 0]
        c_ref = hc_refs[2 * l + 1]
        src_ref = x_ref if l == 0 else act_sc

        # Hoisted input projection for the whole chunk: one MXU matmul, M = tc*bp.
        gx_sc[...] = (jnp.dot(src_ref[...], wih_ref[...],
                              preferred_element_type=jnp.float32) + b_ref[...])

        whh = whh_ref[...]              # loop-invariant RHS, loaded once per chunk
        write_act = l < num_layers - 1  # last layer's sequence never materialized

        def step(i, carry, *, whh=whh, write_act=write_act):
            h_prev, c_prev = carry      # carried in vregs, not VMEM
            r0 = pl.multiple_of(i * bp, 8)
            gates = gx_sc[pl.ds(r0, bp), :] + jnp.dot(
                h_prev, whh, preferred_element_type=jnp.float32)
            sig = jax.nn.sigmoid(gates[:, :3 * hp])   # [i | f | o] in one pass
            g_g = jnp.tanh(gates[:, 3 * hp:])
            i_g = sig[:, 0 * hp:1 * hp]
            f_g = sig[:, 1 * hp:2 * hp]
            o_g = sig[:, 2 * hp:3 * hp]
            c_new = f_g * c_prev + i_g * g_g
            h_new = o_g * jnp.tanh(c_new)
            if mask_tail:               # only traced when cdiv padding exists
                valid = (chunk0 + i) < seq_len
                h_new = jnp.where(valid, h_new, h_prev)
                c_new = jnp.where(valid, c_new, c_prev)
            if write_act:
                act_sc[pl.ds(r0, bp), :] = h_new
            return (h_new, c_new)

        h_f, c_f = jax.lax.fori_loop(0, tc, step, (h_ref[...], c_ref[...]),
                                     unroll=True)
        h_ref[...] = h_f                # flush the carry once per chunk
        c_ref[...] = c_f

    # Fused final Linear on the last layer's hidden state; last chunk only.
    @pl.when(t == pl.num_programs(0) - 1)
    def _():
        out_ref[...] = (jnp.dot(hc_refs[2 * (num_layers - 1)][...], fcw_ref[...],
                                preferred_element_type=jnp.float32) + fcb_ref[...])


# ------------------------------ Parameters ---------------------------------- #

def init_params(key, input_size, hidden_size, num_layers, output_size):
    """Raw parameters with the same shapes / init ranges as nn.LSTM + nn.Linear."""
    k = 1.0 / (hidden_size ** 0.5)
    layers = []
    for layer in range(num_layers):
        d_in = input_size if layer == 0 else hidden_size
        key, k1, k2, k3, k4 = jax.random.split(key, 5)
        layers.append({
            "w_ih": jax.random.uniform(k1, (4 * hidden_size, d_in), jnp.float32, -k, k),
            "w_hh": jax.random.uniform(k2, (4 * hidden_size, hidden_size), jnp.float32, -k, k),
            "b_ih": jax.random.uniform(k3, (4 * hidden_size,), jnp.float32, -k, k),
            "b_hh": jax.random.uniform(k4, (4 * hidden_size,), jnp.float32, -k, k),
        })
    key, k1, k2 = jax.random.split(key, 3)
    fc_w = jax.random.uniform(k1, (output_size, hidden_size), jnp.float32, -k, k)
    fc_b = jax.random.uniform(k2, (output_size,), jnp.float32, -k, k)
    return {"layers": layers, "fc_w": fc_w, "fc_b": fc_b}


def prepare_kernel_params(params, input_size, hidden_size):
    """Transpose, gate-reorder ([i,f,g,o] -> [i,f,o,g]) and zero-pad the PyTorch
    layout params into the kernel layout.  H is padded to hp = round_up(H, 128)
    (lane-dense gate slices); padding is exact: padded gate columns have zero
    weights/bias so padded hidden/cell units stay identically zero."""
    _probe_buffered_weights()  # eager probe, outside jit
    H = hidden_size
    hp = _round_up(max(H, 1), 128)
    perm = jnp.array(_GATE_PERM)

    def prep_gates(w_t, rows_from, rows_to):
        w4 = w_t.reshape(rows_from, 4, H)
        w4 = jnp.take(w4, perm, axis=1)                       # gate reorder
        w4 = jnp.pad(w4, ((0, rows_to - rows_from), (0, 0), (0, hp - H)))
        return w4.reshape(rows_to, 4 * hp)

    klayers = []
    for layer, lp in enumerate(params["layers"]):
        d_in = input_size if layer == 0 else H
        d_in_p = input_size if layer == 0 else hp
        klayers.append({
            "wih_t": prep_gates(lp["w_ih"].T, d_in, d_in_p),                        # (d_in_p, 4hp)
            "whh_t": prep_gates(lp["w_hh"].T, H, hp),                               # (hp, 4hp)
            "bias": prep_gates((lp["b_ih"] + lp["b_hh"]).reshape(1, 4 * H), 1, 1),  # (1, 4hp)
        })
    O = params["fc_w"].shape[0]
    o_pad = _round_up(max(O, 1), 128)
    fc_w_t = jnp.pad(params["fc_w"].T, ((0, hp - H), (0, o_pad - O)))               # (hp, O_pad)
    fc_b = jnp.pad(params["fc_b"].reshape(1, -1), ((0, 0), (0, o_pad - O)))          # (1, O_pad)
    return {"layers": klayers, "fc_w_t": fc_w_t, "fc_b": fc_b}


# ------------------------------ Forward pass -------------------------------- #

def lstm_forward(x, kparams, *, output_size):
    """x: (B, T, input_size) batch_first, like the PyTorch module's forward."""
    B, T, D = x.shape
    layers = kparams["layers"]
    L = len(layers)
    hp = layers[0]["whh_t"].shape[0]
    o_pad = kparams["fc_w_t"].shape[1]

    bp = _round_up(max(B, 1), 8)
    tc = _pick_time_chunk(T, bp, hp, D)
    n_chunks = (T + tc - 1) // tc
    tp = n_chunks * tc
    mask_tail = tp != T

    # batch_first -> time-major rows, padded to (tp, bp).  Padded batch rows are
    # row-isolated and sliced off; padded tail timesteps are masked in-kernel.
    x_tm = jnp.transpose(x.astype(jnp.float32), (1, 0, 2))      # (T, B, D)
    x_tm = jnp.pad(x_tm, ((0, tp - T), (0, bp - B), (0, 0)))    # (tp, bp, D)
    xs = x_tm.reshape(tp * bp, D)

    buffered1 = bool(_BUFFERED_1_OK)

    def w_spec(arr):
        if buffered1:
            return pl.BlockSpec(arr.shape, lambda t: (0, 0),
                                pipeline_mode=pl.Buffered(1))
        return pl.BlockSpec(arr.shape, lambda t: (0, 0))

    in_specs = [pl.BlockSpec((tc * bp, D), lambda t: (t, 0))]
    args = [xs]
    weight_bytes = 0
    for lp in layers:
        for name in ("wih_t", "whh_t", "bias"):
            a = lp[name]
            in_specs.append(w_spec(a))
            args.append(a)
            weight_bytes += int(a.size) * 4
    for a in (kparams["fc_w_t"], kparams["fc_b"]):
        in_specs.append(w_spec(a))
        args.append(a)
        weight_bytes += int(a.size) * 4

    # Explicit VMEM budget so large H doesn't hit the 16/32 MiB default scoped limit.
    scratch_bytes = 4 * (tc * bp * hp + tc * bp * 4 * hp + 2 * L * bp * hp)
    io_bytes = 4 * (2 * tc * bp * D + 2 * bp * o_pad)
    wbuf = 1 if buffered1 else 2
    vmem_limit = int(1.25 * (weight_bytes * wbuf + scratch_bytes + io_bytes)) + (4 << 20)
    vmem_limit = max(32 << 20, min(vmem_limit, 120 << 20))

    kernel = functools.partial(
        _fused_lstm_fc_kernel,
        num_layers=L, tc=tc, bp=bp, hp=hp, seq_len=T, mask_tail=mask_tail)

    out_p = pl.pallas_call(
        kernel,
        out_shape=jax.ShapeDtypeStruct((bp, o_pad), jnp.float32),
        grid_spec=pltpu.PrefetchScalarGridSpec(
            num_scalar_prefetch=0,
            grid=(n_chunks,),
            in_specs=in_specs,
            out_specs=pl.BlockSpec((bp, o_pad), lambda t: (0, 0)),
            scratch_shapes=(
                [pltpu.VMEM((bp, hp), jnp.float32) for _ in range(2 * L)]
                + [pltpu.VMEM((tc * bp, hp), jnp.float32),
                   pltpu.VMEM((tc * bp, 4 * hp), jnp.float32)]),
        ),
        compiler_params=pltpu.CompilerParams(
            dimension_semantics=("arbitrary",),
            vmem_limit_bytes=vmem_limit),
    )(*args)
    return out_p[:B, :output_size]


# Pure-JAX reference (unpadded, per-timestep) for verification.
def lstm_forward_ref(x, params):
    B, T, _ = x.shape
    xs = x.astype(jnp.float32)
    for lp in params["layers"]:
        H = lp["w_hh"].shape[1]
        wih_t, whh_t = lp["w_ih"].T, lp["w_hh"].T
        bias = lp["b_ih"] + lp["b_hh"]
        h = jnp.zeros((B, H), jnp.float32)
        c = jnp.zeros((B, H), jnp.float32)
        outs = []
        for t in range(T):
            gates = xs[:, t, :] @ wih_t + h @ whh_t + bias
            i = jax.nn.sigmoid(gates[:, 0 * H:1 * H])
            f = jax.nn.sigmoid(gates[:, 1 * H:2 * H])
            g = jnp.tanh(gates[:, 2 * H:3 * H])
            o = jax.nn.sigmoid(gates[:, 3 * H:4 * H])
            c = f * c + i * g
            h = o * jnp.tanh(c)
            outs.append(h)
        xs = jnp.stack(outs, axis=1)
    return xs[:, -1, :] @ params["fc_w"].T + params["fc_b"]


if __name__ == "__main__":
    # Small shapes consistent with the module's forward.
    batch, seq, input_size = 2, 8, 4
    hidden_size, num_layers, output_size = 32, 2, 3

    key = jax.random.PRNGKey(0)
    key, kx = jax.random.split(key)
    x = jax.random.normal(kx, (batch, seq, input_size), jnp.float32)

    raw_params = init_params(key, input_size, hidden_size, num_layers, output_size)
    kparams = prepare_kernel_params(raw_params, input_size, hidden_size)

    fwd = jax.jit(lstm_forward, static_argnames=("output_size",))
    out = fwd(x, kparams, output_size=output_size)
    out = jax.block_until_ready(out)

    ref = lstm_forward_ref(x, raw_params)
    assert out.shape == (batch, output_size), out.shape
    assert jnp.allclose(out, ref, atol=1e-5, rtol=1e-5), (out, ref)

    print("KERNEL_OK")
</pallas_src>

<mosaic_0001>
module attributes {stable_mosaic.version = 11 : i64} {
  func.func @_k(%arg0: i32, %arg1: memref<8x128xf32, #tpu.memory_space<vmem>>, %arg2: memref<8x128xf32, #tpu.memory_space<vmem>>) attributes {dimension_semantics = [#tpu.dimension_semantics<arbitrary>], iteration_bounds = array<i64: 2>, scalar_prefetch = 0 : i64, scratch_operands = 0 : i64, tpu.core_type = #tpu.core_type<tc>, window_params = [{pipeline_mode = #tpu.pipeline_mode<synchronous>, transform_indices = @transform_0, window_bounds = array<i64: 8, 128>}, {pipeline_mode = #tpu.pipeline_mode<synchronous>, transform_indices = @transform_1, window_bounds = array<i64: 8, 128>}]} {
    %c0 = arith.constant 0 : index
    %c0_0 = arith.constant 0 : index
    %0 = vector.load %arg1[%c0, %c0_0] : memref<8x128xf32, #tpu.memory_space<vmem>>, vector<8x128xf32>
    %cst = arith.constant 1.000000e+00 : f32
    %1 = vector.broadcast %cst : f32 to vector<8x128xf32>
    %2 = arith.addf %0, %1 : vector<8x128xf32>
    %c0_1 = arith.constant 0 : index
    %c0_2 = arith.constant 0 : index
    %3 = vector.load %arg2[%c0_1, %c0_2] : memref<8x128xf32, #tpu.memory_space<vmem>>, vector<8x128xf32>
    tpu.vector_store %arg2[%c0_1, %c0_2], %2 {strides = array<i32>} : memref<8x128xf32, #tpu.memory_space<vmem>>, vector<8x128xf32>,
    return
  }
  func.func @transform_0(%arg0: i32) -> (i32, i32) {
    %c0_i32 = arith.constant 0 : i32
    %c0_i32_0 = arith.constant 0 : i32
    %c0_i32_1 = arith.constant 0 : i32
    return %c0_i32, %c0_i32_0 : i32, i32
  }
  func.func @transform_1(%arg0: i32) -> (i32, i32) {
    %c0_i32 = arith.constant 0 : i32
    %c0_i32_0 = arith.constant 0 : i32
    %c0_i32_1 = arith.constant 0 : i32
    return %c0_i32, %c0_i32_0 : i32, i32
  }
}

module attributes {stable_mosaic.version = 11 : i64} {
  func.func @_fused_lstm_fc_kernel(%arg0: i32, %arg1: memref<64x4xf32, #tpu.memory_space<vmem>>, %arg2: memref<4x512xf32, #tpu.memory_space<vmem>>, %arg3: memref<128x512xf32, #tpu.memory_space<vmem>>, %arg4: memref<1x512xf32, #tpu.memory_space<vmem>>, %arg5: memref<128x512xf32, #tpu.memory_space<vmem>>, %arg6: memref<128x512xf32, #tpu.memory_space<vmem>>, %arg7: memref<1x512xf32, #tpu.memory_space<vmem>>, %arg8: memref<128x128xf32, #tpu.memory_space<vmem>>, %arg9: memref<1x128xf32, #tpu.memory_space<vmem>>, %arg10: memref<8x128xf32, #tpu.memory_space<vmem>>, %arg11: memref<8x128xf32, #tpu.memory_space<vmem>>, %arg12: memref<8x128xf32, #tpu.memory_space<vmem>>, %arg13: memref<8x128xf32, #tpu.memory_space<vmem>>, %arg14: memref<8x128xf32, #tpu.memory_space<vmem>>, %arg15: memref<64x128xf32, #tpu.memory_space<vmem>>, %arg16: memref<64x512xf32, #tpu.memory_space<vmem>>) attributes {dimension_semantics = [#tpu.dimension_semantics<arbitrary>], iteration_bounds = array<i64: 1>, scalar_prefetch = 0 : i64, scratch_operands = 6 : i64, tpu.core_type = #tpu.core_type<tc>, window_params = [{transform_indices = @transform_0, window_bounds = array<i64: 64, 4>}, {pipeline_mode = #tpu.pipeline_mode<synchronous>, transform_indices = @transform_1, window_bounds = array<i64: 4, 512>}, {pipeline_mode = #tpu.pipeline_mode<synchronous>, transform_indices = @transform_2, window_bounds = array<i64: 128, 512>}, {pipeline_mode = #tpu.pipeline_mode<synchronous>, transform_indices = @transform_3, window_bounds = array<i64: 1, 512>}, {pipeline_mode = #tpu.pipeline_mode<synchronous>, transform_indices = @transform_4, window_bounds = array<i64: 128, 512>}, {pipeline_mode = #tpu.pipeline_mode<synchronous>, transform_indices = @transform_5, window_bounds = array<i64: 128, 512>}, {pipeline_mode = #tpu.pipeline_mode<synchronous>, transform_indices = @transform_6, window_bounds = array<i64: 1, 512>}, {pipeline_mode = #tpu.pipeline_mode<synchronous>, transform_indices = @transform_7, window_bounds = array<i64: 128, 128>}, {pipeline_mode = #tpu.pipeline_mode<synchronous>, transform_indices = @transform_8, window_bounds = array<i64: 1, 128>}, {pipeline_mode = #tpu.pipeline_mode<synchronous>, transform_indices = @transform_9, window_bounds = array<i64: 8, 128>}]} {
    %c0_i32 = arith.constant 0 : i32
    %0 = arith.cmpi eq, %arg0, %c0_i32 : i32
    %1 = arith.extui %0 : i1 to i32
    %c0_i32_0 = arith.constant 0 : i32
    %2 = arith.cmpi ne, %1, %c0_i32_0 : i32
    scf.if %2 {
      %cst_121 = arith.constant 0.000000e+00 : f32
      %398 = vector.broadcast %cst_121 : f32 to vector<8x128xf32>
      %c0_122 = arith.constant 0 : index
      %c0_123 = arith.constant 0 : index
      %399 = vector.load %arg11[%c0_122, %c0_123] : memref<8x128xf32, #tpu.memory_space<vmem>>, vector<8x128xf32>
      tpu.vector_store %arg11[%c0_122, %c0_123], %398 {strides = array<i32>} : memref<8x128xf32, #tpu.memory_space<vmem>>, vector<8x128xf32>,
      %cst_124 = arith.constant 0.000000e+00 : f32
      %400 = vector.broadcast %cst_124 : f32 to vector<8x128xf32>
      %c0_125 = arith.constant 0 : index
      %c0_126 = arith.constant 0 : index
      %401 = vector.load %arg12[%c0_125, %c0_126] : memref<8x128xf32, #tpu.memory_space<vmem>>, vector<8x128xf32>
      tpu.vector_store %arg12[%c0_125, %c0_126], %400 {strides = array<i32>} : memref<8x128xf32, #tpu.memory_space<vmem>>, vector<8x128xf32>,
      %cst_127 = arith.constant 0.000000e+00 : f32
      %402 = vector.broadcast %cst_127 : f32 to vector<8x128xf32>
      %c0_128 = arith.constant 0 : index
      %c0_129 = arith.constant 0 : index
      %403 = vector.load %arg13[%c0_128, %c0_129] : memref<8x128xf32, #tpu.memory_space<vmem>>, vector<8x128xf32>
      tpu.vector_store %arg13[%c0_128, %c0_129], %402 {strides = array<i32>} : memref<8x128xf32, #tpu.memory_space<vmem>>, vector<8x128xf32>,
      %cst_130 = arith.constant 0.000000e+00 : f32
      %404 = vector.broadcast %cst_130 : f32 to vector<8x128xf32>
      %c0_131 = arith.constant 0 : index
      %c0_132 = arith.constant 0 : index
      %405 = vector.load %arg14[%c0_131, %c0_132] : memref<8x128xf32, #tpu.memory_space<vmem>>, vector<8x128xf32>
      tpu.vector_store %arg14[%c0_131, %c0_132], %404 {strides = array<i32>} : memref<8x128xf32, #tpu.memory_space<vmem>>, vector<8x128xf32>,
    } else {
    }
    %c0 = arith.constant 0 : index
    %c0_1 = arith.constant 0 : index
    %3 = vector.load %arg1[%c0, %c0_1] : memref<64x4xf32, #tpu.memory_space<vmem>>, vector<64x4xf32>
    %c0_2 = arith.constant 0 : index
    %c0_3 = arith.constant 0 : index
    %4 = vector.load %arg2[%c0_2, %c0_3] : memref<4x512xf32, #tpu.memory_space<vmem>>, vector<4x512xf32>
    %cst = arith.constant dense<0.000000e+00> : vector<64x512xf32>
    %5 = tpu.matmul %3, %4, %cst {dimension_numbers = #tpu.dot_dimension_numbers<[1], [0], [0], [1], [0, 0, 1, 1], [], []>} : vector<64x4xf32>, vector<4x512xf32>, vector<64x512xf32> -> vector<64x512xf32>
    %c0_4 = arith.constant 0 : index
    %c0_5 = arith.constant 0 : index
    %6 = vector.load %arg4[%c0_4, %c0_5] : memref<1x512xf32, #tpu.memory_space<vmem>>, vector<1x512xf32>
    %7 = vector.broadcast %6 : vector<1x512xf32> to vector<64x512xf32>
    %8 = arith.addf %5, %7 : vector<64x512xf32>
    %c0_6 = arith.constant 0 : index
    %c0_7 = arith.constant 0 : index
    %9 = vector.load %arg16[%c0_6, %c0_7] : memref<64x512xf32, #tpu.memory_space<vmem>>, vector<64x512xf32>
    tpu.vector_store %arg16[%c0_6, %c0_7], %8 {strides = array<i32>} : memref<64x512xf32, #tpu.memory_space<vmem>>, vector<64x512xf32>,
    %c0_8 = arith.constant 0 : index
    %c0_9 = arith.constant 0 : index
    %10 = vector.load %arg3[%c0_8, %c0_9] : memref<128x512xf32, #tpu.memory_space<vmem>>, vector<128x512xf32>
    %c0_10 = arith.constant 0 : index
    %c0_11 = arith.constant 0 : index
    %11 = vector.load %arg11[%c0_10, %c0_11] : memref<8x128xf32, #tpu.memory_space<vmem>>, vector<8x128xf32>
    %c0_12 = arith.constant 0 : index
    %c0_13 = arith.constant 0 : index
    %12 = vector.load %arg12[%c0_12, %c0_13] : memref<8x128xf32, #tpu.memory_space<vmem>>, vector<8x128xf32>
    %c0_i32_14 = arith.constant 0 : i32
    %c8_i32 = arith.constant 8 : i32
    %13 = arith.muli %c0_i32_14, %c8_i32 : i32
    %14 = tpu.assume_multiple %13, 8 : i32
    %15 = arith.index_cast %14 : i32 to index
    %c0_15 = arith.constant 0 : index
    %16 = vector.load %arg16[%15, %c0_15] : memref<64x512xf32, #tpu.memory_space<vmem>>, vector<8x512xf32>
    %cst_16 = arith.constant dense<0.000000e+00> : vector<8x512xf32>
    %17 = tpu.matmul %11, %10, %cst_16 {dimension_numbers = #tpu.dot_dimension_numbers<[1], [0], [0], [1], [0, 0, 1, 1], [], []>} : vector<8x128xf32>, vector<128x512xf32>, vector<8x512xf32> -> vector<8x512xf32>
    %18 = arith.addf %16, %17 : vector<8x512xf32>
    %19 = vector.extract_strided_slice %18 {offsets = [0, 0], sizes = [8, 384], strides = [1, 1]} : vector<8x512xf32> to vector<8x384xf32>
    %20 = arith.negf %19 : vector<8x384xf32>
    %21 = math.exp %20 : vector<8x384xf32>
    %cst_17 = arith.constant 1.000000e+00 : f32
    %22 = vector.broadcast %cst_17 : f32 to vector<8x384xf32>
    %23 = arith.addf %22, %21 : vector<8x384xf32>
    %24 = arith.divf %22, %23 : vector<8x384xf32>
    %25 = vector.extract_strided_slice %18 {offsets = [0, 384], sizes = [8, 128], strides = [1, 1]} : vector<8x512xf32> to vector<8x128xf32>
    %26 = math.tanh %25 : vector<8x128xf32>
    %27 = vector.extract_strided_slice %24 {offsets = [0, 0], sizes = [8, 128], strides = [1, 1]} : vector<8x384xf32> to vector<8x128xf32>
    %28 = vector.extract_strided_slice %24 {offsets = [0, 128], sizes = [8, 128], strides = [1, 1]} : vector<8x384xf32> to vector<8x128xf32>
    %29 = vector.extract_strided_slice %24 {offsets = [0, 256], sizes = [8, 128], strides = [1, 1]} : vector<8x384xf32> to vector<8x128xf32>
    %30 = arith.mulf %28, %12 : vector<8x128xf32>
    %31 = arith.mulf %27, %26 : vector<8x128xf32>
    %32 = arith.addf %30, %31 : vector<8x128xf32>
    %33 = math.tanh %32 : vector<8x128xf32>
    %34 = arith.mulf %29, %33 : vector<8x128xf32>
    %35 = arith.index_cast %14 : i32 to index
    %c0_18 = arith.constant 0 : index
    %36 = vector.load %arg15[%35, %c0_18] : memref<64x128xf32, #tpu.memory_space<vmem>>, vector<8x128xf32>
    tpu.vector_store %arg15[%35, %c0_18], %34 {strides = array<i32>} : memref<64x128xf32, #tpu.memory_space<vmem>>, vector<8x128xf32>,
    %c1_i32 = arith.constant 1 : i32
    %c8_i32_19 = arith.constant 8 : i32
    %37 = arith.muli %c1_i32, %c8_i32_19 : i32
    %38 = tpu.assume_multiple %37, 8 : i32
    %39 = arith.index_cast %38 : i32 to index
    %c0_20 = arith.constant 0 : index
    %40 = vector.load %arg16[%39, %c0_20] : memref<64x512xf32, #tpu.memory_space<vmem>>, vector<8x512xf32>
    %cst_21 = arith.constant dense<0.000000e+00> : vector<8x512xf32>
    %41 = tpu.matmul %34, %10, %cst_21 {dimension_numbers = #tpu.dot_dimension_numbers<[1], [0], [0], [1], [0, 0, 1, 1], [], []>} : vector<8x128xf32>, vector<128x512xf32>, vector<8x512xf32> -> vector<8x512xf32>
    %42 = arith.addf %40, %41 : vector<8x512xf32>
    %43 = vector.extract_strided_slice %42 {offsets = [0, 0], sizes = [8, 384], strides = [1, 1]} : vector<8x512xf32> to vector<8x384xf32>
    %44 = arith.negf %43 : vector<8x384xf32>
    %45 = math.exp %44 : vector<8x384xf32>
    %cst_22 = arith.constant 1.000000e+00 : f32
    %46 = vector.broadcast %cst_22 : f32 to vector<8x384xf32>
    %47 = arith.addf %46, %45 : vector<8x384xf32>
    %48 = arith.divf %46, %47 : vector<8x384xf32>
    %49 = vector.extract_strided_slice %42 {offsets = [0, 384], sizes = [8, 128], strides = [1, 1]} : vector<8x512xf32> to vector<8x128xf32>
    %50 = math.tanh %49 : vector<8x128xf32>
    %51 = vector.extract_strided_slice %48 {offsets = [0, 0], sizes = [8, 128], strides = [1, 1]} : vector<8x384xf32> to vector<8x128xf32>
    %52 = vector.extract_strided_slice %48 {offsets = [0, 128], sizes = [8, 128], strides = [1, 1]} : vector<8x384xf32> to vector<8x128xf32>
    %53 = vector.extract_strided_slice %48 {offsets = [0, 256], sizes = [8, 128], strides = [1, 1]} : vector<8x384xf32> to vector<8x128xf32>
    %54 = arith.mulf %52, %32 : vector<8x128xf32>
    %55 = arith.mulf %51, %50 : vector<8x128xf32>
    %56 = arith.addf %54, %55 : vector<8x128xf32>
    %57 = math.tanh %56 : vector<8x128xf32>
    %58 = arith.mulf %53, %57 : vector<8x128xf32>
    %59 = arith.index_cast %38 : i32 to index
    %c0_23 = arith.constant 0 : index
    %60 = vector.load %arg15[%59, %c0_23] : memref<64x128xf32, #tpu.memory_space<vmem>>, vector<8x128xf32>
    tpu.vector_store %arg15[%59, %c0_23], %58 {strides = array<i32>} : memref<64x128xf32, #tpu.memory_space<vmem>>, vector<8x128xf32>,
    %c2_i32 = arith.constant 2 : i32
    %c8_i32_24 = arith.constant 8 : i32
    %61 = arith.muli %c2_i32, %c8_i32_24 : i32
    %62 = tpu.assume_multiple %61, 8 : i32
    %63 = arith.index_cast %62 : i32 to index
    %c0_25 = arith.constant 0 : index
    %64 = vector.load %arg16[%63, %c0_25] : memref<64x512xf32, #tpu.memory_space<vmem>>, vector<8x512xf32>
    %cst_26 = arith.constant dense<0.000000e+00> : vector<8x512xf32>
    %65 = tpu.matmul %58, %10, %cst_26 {dimension_numbers = #tpu.dot_dimension_numbers<[1], [0], [0], [1], [0, 0, 1, 1], [], []>} : vector<8x128xf32>, vector<128x512xf32>, vector<8x512xf32> -> vector<8x512xf32>
    %66 = arith.addf %64, %65 : vector<8x512xf32>
    %67 = vector.extract_strided_slice %66 {offsets = [0, 0], sizes = [8, 384], strides = [1, 1]} : vector<8x512xf32> to vector<8x384xf32>
    %68 = arith.negf %67 : vector<8x384xf32>
    %69 = math.exp %68 : vector<8x384xf32>
    %cst_27 = arith.constant 1.000000e+00 : f32
    %70 = vector.broadcast %cst_27 : f32 to vector<8x384xf32>
    %71 = arith.addf %70, %69 : vector<8x384xf32>
    %72 = arith.divf %70, %71 : vector<8x384xf32>
    %73 = vector.extract_strided_slice %66 {offsets = [0, 384], sizes = [8, 128], strides = [1, 1]} : vector<8x512xf32> to vector<8x128xf32>
    %74 = math.tanh %73 : vector<8x128xf32>
    %75 = vector.extract_strided_slice %72 {offsets = [0, 0], sizes = [8, 128], strides = [1, 1]} : vector<8x384xf32> to vector<8x128xf32>
    %76 = vector.extract_strided_slice %72 {offsets = [0, 128], sizes = [8, 128], strides = [1, 1]} : vector<8x384xf32> to vector<8x128xf32>
    %77 = vector.extract_strided_slice %72 {offsets = [0, 256], sizes = [8, 128], strides = [1, 1]} : vector<8x384xf32> to vector<8x128xf32>
    %78 = arith.mulf %76, %56 : vector<8x128xf32>
    %79 = arith.mulf %75, %74 : vector<8x128xf32>
    %80 = arith.addf %78, %79 : vector<8x128xf32>
    %81 = math.tanh %80 : vector<8x128xf32>
    %82 = arith.mulf %77, %81 : vector<8x128xf32>
    %83 = arith.index_cast %62 : i32 to index
    %c0_28 = arith.constant 0 : index
    %84 = vector.load %arg15[%83, %c0_28] : memref<64x128xf32, #tpu.memory_space<vmem>>, vector<8x128xf32>
    tpu.vector_store %arg15[%83, %c0_28], %82 {strides = array<i32>} : memref<64x128xf32, #tpu.memory_space<vmem>>, vector<8x128xf32>,
    %c3_i32 = arith.constant 3 : i32
    %c8_i32_29 = arith.constant 8 : i32
    %85 = arith.muli %c3_i32, %c8_i32_29 : i32
    %86 = tpu.assume_multiple %85, 8 : i32
    %87 = arith.index_cast %86 : i32 to index
    %c0_30 = arith.constant 0 : index
    %88 = vector.load %arg16[%87, %c0_30] : memref<64x512xf32, #tpu.memory_space<vmem>>, vector<8x512xf32>
    %cst_31 = arith.constant dense<0.000000e+00> : vector<8x512xf32>
    %89 = tpu.matmul %82, %10, %cst_31 {dimension_numbers = #tpu.dot_dimension_numbers<[1], [0], [0], [1], [0, 0, 1, 1], [], []>} : vector<8x128xf32>, vector<128x512xf32>, vector<8x512xf32> -> vector<8x512xf32>
    %90 = arith.addf %88, %89 : vector<8x512xf32>
    %91 = vector.extract_strided_slice %90 {offsets = [0, 0], sizes = [8, 384], strides = [1, 1]} : vector<8x512xf32> to vector<8x384xf32>
    %92 = arith.negf %91 : vector<8x384xf32>
    %93 = math.exp %92 : vector<8x384xf32>
    %cst_32 = arith.constant 1.000000e+00 : f32
    %94 = vector.broadcast %cst_32 : f32 to vector<8x384xf32>
    %95 = arith.addf %94, %93 : vector<8x384xf32>
    %96 = arith.divf %94, %95 : vector<8x384xf32>
    %97 = vector.extract_strided_slice %90 {offsets = [0, 384], sizes = [8, 128], strides = [1, 1]} : vector<8x512xf32> to vector<8x128xf32>
    %98 = math.tanh %97 : vector<8x128xf32>
    %99 = vector.extract_strided_slice %96 {offsets = [0, 0], sizes = [8, 128], strides = [1, 1]} : vector<8x384xf32> to vector<8x128xf32>
    %100 = vector.extract_strided_slice %96 {offsets = [0, 128], sizes = [8, 128], strides = [1, 1]} : vector<8x384xf32> to vector<8x128xf32>
    %101 = vector.extract_strided_slice %96 {offsets = [0, 256], sizes = [8, 128], strides = [1, 1]} : vector<8x384xf32> to vector<8x128xf32>
    %102 = arith.mulf %100, %80 : vector<8x128xf32>
    %103 = arith.mulf %99, %98 : vector<8x128xf32>
    %104 = arith.addf %102, %103 : vector<8x128xf32>
    %105 = math.tanh %104 : vector<8x128xf32>
    %106 = arith.mulf %101, %105 : vector<8x128xf32>
    %107 = arith.index_cast %86 : i32 to index
    %c0_33 = arith.constant 0 : index
    %108 = vector.load %arg15[%107, %c0_33] : memref<64x128xf32, #tpu.memory_space<vmem>>, vector<8x128xf32>
    tpu.vector_store %arg15[%107, %c0_33], %106 {strides = array<i32>} : memref<64x128xf32, #tpu.memory_space<vmem>>, vector<8x128xf32>,
    %c4_i32 = arith.constant 4 : i32
    %c8_i32_34 = arith.constant 8 : i32
    %109 = arith.muli %c4_i32, %c8_i32_34 : i32
    %110 = tpu.assume_multiple %109, 8 : i32
    %111 = arith.index_cast %110 : i32 to index
    %c0_35 = arith.constant 0 : index
    %112 = vector.load %arg16[%111, %c0_35] : memref<64x512xf32, #tpu.memory_space<vmem>>, vector<8x512xf32>
    %cst_36 = arith.constant dense<0.000000e+00> : vector<8x512xf32>
    %113 = tpu.matmul %106, %10, %cst_36 {dimension_numbers = #tpu.dot_dimension_numbers<[1], [0], [0], [1], [0, 0, 1, 1], [], []>} : vector<8x128xf32>, vector<128x512xf32>, vector<8x512xf32> -> vector<8x512xf32>
    %114 = arith.addf %112, %113 : vector<8x512xf32>
    %115 = vector.extract_strided_slice %114 {offsets = [0, 0], sizes = [8, 384], strides = [1, 1]} : vector<8x512xf32> to vector<8x384xf32>
    %116 = arith.negf %115 : vector<8x384xf32>
    %117 = math.exp %116 : vector<8x384xf32>
    %cst_37 = arith.constant 1.000000e+00 : f32
    %118 = vector.broadcast %cst_37 : f32 to vector<8x384xf32>
    %119 = arith.addf %118, %117 : vector<8x384xf32>
    %120 = arith.divf %118, %119 : vector<8x384xf32>
    %121 = vector.extract_strided_slice %114 {offsets = [0, 384], sizes = [8, 128], strides = [1, 1]} : vector<8x512xf32> to vector<8x128xf32>
    %122 = math.tanh %121 : vector<8x128xf32>
    %123 = vector.extract_strided_slice %120 {offsets = [0, 0], sizes = [8, 128], strides = [1, 1]} : vector<8x384xf32> to vector<8x128xf32>
    %124 = vector.extract_strided_slice %120 {offsets = [0, 128], sizes = [8, 128], strides = [1, 1]} : vector<8x384xf32> to vector<8x128xf32>
    %125 = vector.extract_strided_slice %120 {offsets = [0, 256], sizes = [8, 128], strides = [1, 1]} : vector<8x384xf32> to vector<8x128xf32>
    %126 = arith.mulf %124, %104 : vector<8x128xf32>
    %127 = arith.mulf %123, %122 : vector<8x128xf32>
    %128 = arith.addf %126, %127 : vector<8x128xf32>
    %129 = math.tanh %128 : vector<8x128xf32>
    %130 = arith.mulf %125, %129 : vector<8x128xf32>
    %131 = arith.index_cast %110 : i32 to index
    %c0_38 = arith.constant 0 : index
    %132 = vector.load %arg15[%131, %c0_38] : memref<64x128xf32, #tpu.memory_space<vmem>>, vector<8x128xf32>
    tpu.vector_store %arg15[%131, %c0_38], %130 {strides = array<i32>} : memref<64x128xf32, #tpu.memory_space<vmem>>, vector<8x128xf32>,
    %c5_i32 = arith.constant 5 : i32
    %c8_i32_39 = arith.constant 8 : i32
    %133 = arith.muli %c5_i32, %c8_i32_39 : i32
    %134 = tpu.assume_multiple %133, 8 : i32
    %135 = arith.index_cast %134 : i32 to index
    %c0_40 = arith.constant 0 : index
    %136 = vector.load %arg16[%135, %c0_40] : memref<64x512xf32, #tpu.memory_space<vmem>>, vector<8x512xf32>
    %cst_41 = arith.constant dense<0.000000e+00> : vector<8x512xf32>
    %137 = tpu.matmul %130, %10, %cst_41 {dimension_numbers = #tpu.dot_dimension_numbers<[1], [0], [0], [1], [0, 0, 1, 1], [], []>} : vector<8x128xf32>, vector<128x512xf32>, vector<8x512xf32> -> vector<8x512xf32>
    %138 = arith.addf %136, %137 : vector<8x512xf32>
    %139 = vector.extract_strided_slice %138 {offsets = [0, 0], sizes = [8, 384], strides = [1, 1]} : vector<8x512xf32> to vector<8x384xf32>
    %140 = arith.negf %139 : vector<8x384xf32>
    %141 = math.exp %140 : vector<8x384xf32>
    %cst_42 = arith.constant 1.000000e+00 : f32
    %142 = vector.broadcast %cst_42 : f32 to vector<8x384xf32>
    %143 = arith.addf %142, %141 : vector<8x384xf32>
    %144 = arith.divf %142, %143 : vector<8x384xf32>
    %145 = vector.extract_strided_slice %138 {offsets = [0, 384], sizes = [8, 128], strides = [1, 1]} : vector<8x512xf32> to vector<8x128xf32>
    %146 = math.tanh %145 : vector<8x128xf32>
    %147 = vector.extract_strided_slice %144 {offsets = [0, 0], sizes = [8, 128], strides = [1, 1]} : vector<8x384xf32> to vector<8x128xf32>
    %148 = vector.extract_strided_slice %144 {offsets = [0, 128], sizes = [8, 128], strides = [1, 1]} : vector<8x384xf32> to vector<8x128xf32>
    %149 = vector.extract_strided_slice %144 {offsets = [0, 256], sizes = [8, 128], strides = [1, 1]} : vector<8x384xf32> to vector<8x128xf32>
    %150 = arith.mulf %148, %128 : vector<8x128xf32>
    %151 = arith.mulf %147, %146 : vector<8x128xf32>
    %152 = arith.addf %150, %151 : vector<8x128xf32>
    %153 = math.tanh %152 : vector<8x128xf32>
    %154 = arith.mulf %149, %153 : vector<8x128xf32>
    %155 = arith.index_cast %134 : i32 to index
    %c0_43 = arith.constant 0 : index
    %156 = vector.load %arg15[%155, %c0_43] : memref<64x128xf32, #tpu.memory_space<vmem>>, vector<8x128xf32>
    tpu.vector_store %arg15[%155, %c0_43], %154 {strides = array<i32>} : memref<64x128xf32, #tpu.memory_space<vmem>>, vector<8x128xf32>,
    %c6_i32 = arith.constant 6 : i32
    %c8_i32_44 = arith.constant 8 : i32
    %157 = arith.muli %c6_i32, %c8_i32_44 : i32
    %158 = tpu.assume_multiple %157, 8 : i32
    %159 = arith.index_cast %158 : i32 to index
    %c0_45 = arith.constant 0 : index
    %160 = vector.load %arg16[%159, %c0_45] : memref<64x512xf32, #tpu.memory_space<vmem>>, vector<8x512xf32>
    %cst_46 = arith.constant dense<0.000000e+00> : vector<8x512xf32>
    %161 = tpu.matmul %154, %10, %cst_46 {dimension_numbers = #tpu.dot_dimension_numbers<[1], [0], [0], [1], [0, 0, 1, 1], [], []>} : vector<8x128xf32>, vector<128x512xf32>, vector<8x512xf32> -> vector<8x512xf32>
    %162 = arith.addf %160, %161 : vector<8x512xf32>
    %163 = vector.extract_strided_slice %162 {offsets = [0, 0], sizes = [8, 384], strides = [1, 1]} : vector<8x512xf32> to vector<8x384xf32>
    %164 = arith.negf %163 : vector<8x384xf32>
    %165 = math.exp %164 : vector<8x384xf32>
    %cst_47 = arith.constant 1.000000e+00 : f32
    %166 = vector.broadcast %cst_47 : f32 to vector<8x384xf32>
    %167 = arith.addf %166, %165 : vector<8x384xf32>
    %168 = arith.divf %166, %167 : vector<8x384xf32>
    %169 = vector.extract_strided_slice %162 {offsets = [0, 384], sizes = [8, 128], strides = [1, 1]} : vector<8x512xf32> to vector<8x128xf32>
    %170 = math.tanh %169 : vector<8x128xf32>
    %171 = vector.extract_strided_slice %168 {offsets = [0, 0], sizes = [8, 128], strides = [1, 1]} : vector<8x384xf32> to vector<8x128xf32>
    %172 = vector.extract_strided_slice %168 {offsets = [0, 128], sizes = [8, 128], strides = [1, 1]} : vector<8x384xf32> to vector<8x128xf32>
    %173 = vector.extract_strided_slice %168 {offsets = [0, 256], sizes = [8, 128], strides = [1, 1]} : vector<8x384xf32> to vector<8x128xf32>
    %174 = arith.mulf %172, %152 : vector<8x128xf32>
    %175 = arith.mulf %171, %170 : vector<8x128xf32>
    %176 = arith.addf %174, %175 : vector<8x128xf32>
    %177 = math.tanh %176 : vector<8x128xf32>
    %178 = arith.mulf %173, %177 : vector<8x128xf32>
    %179 = arith.index_cast %158 : i32 to index
    %c0_48 = arith.constant 0 : index
    %180 = vector.load %arg15[%179, %c0_48] : memref<64x128xf32, #tpu.memory_space<vmem>>, vector<8x128xf32>
    tpu.vector_store %arg15[%179, %c0_48], %178 {strides = array<i32>} : memref<64x128xf32, #tpu.memory_space<vmem>>, vector<8x128xf32>,
    %c7_i32 = arith.constant 7 : i32
    %c8_i32_49 = arith.constant 8 : i32
    %181 = arith.muli %c7_i32, %c8_i32_49 : i32
    %182 = tpu.assume_multiple %181, 8 : i32
    %183 = arith.index_cast %182 : i32 to index
    %c0_50 = arith.constant 0 : index
    %184 = vector.load %arg16[%183, %c0_50] : memref<64x512xf32, #tpu.memory_space<vmem>>, vector<8x512xf32>
    %cst_51 = arith.constant dense<0.000000e+00> : vector<8x512xf32>
    %185 = tpu.matmul %178, %10, %cst_51 {dimension_numbers = #tpu.dot_dimension_numbers<[1], [0], [0], [1], [0, 0, 1, 1], [], []>} : vector<8x128xf32>, vector<128x512xf32>, vector<8x512xf32> -> vector<8x512xf32>
    %186 = arith.addf %184, %185 : vector<8x512xf32>
    %187 = vector.extract_strided_slice %186 {offsets = [0, 0], sizes = [8, 384], strides = [1, 1]} : vector<8x512xf32> to vector<8x384xf32>
    %188 = arith.negf %187 : vector<8x384xf32>
    %189 = math.exp %188 : vector<8x384xf32>
    %cst_52 = arith.constant 1.000000e+00 : f32
    %190 = vector.broadcast %cst_52 : f32 to vector<8x384xf32>
    %191 = arith.addf %190, %189 : vector<8x384xf32>
    %192 = arith.divf %190, %191 : vector<8x384xf32>
    %193 = vector.extract_strided_slice %186 {offsets = [0, 384], sizes = [8, 128], strides = [1, 1]} : vector<8x512xf32> to vector<8x128xf32>
    %194 = math.tanh %193 : vector<8x128xf32>
    %195 = vector.extract_strided_slice %192 {offsets = [0, 0], sizes = [8, 128], strides = [1, 1]} : vector<8x384xf32> to vector<8x128xf32>
    %196 = vector.extract_strided_slice %192 {offsets = [0, 128], sizes = [8, 128], strides = [1, 1]} : vector<8x384xf32> to vector<8x128xf32>
    %197 = vector.extract_strided_slice %192 {offsets = [0, 256], sizes = [8, 128], strides = [1, 1]} : vector<8x384xf32> to vector<8x128xf32>
    %198 = arith.mulf %196, %176 : vector<8x128xf32>
    %199 = arith.mulf %195, %194 : vector<8x128xf32>
    %200 = arith.addf %198, %199 : vector<8x128xf32>
    %201 = math.tanh %200 : vector<8x128xf32>
    %202 = arith.mulf %197, %201 : vector<8x128xf32>
    %203 = arith.index_cast %182 : i32 to index
    %c0_53 = arith.constant 0 : index
    %204 = vector.load %arg15[%203, %c0_53] : memref<64x128xf32, #tpu.memory_space<vmem>>, vector<8x128xf32>
    tpu.vector_store %arg15[%203, %c0_53], %202 {strides = array<i32>} : memref<64x128xf32, #tpu.memory_space<vmem>>, vector<8x128xf32>,
    %c8_i32_54 = arith.constant 8 : i32
    %c0_55 = arith.constant 0 : index
    %c0_56 = arith.constant 0 : index
    %205 = vector.load %arg11[%c0_55, %c0_56] : memref<8x128xf32, #tpu.memory_space<vmem>>, vector<8x128xf32>
    tpu.vector_store %arg11[%c0_55, %c0_56], %202 {strides = array<i32>} : memref<8x128xf32, #tpu.memory_space<vmem>>, vector<8x128xf32>,
    %c0_57 = arith.constant 0 : index
    %c0_58 = arith.constant 0 : index
    %206 = vector.load %arg12[%c0_57, %c0_58] : memref<8x128xf32, #tpu.memory_space<vmem>>, vector<8x128xf32>
    tpu.vector_store %arg12[%c0_57, %c0_58], %200 {strides = array<i32>} : memref<8x128xf32, #tpu.memory_space<vmem>>, vector<8x128xf32>,
    %c0_59 = arith.constant 0 : index
    %c0_60 = arith.constant 0 : index
    %207 = vector.load %arg15[%c0_59, %c0_60] : memref<64x128xf32, #tpu.memory_space<vmem>>, vector<64x128xf32>
    %c0_61 = arith.constant 0 : index
    %c0_62 = arith.constant 0 : index
    %208 = vector.load %arg5[%c0_61, %c0_62] : memref<128x512xf32, #tpu.memory_space<vmem>>, vector<128x512xf32>
    %cst_63 = arith.constant dense<0.000000e+00> : vector<64x512xf32>
    %209 = tpu.matmul %207, %208, %cst_63 {dimension_numbers = #tpu.dot_dimension_numbers<[1], [0], [0], [1], [0, 0, 1, 1], [], []>} : vector<64x128xf32>, vector<128x512xf32>, vector<64x512xf32> -> vector<64x512xf32>
    %c0_64 = arith.constant 0 : index
    %c0_65 = arith.constant 0 : index
    %210 = vector.load %arg7[%c0_64, %c0_65] : memref<1x512xf32, #tpu.memory_space<vmem>>, vector<1x512xf32>
    %211 = vector.broadcast %210 : vector<1x512xf32> to vector<64x512xf32>
    %212 = arith.addf %209, %211 : vector<64x512xf32>
    %c0_66 = arith.constant 0 : index
    %c0_67 = arith.constant 0 : index
    %213 = vector.load %arg16[%c0_66, %c0_67] : memref<64x512xf32, #tpu.memory_space<vmem>>, vector<64x512xf32>
    tpu.vector_store %arg16[%c0_66, %c0_67], %212 {strides = array<i32>} : memref<64x512xf32, #tpu.memory_space<vmem>>, vector<64x512xf32>,
    %c0_68 = arith.constant 0 : index
    %c0_69 = arith.constant 0 : index
    %214 = vector.load %arg6[%c0_68, %c0_69] : memref<128x512xf32, #tpu.memory_space<vmem>>, vector<128x512xf32>
    %c0_70 = arith.constant 0 : index
    %c0_71 = arith.constant 0 : index
    %215 = vector.load %arg13[%c0_70, %c0_71] : memref<8x128xf32, #tpu.memory_space<vmem>>, vector<8x128xf32>
    %c0_72 = arith.constant 0 : index
    %c0_73 = arith.constant 0 : index
    %216 = vector.load %arg14[%c0_72, %c0_73] : memref<8x128xf32, #tpu.memory_space<vmem>>, vector<8x128xf32>
    %c0_i32_74 = arith.constant 0 : i32
    %c8_i32_75 = arith.constant 8 : i32
    %217 = arith.muli %c0_i32_74, %c8_i32_75 : i32
    %218 = tpu.assume_multiple %217, 8 : i32
    %219 = arith.index_cast %218 : i32 to index
    %c0_76 = arith.constant 0 : index
    %220 = vector.load %arg16[%219, %c0_76] : memref<64x512xf32, #tpu.memory_space<vmem>>, vector<8x512xf32>
    %cst_77 = arith.constant dense<0.000000e+00> : vector<8x512xf32>
    %221 = tpu.matmul %215, %214, %cst_77 {dimension_numbers = #tpu.dot_dimension_numbers<[1], [0], [0], [1], [0, 0, 1, 1], [], []>} : vector<8x128xf32>, vector<128x512xf32>, vector<8x512xf32> -> vector<8x512xf32>
    %222 = arith.addf %220, %221 : vector<8x512xf32>
    %223 = vector.extract_strided_slice %222 {offsets = [0, 0], sizes = [8, 384], strides = [1, 1]} : vector<8x512xf32> to vector<8x384xf32>
    %224 = arith.negf %223 : vector<8x384xf32>
    %225 = math.exp %224 : vector<8x384xf32>
    %cst_78 = arith.constant 1.000000e+00 : f32
    %226 = vector.broadcast %cst_78 : f32 to vector<8x384xf32>
    %227 = arith.addf %226, %225 : vector<8x384xf32>
    %228 = arith.divf %226, %227 : vector<8x384xf32>
    %229 = vector.extract_strided_slice %222 {offsets = [0, 384], sizes = [8, 128], strides = [1, 1]} : vector<8x512xf32> to vector<8x128xf32>
    %230 = math.tanh %229 : vector<8x128xf32>
    %231 = vector.extract_strided_slice %228 {offsets = [0, 0], sizes = [8, 128], strides = [1, 1]} : vector<8x384xf32> to vector<8x128xf32>
    %232 = vector.extract_strided_slice %228 {offsets = [0, 128], sizes = [8, 128], strides = [1, 1]} : vector<8x384xf32> to vector<8x128xf32>
    %233 = vector.extract_strided_slice %228 {offsets = [0, 256], sizes = [8, 128], strides = [1, 1]} : vector<8x384xf32> to vector<8x128xf32>
    %234 = arith.mulf %232, %216 : vector<8x128xf32>
    %235 = arith.mulf %231, %230 : vector<8x128xf32>
    %236 = arith.addf %234, %235 : vector<8x128xf32>
    %237 = math.tanh %236 : vector<8x128xf32>
    %238 = arith.mulf %233, %237 : vector<8x128xf32>
    %c1_i32_79 = arith.constant 1 : i32
    %c8_i32_80 = arith.constant 8 : i32
    %239 = arith.muli %c1_i32_79, %c8_i32_80 : i32
    %240 = tpu.assume_multiple %239, 8 : i32
    %241 = arith.index_cast %240 : i32 to index
    %c0_81 = arith.constant 0 : index
    %242 = vector.load %arg16[%241, %c0_81] : memref<64x512xf32, #tpu.memory_space<vmem>>, vector<8x512xf32>
    %cst_82 = arith.constant dense<0.000000e+00> : vector<8x512xf32>
    %243 = tpu.matmul %238, %214, %cst_82 {dimension_numbers = #tpu.dot_dimension_numbers<[1], [0], [0], [1], [0, 0, 1, 1], [], []>} : vector<8x128xf32>, vector<128x512xf32>, vector<8x512xf32> -> vector<8x512xf32>
    %244 = arith.addf %242, %243 : vector<8x512xf32>
    %245 = vector.extract_strided_slice %244 {offsets = [0, 0], sizes = [8, 384], strides = [1, 1]} : vector<8x512xf32> to vector<8x384xf32>
    %246 = arith.negf %245 : vector<8x384xf32>
    %247 = math.exp %246 : vector<8x384xf32>
    %cst_83 = arith.constant 1.000000e+00 : f32
    %248 = vector.broadcast %cst_83 : f32 to vector<8x384xf32>
    %249 = arith.addf %248, %247 : vector<8x384xf32>
    %250 = arith.divf %248, %249 : vector<8x384xf32>
    %251 = vector.extract_strided_slice %244 {offsets = [0, 384], sizes = [8, 128], strides = [1, 1]} : vector<8x512xf32> to vector<8x128xf32>
    %252 = math.tanh %251 : vector<8x128xf32>
    %253 = vector.extract_strided_slice %250 {offsets = [0, 0], sizes = [8, 128], strides = [1, 1]} : vector<8x384xf32> to vector<8x128xf32>
    %254 = vector.extract_strided_slice %250 {offsets = [0, 128], sizes = [8, 128], strides = [1, 1]} : vector<8x384xf32> to vector<8x128xf32>
    %255 = vector.extract_strided_slice %250 {offsets = [0, 256], sizes = [8, 128], strides = [1, 1]} : vector<8x384xf32> to vector<8x128xf32>
    %256 = arith.mulf %254, %236 : vector<8x128xf32>
    %257 = arith.mulf %253, %252 : vector<8x128xf32>
    %258 = arith.addf %256, %257 : vector<8x128xf32>
    %259 = math.tanh %258 : vector<8x128xf32>
    %260 = arith.mulf %255, %259 : vector<8x128xf32>
    %c2_i32_84 = arith.constant 2 : i32
    %c8_i32_85 = arith.constant 8 : i32
    %261 = arith.muli %c2_i32_84, %c8_i32_85 : i32
    %262 = tpu.assume_multiple %261, 8 : i32
    %263 = arith.index_cast %262 : i32 to index
    %c0_86 = arith.constant 0 : index
    %264 = vector.load %arg16[%263, %c0_86] : memref<64x512xf32, #tpu.memory_space<vmem>>, vector<8x512xf32>
    %cst_87 = arith.constant dense<0.000000e+00> : vector<8x512xf32>
    %265 = tpu.matmul %260, %214, %cst_87 {dimension_numbers = #tpu.dot_dimension_numbers<[1], [0], [0], [1], [0, 0, 1, 1], [], []>} : vector<8x128xf32>, vector<128x512xf32>, vector<8x512xf32> -> vector<8x512xf32>
    %266 = arith.addf %264, %265 : vector<8x512xf32>
    %267 = vector.extract_strided_slice %266 {offsets = [0, 0], sizes = [8, 384], strides = [1, 1]} : vector<8x512xf32> to vector<8x384xf32>
    %268 = arith.negf %267 : vector<8x384xf32>
    %269 = math.exp %268 : vector<8x384xf32>
    %cst_88 = arith.constant 1.000000e+00 : f32
    %270 = vector.broadcast %cst_88 : f32 to vector<8x384xf32>
    %271 = arith.addf %270, %269 : vector<8x384xf32>
    %272 = arith.divf %270, %271 : vector<8x384xf32>
    %273 = vector.extract_strided_slice %266 {offsets = [0, 384], sizes = [8, 128], strides = [1, 1]} : vector<8x512xf32> to vector<8x128xf32>
    %274 = math.tanh %273 : vector<8x128xf32>
    %275 = vector.extract_strided_slice %272 {offsets = [0, 0], sizes = [8, 128], strides = [1, 1]} : vector<8x384xf32> to vector<8x128xf32>
    %276 = vector.extract_strided_slice %272 {offsets = [0, 128], sizes = [8, 128], strides = [1, 1]} : vector<8x384xf32> to vector<8x128xf32>
    %277 = vector.extract_strided_slice %272 {offsets = [0, 256], sizes = [8, 128], strides = [1, 1]} : vector<8x384xf32> to vector<8x128xf32>
    %278 = arith.mulf %276, %258 : vector<8x128xf32>
    %279 = arith.mulf %275, %274 : vector<8x128xf32>
    %280 = arith.addf %278, %279 : vector<8x128xf32>
    %281 = math.tanh %280 : vector<8x128xf32>
    %282 = arith.mulf %277, %281 : vector<8x128xf32>
    %c3_i32_89 = arith.constant 3 : i32
    %c8_i32_90 = arith.constant 8 : i32
    %283 = arith.muli %c3_i32_89, %c8_i32_90 : i32
    %284 = tpu.assume_multiple %283, 8 : i32
    %285 = arith.index_cast %284 : i32 to index
    %c0_91 = arith.constant 0 : index
    %286 = vector.load %arg16[%285, %c0_91] : memref<64x512xf32, #tpu.memory_space<vmem>>, vector<8x512xf32>
    %cst_92 = arith.constant dense<0.000000e+00> : vector<8x512xf32>
    %287 = tpu.matmul %282, %214, %cst_92 {dimension_numbers = #tpu.dot_dimension_numbers<[1], [0], [0], [1], [0, 0, 1, 1], [], []>} : vector<8x128xf32>, vector<128x512xf32>, vector<8x512xf32> -> vector<8x512xf32>
    %288 = arith.addf %286, %287 : vector<8x512xf32>
    %289 = vector.extract_strided_slice %288 {offsets = [0, 0], sizes = [8, 384], strides = [1, 1]} : vector<8x512xf32> to vector<8x384xf32>
    %290 = arith.negf %289 : vector<8x384xf32>
    %291 = math.exp %290 : vector<8x384xf32>
    %cst_93 = arith.constant 1.000000e+00 : f32
    %292 = vector.broadcast %cst_93 : f32 to vector<8x384xf32>
    %293 = arith.addf %292, %291 : vector<8x384xf32>
    %294 = arith.divf %292, %293 : vector<8x384xf32>
    %295 = vector.extract_strided_slice %288 {offsets = [0, 384], sizes = [8, 128], strides = [1, 1]} : vector<8x512xf32> to vector<8x128xf32>
    %296 = math.tanh %295 : vector<8x128xf32>
    %297 = vector.extract_strided_slice %294 {offsets = [0, 0], sizes = [8, 128], strides = [1, 1]} : vector<8x384xf32> to vector<8x128xf32>
    %298 = vector.extract_strided_slice %294 {offsets = [0, 128], sizes = [8, 128], strides = [1, 1]} : vector<8x384xf32> to vector<8x128xf32>
    %299 = vector.extract_strided_slice %294 {offsets = [0, 256], sizes = [8, 128], strides = [1, 1]} : vector<8x384xf32> to vector<8x128xf32>
    %300 = arith.mulf %298, %280 : vector<8x128xf32>
    %301 = arith.mulf %297, %296 : vector<8x128xf32>
    %302 = arith.addf %300, %301 : vector<8x128xf32>
    %303 = math.tanh %302 : vector<8x128xf32>
    %304 = arith.mulf %299, %303 : vector<8x128xf32>
    %c4_i32_94 = arith.constant 4 : i32
    %c8_i32_95 = arith.constant 8 : i32
    %305 = arith.muli %c4_i32_94, %c8_i32_95 : i32
    %306 = tpu.assume_multiple %305, 8 : i32
    %307 = arith.index_cast %306 : i32 to index
    %c0_96 = arith.constant 0 : index
    %308 = vector.load %arg16[%307, %c0_96] : memref<64x512xf32, #tpu.memory_space<vmem>>, vector<8x512xf32>
    %cst_97 = arith.constant dense<0.000000e+00> : vector<8x512xf32>
    %309 = tpu.matmul %304, %214, %cst_97 {dimension_numbers = #tpu.dot_dimension_numbers<[1], [0], [0], [1], [0, 0, 1, 1], [], []>} : vector<8x128xf32>, vector<128x512xf32>, vector<8x512xf32> -> vector<8x512xf32>
    %310 = arith.addf %308, %309 : vector<8x512xf32>
    %311 = vector.extract_strided_slice %310 {offsets = [0, 0], sizes = [8, 384], strides = [1, 1]} : vector<8x512xf32> to vector<8x384xf32>
    %312 = arith.negf %311 : vector<8x384xf32>
    %313 = math.exp %312 : vector<8x384xf32>
    %cst_98 = arith.constant 1.000000e+00 : f32
    %314 = vector.broadcast %cst_98 : f32 to vector<8x384xf32>
    %315 = arith.addf %314, %313 : vector<8x384xf32>
    %316 = arith.divf %314, %315 : vector<8x384xf32>
    %317 = vector.extract_strided_slice %310 {offsets = [0, 384], sizes = [8, 128], strides = [1, 1]} : vector<8x512xf32> to vector<8x128xf32>
    %318 = math.tanh %317 : vector<8x128xf32>
    %319 = vector.extract_strided_slice %316 {offsets = [0, 0], sizes = [8, 128], strides = [1, 1]} : vector<8x384xf32> to vector<8x128xf32>
    %320 = vector.extract_strided_slice %316 {offsets = [0, 128], sizes = [8, 128], strides = [1, 1]} : vector<8x384xf32> to vector<8x128xf32>
    %321 = vector.extract_strided_slice %316 {offsets = [0, 256], sizes = [8, 128], strides = [1, 1]} : vector<8x384xf32> to vector<8x128xf32>
    %322 = arith.mulf %320, %302 : vector<8x128xf32>
    %323 = arith.mulf %319, %318 : vector<8x128xf32>
    %324 = arith.addf %322, %323 : vector<8x128xf32>
    %325 = math.tanh %324 : vector<8x128xf32>
    %326 = arith.mulf %321, %325 : vector<8x128xf32>
    %c5_i32_99 = arith.constant 5 : i32
    %c8_i32_100 = arith.constant 8 : i32
    %327 = arith.muli %c5_i32_99, %c8_i32_100 : i32
    %328 = tpu.assume_multiple %327, 8 : i32
    %329 = arith.index_cast %328 : i32 to index
    %c0_101 = arith.constant 0 : index
    %330 = vector.load %arg16[%329, %c0_101] : memref<64x512xf32, #tpu.memory_space<vmem>>, vector<8x512xf32>
    %cst_102 = arith.constant dense<0.000000e+00> : vector<8x512xf32>
    %331 = tpu.matmul %326, %214, %cst_102 {dimension_numbers = #tpu.dot_dimension_numbers<[1], [0], [0], [1], [0, 0, 1, 1], [], []>} : vector<8x128xf32>, vector<128x512xf32>, vector<8x512xf32> -> vector<8x512xf32>
    %332 = arith.addf %330, %331 : vector<8x512xf32>
    %333 = vector.extract_strided_slice %332 {offsets = [0, 0], sizes = [8, 384], strides = [1, 1]} : vector<8x512xf32> to vector<8x384xf32>
    %334 = arith.negf %333 : vector<8x384xf32>
    %335 = math.exp %334 : vector<8x384xf32>
    %cst_103 = arith.constant 1.000000e+00 : f32
    %336 = vector.broadcast %cst_103 : f32 to vector<8x384xf32>
    %337 = arith.addf %336, %335 : vector<8x384xf32>
    %338 = arith.divf %336, %337 : vector<8x384xf32>
    %339 = vector.extract_strided_slice %332 {offsets = [0, 384], sizes = [8, 128], strides = [1, 1]} : vector<8x512xf32> to vector<8x128xf32>
    %340 = math.tanh %339 : vector<8x128xf32>
    %341 = vector.extract_strided_slice %338 {offsets = [0, 0], sizes = [8, 128], strides = [1, 1]} : vector<8x384xf32> to vector<8x128xf32>
    %342 = vector.extract_strided_slice %338 {offsets = [0, 128], sizes = [8, 128], strides = [1, 1]} : vector<8x384xf32> to vector<8x128xf32>
    %343 = vector.extract_strided_slice %338 {offsets = [0, 256], sizes = [8, 128], strides = [1, 1]} : vector<8x384xf32> to vector<8x128xf32>
    %344 = arith.mulf %342, %324 : vector<8x128xf32>
    %345 = arith.mulf %341, %340 : vector<8x128xf32>
    %346 = arith.addf %344, %345 : vector<8x128xf32>
    %347 = math.tanh %346 : vector<8x128xf32>
    %348 = arith.mulf %343, %347 : vector<8x128xf32>
    %c6_i32_104 = arith.constant 6 : i32
    %c8_i32_105 = arith.constant 8 : i32
    %349 = arith.muli %c6_i32_104, %c8_i32_105 : i32
    %350 = tpu.assume_multiple %349, 8 : i32
    %351 = arith.index_cast %350 : i32 to index
    %c0_106 = arith.constant 0 : index
    %352 = vector.load %arg16[%351, %c0_106] : memref<64x512xf32, #tpu.memory_space<vmem>>, vector<8x512xf32>
    %cst_107 = arith.constant dense<0.000000e+00> : vector<8x512xf32>
    %353 = tpu.matmul %348, %214, %cst_107 {dimension_numbers = #tpu.dot_dimension_numbers<[1], [0], [0], [1], [0, 0, 1, 1], [], []>} : vector<8x128xf32>, vector<128x512xf32>, vector<8x512xf32> -> vector<8x512xf32>
    %354 = arith.addf %352, %353 : vector<8x512xf32>
    %355 = vector.extract_strided_slice %354 {offsets = [0, 0], sizes = [8, 384], strides = [1, 1]} : vector<8x512xf32> to vector<8x384xf32>
    %356 = arith.negf %355 : vector<8x384xf32>
    %357 = math.exp %356 : vector<8x384xf32>
    %cst_108 = arith.constant 1.000000e+00 : f32
    %358 = vector.broadcast %cst_108 : f32 to vector<8x384xf32>
    %359 = arith.addf %358, %357 : vector<8x384xf32>
    %360 = arith.divf %358, %359 : vector<8x384xf32>
    %361 = vector.extract_strided_slice %354 {offsets = [0, 384], sizes = [8, 128], strides = [1, 1]} : vector<8x512xf32> to vector<8x128xf32>
    %362 = math.tanh %361 : vector<8x128xf32>
    %363 = vector.extract_strided_slice %360 {offsets = [0, 0], sizes = [8, 128], strides = [1, 1]} : vector<8x384xf32> to vector<8x128xf32>
    %364 = vector.extract_strided_slice %360 {offsets = [0, 128], sizes = [8, 128], strides = [1, 1]} : vector<8x384xf32> to vector<8x128xf32>
    %365 = vector.extract_strided_slice %360 {offsets = [0, 256], sizes = [8, 128], strides = [1, 1]} : vector<8x384xf32> to vector<8x128xf32>
    %366 = arith.mulf %364, %346 : vector<8x128xf32>
    %367 = arith.mulf %363, %362 : vector<8x128xf32>
    %368 = arith.addf %366, %367 : vector<8x128xf32>
    %369 = math.tanh %368 : vector<8x128xf32>
    %370 = arith.mulf %365, %369 : vector<8x128xf32>
    %c7_i32_109 = arith.constant 7 : i32
    %c8_i32_110 = arith.constant 8 : i32
    %371 = arith.muli %c7_i32_109, %c8_i32_110 : i32
    %372 = tpu.assume_multiple %371, 8 : i32
    %373 = arith.index_cast %372 : i32 to index
    %c0_111 = arith.constant 0 : index
    %374 = vector.load %arg16[%373, %c0_111] : memref<64x512xf32, #tpu.memory_space<vmem>>, vector<8x512xf32>
    %cst_112 = arith.constant dense<0.000000e+00> : vector<8x512xf32>
    %375 = tpu.matmul %370, %214, %cst_112 {dimension_numbers = #tpu.dot_dimension_numbers<[1], [0], [0], [1], [0, 0, 1, 1], [], []>} : vector<8x128xf32>, vector<128x512xf32>, vector<8x512xf32> -> vector<8x512xf32>
    %376 = arith.addf %374, %375 : vector<8x512xf32>
    %377 = vector.extract_strided_slice %376 {offsets = [0, 0], sizes = [8, 384], strides = [1, 1]} : vector<8x512xf32> to vector<8x384xf32>
    %378 = arith.negf %377 : vector<8x384xf32>
    %379 = math.exp %378 : vector<8x384xf32>
    %cst_113 = arith.constant 1.000000e+00 : f32
    %380 = vector.broadcast %cst_113 : f32 to vector<8x384xf32>
    %381 = arith.addf %380, %379 : vector<8x384xf32>
    %382 = arith.divf %380, %381 : vector<8x384xf32>
    %383 = vector.extract_strided_slice %376 {offsets = [0, 384], sizes = [8, 128], strides = [1, 1]} : vector<8x512xf32> to vector<8x128xf32>
    %384 = math.tanh %383 : vector<8x128xf32>
    %385 = vector.extract_strided_slice %382 {offsets = [0, 0], sizes = [8, 128], strides = [1, 1]} : vector<8x384xf32> to vector<8x128xf32>
    %386 = vector.extract_strided_slice %382 {offsets = [0, 128], sizes = [8, 128], strides = [1, 1]} : vector<8x384xf32> to vector<8x128xf32>
    %387 = vector.extract_strided_slice %382 {offsets = [0, 256], sizes = [8, 128], strides = [1, 1]} : vector<8x384xf32> to vector<8x128xf32>
    %388 = arith.mulf %386, %368 : vector<8x128xf32>
    %389 = arith.mulf %385, %384 : vector<8x128xf32>
    %390 = arith.addf %388, %389 : vector<8x128xf32>
    %391 = math.tanh %390 : vector<8x128xf32>
    %392 = arith.mulf %387, %391 : vector<8x128xf32>
    %c8_i32_114 = arith.constant 8 : i32
    %c0_115 = arith.constant 0 : index
    %c0_116 = arith.constant 0 : index
    %393 = vector.load %arg13[%c0_115, %c0_116] : memref<8x128xf32, #tpu.memory_space<vmem>>, vector<8x128xf32>
    tpu.vector_store %arg13[%c0_115, %c0_116], %392 {strides = array<i32>} : memref<8x128xf32, #tpu.memory_space<vmem>>, vector<8x128xf32>,
    %c0_117 = arith.constant 0 : index
    %c0_118 = arith.constant 0 : index
    %394 = vector.load %arg14[%c0_117, %c0_118] : memref<8x128xf32, #tpu.memory_space<vmem>>, vector<8x128xf32>
    tpu.vector_store %arg14[%c0_117, %c0_118], %390 {strides = array<i32>} : memref<8x128xf32, #tpu.memory_space<vmem>>, vector<8x128xf32>,
    %c0_i32_119 = arith.constant 0 : i32
    %395 = arith.cmpi eq, %arg0, %c0_i32_119 : i32
    %396 = arith.extui %395 : i1 to i32
    %c0_i32_120 = arith.constant 0 : i32
    %397 = arith.cmpi ne, %396, %c0_i32_120 : i32
    scf.if %397 {
      %c0_121 = arith.constant 0 : index
      %c0_122 = arith.constant 0 : index
      %398 = vector.load %arg13[%c0_121, %c0_122] : memref<8x128xf32, #tpu.memory_space<vmem>>, vector<8x128xf32>
      %c0_123 = arith.constant 0 : index
      %c0_124 = arith.constant 0 : index
      %399 = vector.load %arg8[%c0_123, %c0_124] : memref<128x128xf32, #tpu.memory_space<vmem>>, vector<128x128xf32>
      %cst_125 = arith.constant dense<0.000000e+00> : vector<8x128xf32>
      %400 = tpu.matmul %398, %399, %cst_125 {dimension_numbers = #tpu.dot_dimension_numbers<[1], [0], [0], [1], [0, 0, 1, 1], [], []>} : vector<8x128xf32>, vector<128x128xf32>, vector<8x128xf32> -> vector<8x128xf32>
      %c0_126 = arith.constant 0 : index
      %c0_127 = arith.constant 0 : index
      %401 = vector.load %arg9[%c0_126, %c0_127] : memref<1x128xf32, #tpu.memory_space<vmem>>, vector<1x128xf32>
      %402 = vector.broadcast %401 : vector<1x128xf32> to vector<8x128xf32>
      %403 = arith.addf %400, %402 : vector<8x128xf32>
      %c0_128 = arith.constant 0 : index
      %c0_129 = arith.constant 0 : index
      %404 = vector.load %arg10[%c0_128, %c0_129] : memref<8x128xf32, #tpu.memory_space<vmem>>, vector<8x128xf32>
      tpu.vector_store %arg10[%c0_128, %c0_129], %403 {strides = array<i32>} : memref<8x128xf32, #tpu.memory_space<vmem>>, vector<8x128xf32>,
    } else {
    }
    return
  }
  func.func @transform_0(%arg0: i32) -> (i32, i32) {
    %c0_i32 = arith.constant 0 : i32
    %c0_i32_0 = arith.constant 0 : i32
    return %arg0, %c0_i32 : i32, i32
  }
  func.func @transform_1(%arg0: i32) -> (i32, i32) {
    %c0_i32 = arith.constant 0 : i32
    %c0_i32_0 = arith.constant 0 : i32
    %c0_i32_1 = arith.constant 0 : i32
    return %c0_i32, %c0_i32_0 : i32, i32
  }
  func.func @transform_2(%arg0: i32) -> (i32, i32) {
    %c0_i32 = arith.constant 0 : i32
    %c0_i32_0 = arith.constant 0 : i32
    %c0_i32_1 = arith.constant 0 : i32
    return %c0_i32, %c0_i32_0 : i32, i32
  }
  func.func @transform_3(%arg0: i32) -> (i32, i32) {
    %c0_i32 = arith.constant 0 : i32
    %c0_i32_0 = arith.constant 0 : i32
    %c0_i32_1 = arith.constant 0 : i32
    return %c0_i32, %c0_i32_0 : i32, i32
  }
  func.func @transform_4(%arg0: i32) -> (i32, i32) {
    %c0_i32 = arith.constant 0 : i32
    %c0_i32_0 = arith.constant 0 : i32
    %c0_i32_1 = arith.constant 0 : i32
    return %c0_i32, %c0_i32_0 : i32, i32
  }
  func.func @transform_5(%arg0: i32) -> (i32, i32) {
    %c0_i32 = arith.constant 0 : i32
    %c0_i32_0 = arith.constant 0 : i32
    %c0_i32_1 = arith.constant 0 : i32
    return %c0_i32, %c0_i32_0 : i32, i32
  }
  func.func @transform_6(%arg0: i32) -> (i32, i32) {
    %c0_i32 = arith.constant 0 : i32
    %c0_i32_0 = arith.constant 0 : i32
    %c0_i32_1 = arith.constant 0 : i32
    return %c0_i32, %c0_i32_0 : i32, i32
  }
  func.func @transform_7(%arg0: i32) -> (i32, i32) {
    %c0_i32 = arith.constant 0 : i32
    %c0_i32_0 = arith.constant 0 : i32
    %c0_i32_1 = arith.constant 0 : i32
    return %c0_i32, %c0_i32_0 : i32, i32
  }
  func.func @transform_8(%arg0: i32) -> (i32, i32) {
    %c0_i32 = arith.constant 0 : i32
    %c0_i32_0 = arith.constant 0 : i32
    %c0_i32_1 = arith.constant 0 : i32
    return %c0_i32, %c0_i32_0 : i32, i32
  }
  func.func @transform_9(%arg0: i32) -> (i32, i32) {
    %c0_i32 = arith.constant 0 : i32
    %c0_i32_0 = arith.constant 0 : i32
    %c0_i32_1 = arith.constant 0 : i32
    return %c0_i32, %c0_i32_0 : i32, i32
  }
}

</mosaic_0001>

<llo_original>
// kernel: tpu_custom_call.1
$region0: #{tpu_custom_call.1}
  #allocation0 [shape = 'u32[]', space=smem, size = 0x4, offset = 0x4, fixed_abs, tag = 'smem constant byte address 0x4 - core index']
  #allocation1 [shape = 'u32[72,128]{1,0:T(1,128)}', space=vmem, size = 0x9000, scoped, tag = 'internal scratch']
  %s0 = inlined_call_operand.hbm [shape: f32[8,128], index: 0, kind: input, shape index: {}]
  %s1 = inlined_call_operand.hbm [shape: f32[8,128], index: 1, kind: output, shape index: {}]
  %s2 = sld [smem:[#allocation0]]
  $region41: #{tpu_custom_call.1} parent=0
    _
  %s4 = ssub.s32 1, %s2
  %s5 = scalar_select 0, %s4, %s2
  $region1: #{tpu_custom_call.1} parent=0
    #allocation2 [shape = 'u8[4096]{0}', space=vmem, size = 0x1000, scoped, tag = 'input window, operand 0, single buffered']
    #allocation3 [shape = 's32[2]{0}', space=sflag, size = 0x8, scoped, tag = 'scoped memory for tpu_custom_call.1']
    #allocation4 [shape = 's32[2]{0}', space=sflag, size = 0x8, scoped, tag = 'scoped memory for tpu_custom_call.1']
    #allocation5 [shape = 'u8[4096]{0}', space=vmem, size = 0x1000, scoped, tag = 'output window, operand 0, single buffered']
    %6 = vsyncpa [#allocation3], 0
    %7 = vsyncpa [#allocation4], 0
    loop: start=0, step=1, limit=4
    $region2: #{tpu_custom_call.1} parent=1 // loop_pre_header
      _
    $region3: #{tpu_custom_call.1} parent=1 // loop_header
      %s9 = sphi 0, %s13
      %p10 = scmp.ge.s32.totalorder %s9, 4
      %s17 = sphi 0, %s17
      %s19 = sphi 0, %s17
      %s20 = sphi 0, %s19
      %s34 = sphi 0, %s20
      %s38 = sphi 0, %s38
      %s40 = sphi 0, %s38
      %s41 = sphi 0, %s40
      %s55 = sphi 0, %s41
    $region4: #{tpu_custom_call.1} parent=1 // loop_header_branch
      %12 = sbr.rel (%p10) target = $region8
    $region5: #{tpu_custom_call.1} parent=1 // loop_body
      %s14 = ssub.s32 %s9, 1
      %s15 = ssub.s32 %s9, 2
      %s16 = sadd.s32 %s9, 1
      %s18 = sadd.s32 %s17, 1
      %p21 = scmp.eq.s32.totalorder %s9, 1
      %p22 = scmp.ne.s32.totalorder %s17, %s19
      %p23 = scmp.eq.s32.totalorder %s9, 0
      %p24 = por %p22, %p23
      %p25 = scmp.ne.s32.totalorder %s17, %s19
      %p26 = scmp.eq.s32.totalorder %s14, 1
      %p27 = por %p25, %p26
      %p28 = scmp.ne.s32.totalorder %s19, %s20
      %p29 = scmp.eq.s32.totalorder %s14, 0
      %p30 = por %p28, %p29
      %p31 = scmp.ne.s32.totalorder %s19, %s20
      %p32 = scmp.eq.s32.totalorder %s15, 1
      %p33 = por %p31, %p32
      %p35 = scmp.ne.s32.totalorder %s20, %s34
      %p36 = scmp.eq.s32.totalorder %s15, 0
      %p37 = por %p35, %p36
      %s39 = sadd.s32 %s38, 1
      %p42 = scmp.eq.s32.totalorder %s9, 1
      %p43 = scmp.ne.s32.totalorder %s38, %s40
      %p44 = scmp.eq.s32.totalorder %s9, 0
      %p45 = por %p43, %p44
      %p46 = scmp.ne.s32.totalorder %s38, %s40
      %p47 = scmp.eq.s32.totalorder %s14, 1
      %p48 = por %p46, %p47
      %p49 = scmp.ne.s32.totalorder %s40, %s41
      %p50 = scmp.eq.s32.totalorder %s14, 0
      %p51 = por %p49, %p50
      %p52 = scmp.ne.s32.totalorder %s40, %s41
      %p53 = scmp.eq.s32.totalorder %s15, 1
      %p54 = por %p52, %p53
      %p56 = scmp.ne.s32.totalorder %s41, %s55
      %p57 = scmp.eq.s32.totalorder %s15, 0
      %p58 = por %p56, %p57
      %p59 = scmp.le.s32.totalorder 1, %s9
      %p60 = scmp.lt.s32.totalorder %s9, 3
      %p61 = pnand %p59, %p60
      %p62 = pneg %p61
      // Predicated region
      $region9: #{tpu_custom_call.1} parent=5 // pred_check
        _
      $region10: #{tpu_custom_call.1} parent=5 // pred_check_branch
        %64 = sbr.rel (%p61) target = $region12
      $region11: #{tpu_custom_call.1} parent=5 // pred_region
        %s65 = ssub.s32 %s9, 1
        // Predicated region
        $region13: #{tpu_custom_call.1} parent=11 // pred_check
          %p66 = pneg %p30
        $region14: #{tpu_custom_call.1} parent=11 // pred_check_branch
          %68 = sbr.rel (%p66) target = $region16
        $region15: #{tpu_custom_call.1} parent=11 // pred_region
          %70 = vsyncadd [#allocation3], 0
          %s72 = sshll.u32 %s0, 4
          %s73 = int_to_ptr.hbm [resolvable:$true] %s72
          %s74 = sshll.u32 [#allocation2], 4
          %s75 = int_to_ptr.vmem [resolvable:$true] %s74
          %77 = dma.hbm_to_vmem [thread:$0]  %s73, 128, %s75, [#allocation3]
        $region16: #{tpu_custom_call.1} parent=11 // pred_fallthru
          _
      $region12: #{tpu_custom_call.1} parent=5 // pred_fallthru
        _
      %p78 = scmp.lt.s32.totalorder %s9, 2
      // Predicated region
      $region17: #{tpu_custom_call.1} parent=5 // pred_check
        %p79 = pneg %p78
      $region18: #{tpu_custom_call.1} parent=5 // pred_check_branch
        %81 = sbr.rel (%p79) target = $region20
      $region19: #{tpu_custom_call.1} parent=5 // pred_region
        _
      $region20: #{tpu_custom_call.1} parent=5 // pred_fallthru
        _
      %p82 = scmp.le.s32.totalorder 1, %s9
      %p83 = scmp.lt.s32.totalorder %s9, 3
      %p84 = pnand %p82, %p83
      %p85 = pneg %p84
      // Predicated region
      $region21: #{tpu_custom_call.1} parent=5 // pred_check
        _
      $region22: #{tpu_custom_call.1} parent=5 // pred_check_branch
        %87 = sbr.rel (%p84) target = $region24
      $region23: #{tpu_custom_call.1} parent=5 // pred_region
        %s88 = ssub.s32 %s9, 1
        // Predicated region
        $region25: #{tpu_custom_call.1} parent=23 // pred_check
          %p89 = pneg %p30
        $region26: #{tpu_custom_call.1} parent=23 // pred_check_branch
          %91 = sbr.rel (%p89) target = $region28
        $region27: #{tpu_custom_call.1} parent=23 // pred_region
          %93 = dma.done [#allocation3], 128
        $region28: #{tpu_custom_call.1} parent=23 // pred_fallthru
          _
        %p94 = pneg %p30
        %p95 = pneg %p27
        %p96 = pneg %p51
        %p97 = pneg %p48
        %v98 = vld [vmem:[#allocation2] sm:$0xff]
        %v99 = vadd.f32 %v98, 1.0
        %100 = vst [vmem:[#allocation5] sm:$0xff] %v99
        // Predicated region
        $region29: #{tpu_custom_call.1} parent=23 // pred_check
          %p101 = pneg %p48
        $region30: #{tpu_custom_call.1} parent=23 // pred_check_branch
          %103 = sbr.rel (%p101) target = $region32
        $region31: #{tpu_custom_call.1} parent=23 // pred_region
          %105 = vsyncadd [#allocation4], 0
          %s107 = sshll.u32 [#allocation5], 4
          %s108 = int_to_ptr.vmem [resolvable:$true] %s107
          %s109 = sshll.u32 %s1, 4
          %s110 = int_to_ptr.hbm [resolvable:$true] %s109
          %112 = dma.vmem_to_hbm [thread:$0]  %s108, 128, %s110, [#allocation4]
        $region32: #{tpu_custom_call.1} parent=23 // pred_fallthru
          _
        // Predicated region
        $region33: #{tpu_custom_call.1} parent=23 // pred_check
          %p113 = pneg %p48
        $region34: #{tpu_custom_call.1} parent=23 // pred_check_branch
          %115 = sbr.rel (%p113) target = $region36
        $region35: #{tpu_custom_call.1} parent=23 // pred_region
          %117 = dma.done [#allocation4], 128
        $region36: #{tpu_custom_call.1} parent=23 // pred_fallthru
          _
      $region24: #{tpu_custom_call.1} parent=5 // pred_fallthru
        _
      %p118 = scmp.le.s32.totalorder 2, %s9
      // Predicated region
      $region37: #{tpu_custom_call.1} parent=5 // pred_check
        %p119 = pneg %p118
      $region38: #{tpu_custom_call.1} parent=5 // pred_check_branch
        %121 = sbr.rel (%p119) target = $region40
      $region39: #{tpu_custom_call.1} parent=5 // pred_region
        %s122 = ssub.s32 %s9, 2
      $region40: #{tpu_custom_call.1} parent=5 // pred_fallthru
        _
    $region6: #{tpu_custom_call.1} parent=1 // loop_footer
      %s13 = sadd.s32 1, %s9
    $region7: #{tpu_custom_call.1} parent=1 // loop_footer_branch
      %8 = sbr.rel target = $region3
    $region8: #{tpu_custom_call.1} parent=1 // loop_exit
      _
    %123 = vsyncpa [#allocation3], 1
    %s124 = scalar_lea.sflag [#allocation3], 1
    %125 = vsyncpa %s124, 1
    %126 = vsyncpa [#allocation4], 1
    %s127 = scalar_lea.sflag [#allocation4], 1
    %128 = vsyncpa %s127, 1

// kernel: lstm_forward.1
$region0: #{lstm_forward.1}
  #allocation0 [shape = 'u32[]', space=smem, size = 0x4, offset = 0x4, fixed_abs, tag = 'smem constant byte address 0x4 - core index']
  #allocation1 [shape = 'u32[72,128]{1,0:T(1,128)}', space=vmem, size = 0x9000, scoped, tag = 'internal scratch']
  #allocation2 [shape = 'f32[8,128]{1,0:T(8,128)}', space=vmem, size = 0x1000, scoped, tag = 'scratch operand']
  #allocation3 [shape = 'f32[8,128]{1,0:T(8,128)}', space=vmem, size = 0x1000, scoped, tag = 'scratch operand']
  #allocation4 [shape = 'f32[8,128]{1,0:T(8,128)}', space=vmem, size = 0x1000, scoped, tag = 'scratch operand']
  #allocation5 [shape = 'f32[8,128]{1,0:T(8,128)}', space=vmem, size = 0x1000, scoped, tag = 'scratch operand']
  #allocation6 [shape = 'f32[64,128]{1,0:T(8,128)}', space=vmem, size = 0x8000, scoped, tag = 'scratch operand']
  #allocation7 [shape = 'f32[64,512]{1,0:T(8,128)}', space=vmem, size = 0x20000, scoped, tag = 'scratch operand']
  %s0 = inlined_call_operand.vmem [shape: f32[64,4], index: 0, kind: input, shape index: {}]
  %s1 = inlined_call_operand.vmem [shape: f32[4,512], index: 1, kind: input, shape index: {}]
  %s2 = inlined_call_operand.hbm [shape: f32[128,512], index: 2, kind: input, shape index: {}]
  %s3 = inlined_call_operand.vmem [shape: f32[1,512], index: 3, kind: input, shape index: {}]
  %s4 = inlined_call_operand.hbm [shape: f32[128,512], index: 4, kind: input, shape index: {}]
  %s5 = inlined_call_operand.hbm [shape: f32[128,512], index: 5, kind: input, shape index: {}]
  %s6 = inlined_call_operand.vmem [shape: f32[1,512], index: 6, kind: input, shape index: {}]
  %s7 = inlined_call_operand.hbm [shape: f32[128,128], index: 7, kind: input, shape index: {}]
  %s8 = inlined_call_operand.vmem [shape: f32[1,128], index: 8, kind: input, shape index: {}]
  %s9 = inlined_call_operand.vmem [shape: f32[8,128], index: 9, kind: output, shape index: {}]
  %s10 = sld [smem:[#allocation0]]
  $region70: #{lstm_forward.1} parent=0
    _
  %s12 = ssub.s32 1, %s10
  %s13 = scalar_select 0, %s12, %s10
  $region1: #{lstm_forward.1} parent=0
    #allocation8 [shape = 'u8[262144]{0}', space=vmem, size = 0x40000, scoped, tag = 'input window, operand 2, single buffered']
    #allocation9 [shape = 's32[1]{0}', space=sflag, size = 0x4, scoped, tag = 'scoped memory for lstm_forward.1']
    #allocation10 [shape = 'u8[262144]{0}', space=vmem, size = 0x40000, scoped, tag = 'input window, operand 4, single buffered']
    #allocation11 [shape = 's32[1]{0}', space=sflag, size = 0x4, scoped, tag = 'scoped memory for lstm_forward.1']
    #allocation12 [shape = 'u8[262144]{0}', space=vmem, size = 0x40000, scoped, tag = 'input window, operand 5, single buffered']
    #allocation13 [shape = 'u8[65536]{0}', space=vmem, size = 0x10000, scoped, tag = 'input window, operand 7, single buffered']
    #allocation14 [shape = 's32[1]{0}', space=sflag, size = 0x4, scoped, tag = 'scoped memory for lstm_forward.1']
    %14 = vsyncpa [#allocation9], 0
    %15 = vsyncpa [#allocation11], 0
    %16 = vsyncpa [#allocation14], 0
    // Predicated region
    $region2: #{lstm_forward.1} parent=1 // pred_check
      _
    $region3: #{lstm_forward.1} parent=1 // pred_check_branch
      %18 = sbr.rel (0) target = $region5
    $region4: #{lstm_forward.1} parent=1 // pred_region
      _
    $region5: #{lstm_forward.1} parent=1 // pred_fallthru
      _
    // Predicated region
    $region6: #{lstm_forward.1} parent=1 // pred_check
      _
    $region7: #{lstm_forward.1} parent=1 // pred_check_branch
      %20 = sbr.rel (0) target = $region9
    $region8: #{lstm_forward.1} parent=1 // pred_region
      _
    $region9: #{lstm_forward.1} parent=1 // pred_fallthru
      _
    // Predicated region
    $region10: #{lstm_forward.1} parent=1 // pred_check
      _
    $region11: #{lstm_forward.1} parent=1 // pred_check_branch
      %22 = sbr.rel (0) target = $region13
    $region12: #{lstm_forward.1} parent=1 // pred_region
      %24 = vsyncadd [#allocation9], 0
      %s25 = sshll.u32 %s2, 4
      %s26 = int_to_ptr.hbm [resolvable:$true] %s25
      %s27 = sshll.u32 [#allocation8], 4
      %s28 = int_to_ptr.vmem [resolvable:$true] %s27
      %33 = dma.hbm_to_vmem [thread:$0]  %s26, 8192, %s28, [#allocation9], 512, 512, 32
    $region13: #{lstm_forward.1} parent=1 // pred_fallthru
      _
    // Predicated region
    $region14: #{lstm_forward.1} parent=1 // pred_check
      _
    $region15: #{lstm_forward.1} parent=1 // pred_check_branch
      %35 = sbr.rel (0) target = $region17
    $region16: #{lstm_forward.1} parent=1 // pred_region
      _
    $region17: #{lstm_forward.1} parent=1 // pred_fallthru
      _
    // Predicated region
    $region18: #{lstm_forward.1} parent=1 // pred_check
      _
    $region19: #{lstm_forward.1} parent=1 // pred_check_branch
      %37 = sbr.rel (0) target = $region21
    $region20: #{lstm_forward.1} parent=1 // pred_region
      %39 = vsyncadd [#allocation11], 0
      %s40 = sshll.u32 %s4, 4
      %s41 = int_to_ptr.hbm [resolvable:$true] %s40
      %s42 = sshll.u32 [#allocation10], 4
      %s43 = int_to_ptr.vmem [resolvable:$true] %s42
      %48 = dma.hbm_to_vmem [thread:$0]  %s41, 8192, %s43, [#allocation11], 512, 512, 32
    $region21: #{lstm_forward.1} parent=1 // pred_fallthru
      _
    // Predicated region
    $region22: #{lstm_forward.1} parent=1 // pred_check
      _
    $region23: #{lstm_forward.1} parent=1 // pred_check_branch
      %50 = sbr.rel (0) target = $region25
    $region24: #{lstm_forward.1} parent=1 // pred_region
      %52 = vsyncadd [#allocation11], 0
      %s53 = sshll.u32 %s5, 4
      %s54 = int_to_ptr.hbm [resolvable:$true] %s53
      %s55 = sshll.u32 [#allocation12], 4
      %s56 = int_to_ptr.vmem [resolvable:$true] %s55
      %61 = dma.hbm_to_vmem [thread:$0]  %s54, 8192, %s56, [#allocation11], 512, 512, 32
    $region25: #{lstm_forward.1} parent=1 // pred_fallthru
      _
    // Predicated region
    $region26: #{lstm_forward.1} parent=1 // pred_check
      _
    $region27: #{lstm_forward.1} parent=1 // pred_check_branch
      %63 = sbr.rel (0) target = $region29
    $region28: #{lstm_forward.1} parent=1 // pred_region
      _
    $region29: #{lstm_forward.1} parent=1 // pred_fallthru
      _
    // Predicated region
    $region30: #{lstm_forward.1} parent=1 // pred_check
      _
    $region31: #{lstm_forward.1} parent=1 // pred_check_branch
      %65 = sbr.rel (0) target = $region33
    $region32: #{lstm_forward.1} parent=1 // pred_region
      %67 = vsyncadd [#allocation14], 0
      %s68 = sshll.u32 %s7, 4
      %s69 = int_to_ptr.hbm [resolvable:$true] %s68
      %s70 = sshll.u32 [#allocation13], 4
      %s71 = int_to_ptr.vmem [resolvable:$true] %s70
      %76 = dma.hbm_to_vmem [thread:$0]  %s69, 2048, %s71, [#allocation14], 128, 128, 8
    $region33: #{lstm_forward.1} parent=1 // pred_fallthru
      _
    // Predicated region
    $region34: #{lstm_forward.1} parent=1 // pred_check
      _
    $region35: #{lstm_forward.1} parent=1 // pred_check_branch
      %78 = sbr.rel (0) target = $region37
    $region36: #{lstm_forward.1} parent=1 // pred_region
      _
    $region37: #{lstm_forward.1} parent=1 // pred_fallthru
      _
    // Predicated region
    $region38: #{lstm_forward.1} parent=1 // pred_check
      _
    $region39: #{lstm_forward.1} parent=1 // pred_check_branch
      %80 = sbr.rel (0) target = $region41
    $region40: #{lstm_forward.1} parent=1 // pred_region
      %82 = dma.done [#allocation9], 8192
    $region41: #{lstm_forward.1} parent=1 // pred_fallthru
      _
    // Predicated region
    $region42: #{lstm_forward.1} parent=1 // pred_check
      _
    $region43: #{lstm_forward.1} parent=1 // pred_check_branch
      %84 = sbr.rel (0) target = $region45
    $region44: #{lstm_forward.1} parent=1 // pred_region
      %86 = dma.done [#allocation11], 8192
    $region45: #{lstm_forward.1} parent=1 // pred_fallthru
      _
    // Predicated region
    $region46: #{lstm_forward.1} parent=1 // pred_check
      _
    $region47: #{lstm_forward.1} parent=1 // pred_check_branch
      %88 = sbr.rel (0) target = $region49
    $region48: #{lstm_forward.1} parent=1 // pred_region
      %90 = dma.done [#allocation11], 8192
    $region49: #{lstm_forward.1} parent=1 // pred_fallthru
      _
    // Predicated region
    $region50: #{lstm_forward.1} parent=1 // pred_check
      _
    $region51: #{lstm_forward.1} parent=1 // pred_check_branch
      %92 = sbr.rel (0) target = $region53
    $region52: #{lstm_forward.1} parent=1 // pred_region
      %94 = dma.done [#allocation14], 2048
    $region53: #{lstm_forward.1} parent=1 // pred_fallthru
      _
    %p95 = scmp.eq.s32.totalorder 0, 0
    // Predicated region
    $region54: #{lstm_forward.1} parent=1 // pred_check
      %p96 = pneg %p95
    $region55: #{lstm_forward.1} parent=1 // pred_check_branch
      %98 = sbr.rel (%p96) target = $region57
    $region56: #{lstm_forward.1} parent=1 // pred_region
      %99 = vst [vmem:[#allocation2] sm:$0xff] 0.0
      %100 = vst [vmem:[#allocation3] sm:$0xff] 0.0
      %101 = vst [vmem:[#allocation4] sm:$0xff] 0.0
      %102 = vst [vmem:[#allocation5] sm:$0xff] 0.0
    $region57: #{lstm_forward.1} parent=1 // pred_fallthru
      _
    %v103 = vld [vmem:[%s0] sm:$0xff]
    %v104 = vld [vmem:[%s0 + $0x8] sm:$0xff]
    %v105 = vld [vmem:[%s0 + $0x10] sm:$0xff]
    %v106 = vld [vmem:[%s0 + $0x18] sm:$0xff]
    %v107 = vld [vmem:[%s0 + $0x20] sm:$0xff]
    %v108 = vld [vmem:[%s0 + $0x28] sm:$0xff]
    %v109 = vld [vmem:[%s0 + $0x30] sm:$0xff]
    %v110 = vld [vmem:[%s0 + $0x38] sm:$0xff]
    %v111 = vld [vmem:[%s1] sm:$0xff]
    %v112 = vld [vmem:[%s1 + $0x8] sm:$0xff]
    %v113 = vld [vmem:[%s3] sm:$0xf]
    %v115 = vperm.slane %v113, 0
    %v116 = vperm.slane %v113, 1
    %v117 = vperm.slane %v113, 2
    %v118 = vperm.slane %v113, 3
    %125 = vst [vmem:[#allocation1] ss:$2 sm:$0xff] %v111
    %s126 = scalar_lea.vmem [#allocation1], 16
    %127 = vst [vmem:[%s126] ss:$2 sm:$0xff] %v112
    %v128 = vld.sshfl [vmem:[#allocation1] sm:$0xff pattern:$0x75316420]
    %v129 = vld.sshfl [vmem:[#allocation1 + $0x8] sm:$0xff pattern:$0x75316420]
    %v130 = vld.sshfl [vmem:[#allocation1 + $0x10] sm:$0xff pattern:$0x75316420]
    %v131 = vld.sshfl [vmem:[#allocation1 + $0x18] sm:$0xff pattern:$0x75316420]
    %vm132 = vcmask 31744
    %v134 = vsel %vm132, %v103, 0
    %v137 = vsel %vm132, %v104, 0
    %v140 = vsel %vm132, %v105, 0
    %v143 = vsel %vm132, %v106, 0
    %v146 = vsel %vm132, %v107, 0
    %v149 = vsel %vm132, %v108, 0
    %v152 = vsel %vm132, %v109, 0
    %v155 = vsel %vm132, %v110, 0
    %vm157 = vcmask 1043456
    %v158 = vsel %vm157, %v128, 0
    %v160 = vsel %vm157, %v129, 0
    %v162 = vsel %vm157, %v130, 0
    %v164 = vsel %vm157, %v131, 0
    %166 = vmatpush.msra.mxu0 0.0
    %167 = vmatpush.msra.mxu0 0.0
    %168 = vmatpush.msra.mxu0 0.0
    %169 = vmatpush.msra.mxu0 0.0
    %170 = vmatpush.msra.mxu0 0.0
    %171 = vmatpush.msra.mxu0 0.0
    %172 = vmatpush.msra.mxu0 0.0
    %173 = vmatpush.msra.mxu0 0.0
    %174 = vmatpush.msra.mxu0 0.0
    %175 = vmatpush.msra.mxu0 0.0
    %176 = vmatpush.msra.mxu0 0.0
    %177 = vmatpush.msra.mxu0 0.0
    %178 = vmatpush.msra.mxu0 0.0
    %179 = vmatpush.msra.mxu0 0.0
    %180 = vmatpush.msra.mxu0 0.0
    %181 = vmatpush.msra.mxu0 %v158
    %182 = vmatmul.f32.gmra.mxu0 %v134
    %v183 = vpop.f32.mrf.mxu0
    %v184 = vadd.f32 %v115, %v183
    %185 = vmatmul.f32.gmra.mxu0 %v137
    %v186 = vpop.f32.mrf.mxu0
    %v187 = vadd.f32 %v115, %v186
    %188 = vmatmul.f32.gmra.mxu0 %v140
    %v189 = vpop.f32.mrf.mxu0
    %v190 = vadd.f32 %v115, %v189
    %191 = vmatmul.f32.gmra.mxu0 %v143
    %v192 = vpop.f32.mrf.mxu0
    %v193 = vadd.f32 %v115, %v192
    %194 = vmatmul.f32.gmra.mxu0 %v146
    %v195 = vpop.f32.mrf.mxu0
    %v196 = vadd.f32 %v115, %v195
    %197 = vmatmul.f32.gmra.mxu0 %v149
    %v198 = vpop.f32.mrf.mxu0
    %v199 = vadd.f32 %v115, %v198
    %200 = vmatmul.f32.gmra.mxu0 %v152
    %v201 = vpop.f32.mrf.mxu0
    %v202 = vadd.f32 %v115, %v201
    %203 = vmatmul.f32.gmra.mxu0 %v155
    %v204 = vpop.f32.mrf.mxu0
    %v205 = vadd.f32 %v115, %v204
    %206 = vdwg.mxu0
    %207 = vmatpush.msra.mxu0 0.0
    %208 = vmatpush.msra.mxu0 0.0
    %209 = vmatpush.msra.mxu0 0.0
    %210 = vmatpush.msra.mxu0 0.0
    %211 = vmatpush.msra.mxu0 0.0
    %212 = vmatpush.msra.mxu0 0.0
    %213 = vmatpush.msra.mxu0 0.0
    %214 = vmatpush.msra.mxu0 0.0
    %215 = vmatpush.msra.mxu0 0.0
    %216 = vmatpush.msra.mxu0 0.0
    %217 = vmatpush.msra.mxu0 0.0
    %218 = vmatpush.msra.mxu0 0.0
    %219 = vmatpush.msra.mxu0 0.0
    %220 = vmatpush.msra.mxu0 0.0
    %221 = vmatpush.msra.mxu0 0.0
    %222 = vmatpush.msra.mxu0 %v160
    %223 = vmatmul.f32.gmra.mxu0 %v134
    %v224 = vpop.f32.mrf.mxu0
    %v225 = vadd.f32 %v116, %v224
    %226 = vmatmul.f32.gmra.mxu0 %v137
    %v227 = vpop.f32.mrf.mxu0
    %v228 = vadd.f32 %v116, %v227
    %229 = vmatmul.f32.gmra.mxu0 %v140
    %v230 = vpop.f32.mrf.mxu0
    %v231 = vadd.f32 %v116, %v230
    %232 = vmatmul.f32.gmra.mxu0 %v143
    %v233 = vpop.f32.mrf.mxu0
    %v234 = vadd.f32 %v116, %v233
    %235 = vmatmul.f32.gmra.mxu0 %v146
    %v236 = vpop.f32.mrf.mxu0
    %v237 = vadd.f32 %v116, %v236
    %238 = vmatmul.f32.gmra.mxu0 %v149
    %v239 = vpop.f32.mrf.mxu0
    %v240 = vadd.f32 %v116, %v239
    %241 = vmatmul.f32.gmra.mxu0 %v152
    %v242 = vpop.f32.mrf.mxu0
    %v243 = vadd.f32 %v116, %v242
    %244 = vmatmul.f32.gmra.mxu0 %v155
    %v245 = vpop.f32.mrf.mxu0
    %v246 = vadd.f32 %v116, %v245
    %247 = vdwg.mxu0
    %248 = vmatpush.msra.mxu0 0.0
    %249 = vmatpush.msra.mxu0 0.0
    %250 = vmatpush.msra.mxu0 0.0
    %251 = vmatpush.msra.mxu0 0.0
    %252 = vmatpush.msra.mxu0 0.0
    %253 = vmatpush.msra.mxu0 0.0
    %254 = vmatpush.msra.mxu0 0.0
    %255 = vmatpush.msra.mxu0 0.0
    %256 = vmatpush.msra.mxu0 0.0
    %257 = vmatpush.msra.mxu0 0.0
    %258 = vmatpush.msra.mxu0 0.0
    %259 = vmatpush.msra.mxu0 0.0
    %260 = vmatpush.msra.mxu0 0.0
    %261 = vmatpush.msra.mxu0 0.0
    %262 = vmatpush.msra.mxu0 0.0
    %263 = vmatpush.msra.mxu0 %v162
    %264 = vmatmul.f32.gmra.mxu0 %v134
    %v265 = vpop.f32.mrf.mxu0
    %v266 = vadd.f32 %v117, %v265
    %267 = vmatmul.f32.gmra.mxu0 %v137
    %v268 = vpop.f32.mrf.mxu0
    %v269 = vadd.f32 %v117, %v268
    %270 = vmatmul.f32.gmra.mxu0 %v140
    %v271 = vpop.f32.mrf.mxu0
    %v272 = vadd.f32 %v117, %v271
    %273 = vmatmul.f32.gmra.mxu0 %v143
    %v274 = vpop.f32.mrf.mxu0
    %v275 = vadd.f32 %v117, %v274
    %276 = vmatmul.f32.gmra.mxu0 %v146
    %v277 = vpop.f32.mrf.mxu0
    %v278 = vadd.f32 %v117, %v277
    %279 = vmatmul.f32.gmra.mxu0 %v149
    %v280 = vpop.f32.mrf.mxu0
    %v281 = vadd.f32 %v117, %v280
    %282 = vmatmul.f32.gmra.mxu0 %v152
    %v283 = vpop.f32.mrf.mxu0
    %v284 = vadd.f32 %v117, %v283
    %285 = vmatmul.f32.gmra.mxu0 %v155
    %v286 = vpop.f32.mrf.mxu0
    %v287 = vadd.f32 %v117, %v286
    %288 = vdwg.mxu0
    %289 = vmatpush.msra.mxu0 0.0
    %290 = vmatpush.msra.mxu0 0.0
    %291 = vmatpush.msra.mxu0 0.0
    %292 = vmatpush.msra.mxu0 0.0
    %293 = vmatpush.msra.mxu0 0.0
    %294 = vmatpush.msra.mxu0 0.0
    %295 = vmatpush.msra.mxu0 0.0
    %296 = vmatpush.msra.mxu0 0.0
    %297 = vmatpush.msra.mxu0 0.0
    %298 = vmatpush.msra.mxu0 0.0
    %299 = vmatpush.msra.mxu0 0.0
    %300 = vmatpush.msra.mxu0 0.0
    %301 = vmatpush.msra.mxu0 0.0
    %302 = vmatpush.msra.mxu0 0.0
    %303 = vmatpush.msra.mxu0 0.0
    %304 = vmatpush.msra.mxu0 %v164
    %305 = vmatmul.f32.gmra.mxu0 %v134
    %v306 = vpop.f32.mrf.mxu0
    %v307 = vadd.f32 %v118, %v306
    %308 = vmatmul.f32.gmra.mxu0 %v137
    %v309 = vpop.f32.mrf.mxu0
    %v310 = vadd.f32 %v118, %v309
    %311 = vmatmul.f32.gmra.mxu0 %v140
    %v312 = vpop.f32.mrf.mxu0
    %v313 = vadd.f32 %v118, %v312
    %314 = vmatmul.f32.gmra.mxu0 %v143
    %v315 = vpop.f32.mrf.mxu0
    %v316 = vadd.f32 %v118, %v315
    %317 = vmatmul.f32.gmra.mxu0 %v146
    %v318 = vpop.f32.mrf.mxu0
    %v319 = vadd.f32 %v118, %v318
    %320 = vmatmul.f32.gmra.mxu0 %v149
    %v321 = vpop.f32.mrf.mxu0
    %v322 = vadd.f32 %v118, %v321
    %323 = vmatmul.f32.gmra.mxu0 %v152
    %v324 = vpop.f32.mrf.mxu0
    %v325 = vadd.f32 %v118, %v324
    %326 = vmatmul.f32.gmra.mxu0 %v155
    %v327 = vpop.f32.mrf.mxu0
    %v328 = vadd.f32 %v118, %v327
    %329 = vdwg.mxu0
    %330 = vst [vmem:[#allocation7] sm:$0xff] %v184
    %331 = vst [vmem:[#allocation7 + $0x8] sm:$0xff] %v225
    %332 = vst [vmem:[#allocation7 + $0x10] sm:$0xff] %v266
    %333 = vst [vmem:[#allocation7 + $0x18] sm:$0xff] %v307
    %334 = vst [vmem:[#allocation7 + $0x20] sm:$0xff] %v187
    %335 = vst [vmem:[#allocation7 + $0x28] sm:$0xff] %v228
    %336 = vst [vmem:[#allocation7 + $0x30] sm:$0xff] %v269
    %337 = vst [vmem:[#allocation7 + $0x38] sm:$0xff] %v310
    %338 = vst [vmem:[#allocation7 + $0x40] sm:$0xff] %v190
    %339 = vst [vmem:[#allocation7 + $0x48] sm:$0xff] %v231
    %340 = vst [vmem:[#allocation7 + $0x50] sm:$0xff] %v272
    %341 = vst [vmem:[#allocation7 + $0x58] sm:$0xff] %v313
    %342 = vst [vmem:[#allocation7 + $0x60] sm:$0xff] %v193
    %343 = vst [vmem:[#allocation7 + $0x68] sm:$0xff] %v234
    %344 = vst [vmem:[#allocation7 + $0x70] sm:$0xff] %v275
    %345 = vst [vmem:[#allocation7 + $0x78] sm:$0xff] %v316
    %346 = vst [vmem:[#allocation7 + $0x80] sm:$0xff] %v196
    %347 = vst [vmem:[#allocation7 + $0x88] sm:$0xff] %v237
    %348 = vst [vmem:[#allocation7 + $0x90] sm:$0xff] %v278
    %349 = vst [vmem:[#allocation7 + $0x98] sm:$0xff] %v319
    %350 = vst [vmem:[#allocation7 + $0xa0] sm:$0xff] %v199
    %351 = vst [vmem:[#allocation7 + $0xa8] sm:$0xff] %v240
    %352 = vst [vmem:[#allocation7 + $0xb0] sm:$0xff] %v281
    %353 = vst [vmem:[#allocation7 + $0xb8] sm:$0xff] %v322
    %354 = vst [vmem:[#allocation7 + $0xc0] sm:$0xff] %v202
    %355 = vst [vmem:[#allocation7 + $0xc8] sm:$0xff] %v243
    %356 = vst [vmem:[#allocation7 + $0xd0] sm:$0xff] %v284
    %357 = vst [vmem:[#allocation7 + $0xd8] sm:$0xff] %v325
    %358 = vst [vmem:[#allocation7 + $0xe0] sm:$0xff] %v205
    %359 = vst [vmem:[#allocation7 + $0xe8] sm:$0xff] %v246
    %360 = vst [vmem:[#allocation7 + $0xf0] sm:$0xff] %v287
    %361 = vst [vmem:[#allocation7 + $0xf8] sm:$0xff] %v328
    %v362 = vld [vmem:[#allocation8] sm:$0xff]
    %v363 = vld [vmem:[#allocation8 + $0x8] sm:$0xff]
    %v364 = vld [vmem:[#allocation8 + $0x10] sm:$0xff]
    %v365 = vld [vmem:[#allocation8 + $0x18] sm:$0xff]
    %v366 = vld [vmem:[#allocation8 + $0x20] sm:$0xff]
    %v367 = vld [vmem:[#allocation8 + $0x28] sm:$0xff]
    %v368 = vld [vmem:[#allocation8 + $0x30] sm:$0xff]
    %v369 = vld [vmem:[#allocation8 + $0x38] sm:$0xff]
    %v370 = vld [vmem:[#allocation8 + $0x40] sm:$0xff]
    %v371 = vld [vmem:[#allocation8 + $0x48] sm:$0xff]
    %v372 = vld [vmem:[#allocation8 + $0x50] sm:$0xff]
    %v373 = vld [vmem:[#allocation8 + $0x58] sm:$0xff]
    %v374 = vld [vmem:[#allocation8 + $0x60] sm:$0xff]
    %v375 = vld [vmem:[#allocation8 + $0x68] sm:$0xff]
    %v376 = vld [vmem:[#allocation8 + $0x70] sm:$0xff]
    %v377 = vld [vmem:[#allocation8 + $0x78] sm:$0xff]
    %v378 = vld [vmem:[#allocation8 + $0x80] sm:$0xff]
    %v379 = vld [vmem:[#allocation8 + $0x88] sm:$0xff]
    %v380 = vld [vmem:[#allocation8 + $0x90] sm:$0xff]
    %v381 = vld [vmem:[#allocation8 + $0x98] sm:$0xff]
    %v382 = vld [vmem:[#allocation8 + $0xa0] sm:$0xff]
    %v383 = vld [vmem:[#allocation8 + $0xa8] sm:$0xff]
    %v384 = vld [vmem:[#allocation8 + $0xb0] sm:$0xff]
    %v385 = vld [vmem:[#allocation8 + $0xb8] sm:$0xff]
    %v386 = vld [vmem:[#allocation8 + $0xc0] sm:$0xff]
    %v387 = vld [vmem:[#allocation8 + $0xc8] sm:$0xff]
    %v388 = vld [vmem:[#allocation8 + $0xd0] sm:$0xff]
    %v389 = vld [vmem:[#allocation8 + $0xd8] sm:$0xff]
    %v390 = vld [vmem:[#allocation8 + $0xe0] sm:$0xff]
    %v391 = vld [vmem:[#allocation8 + $0xe8] sm:$0xff]
    %v392 = vld [vmem:[#allocation8 + $0xf0] sm:$0xff]
    %v393 = vld [vmem:[#allocation8 + $0xf8] sm:$0xff]
    %v394 = vld [vmem:[#allocation8 + $0x100] sm:$0xff]
    %v395 = vld [vmem:[#allocation8 + $0x108] sm:$0xff]
    %v396 = vld [vmem:[#allocation8 + $0x110] sm:$0xff]
    %v397 = vld [vmem:[#allocation8 + $0x118] sm:$0xff]
    %v398 = vld [vmem:[#allocation8 + $0x120] sm:$0xff]
    %v399 = vld [vmem:[#allocation8 + $0x128] sm:$0xff]
    %v400 = vld [vmem:[#allocation8 + $0x130] sm:$0xff]
    %v401 = vld [vmem:[#allocation8 + $0x138] sm:$0xff]
    %v402 = vld [vmem:[#allocation8 + $0x140] sm:$0xff]
    %v403 = vld [vmem:[#allocation8 + $0x148] sm:$0xff]
    %v404 = vld [vmem:[#allocation8 + $0x150] sm:$0xff]
    %v405 = vld [vmem:[#allocation8 + $0x158] sm:$0xff]
    %v406 = vld [vmem:[#allocation8 + $0x160] sm:$0xff]
    %v407 = vld [vmem:[#allocation8 + $0x168] sm:$0xff]
    %v408 = vld [vmem:[#allocation8 + $0x170] sm:$0xff]
    %v409 = vld [vmem:[#allocation8 + $0x178] sm:$0xff]
    %v410 = vld [vmem:[#allocation8 + $0x180] sm:$0xff]
    %v411 = vld [vmem:[#allocation8 + $0x188] sm:$0xff]
    %v412 = vld [vmem:[#allocation8 + $0x190] sm:$0xff]
    %v413 = vld [vmem:[#allocation8 + $0x198] sm:$0xff]
    %v414 = vld [vmem:[#allocation8 + $0x1a0] sm:$0xff]
    %v415 = vld [vmem:[#allocation8 + $0x1a8] sm:$0xff]
    %v416 = vld [vmem:[#allocation8 + $0x1b0] sm:$0xff]
    %v417 = vld [vmem:[#allocation8 + $0x1b8] sm:$0xff]
    %v418 = vld [vmem:[#allocation8 + $0x1c0] sm:$0xff]
    %v419 = vld [vmem:[#allocation8 + $0x1c8] sm:$0xff]
    %v420 = vld [vmem:[#allocation8 + $0x1d0] sm:$0xff]
    %v421 = vld [vmem:[#allocation8 + $0x1d8] sm:$0xff]
    %v422 = vld [vmem:[#allocation8 + $0x1e0] sm:$0xff]
    %v423 = vld [vmem:[#allocation8 + $0x1e8] sm:$0xff]
    %v424 = vld [vmem:[#allocation8 + $0x1f0] sm:$0xff]
    %v425 = vld [vmem:[#allocation8 + $0x1f8] sm:$0xff]
    %v426 = vld [vmem:[#allocation2] sm:$0xff]
    %v427 = vld [vmem:[#allocation3] sm:$0xff]
    %s428 = smul.u32 0, 4
    %s429 = smul.addr %s428, 8
    %s430 = scalar_lea.vmem [#allocation7], %s429
    %v431 = vld [vmem:[%s430] sm:$0xff]
    %v432 = vld [vmem:[%s430 + $0x8] sm:$0xff]
    %v433 = vld [vmem:[%s430 + $0x10] sm:$0xff]
    %v434 = vld [vmem:[%s430 + $0x18] sm:$0xff]
    %435 = vmatpush.msra.mxu0 %v422
    %436 = vmatpush.msra.mxu0 %v418
    %437 = vmatpush.msra.mxu0 %v414
    %438 = vmatpush.msra.mxu0 %v410
    %439 = vmatpush.msra.mxu0 %v406
    %440 = vmatpush.msra.mxu0 %v402
    %441 = vmatpush.msra.mxu0 %v398
    %442 = vmatpush.msra.mxu0 %v394
    %443 = vmatpush.msra.mxu0 %v390
    %444 = vmatpush.msra.mxu0 %v386
    %445 = vmatpush.msra.mxu0 %v382
    %446 = vmatpush.msra.mxu0 %v378
    %447 = vmatpush.msra.mxu0 %v374
    %448 = vmatpush.msra.mxu0 %v370
    %449 = vmatpush.msra.mxu0 %v366
    %450 = vmatpush.msra.mxu0 %v362
    %451 = vmatmul.f32.gmra.mxu0 %v426
    %v452 = vpop.f32.mrf.mxu0
    %v453 = vadd.f32 0.0, %v452
    %454 = vdwg.mxu0
    %455 = vmatpush.msra.mxu0 %v423
    %456 = vmatpush.msra.mxu0 %v419
    %457 = vmatpush.msra.mxu0 %v415
    %458 = vmatpush.msra.mxu0 %v411
    %459 = vmatpush.msra.mxu0 %v407
    %460 = vmatpush.msra.mxu0 %v403
    %461 = vmatpush.msra.mxu0 %v399
    %462 = vmatpush.msra.mxu0 %v395
    %463 = vmatpush.msra.mxu0 %v391
    %464 = vmatpush.msra.mxu0 %v387
    %465 = vmatpush.msra.mxu0 %v383
    %466 = vmatpush.msra.mxu0 %v379
    %467 = vmatpush.msra.mxu0 %v375
    %468 = vmatpush.msra.mxu0 %v371
    %469 = vmatpush.msra.mxu0 %v367
    %470 = vmatpush.msra.mxu0 %v363
    %471 = vmatmul.f32.gmra.mxu0 %v426
    %v472 = vpop.f32.mrf.mxu0
    %v473 = vadd.f32 0.0, %v472
    %474 = vdwg.mxu0
    %475 = vmatpush.msra.mxu0 %v424
    %476 = vmatpush.msra.mxu0 %v420
    %477 = vmatpush.msra.mxu0 %v416
    %478 = vmatpush.msra.mxu0 %v412
    %479 = vmatpush.msra.mxu0 %v408
    %480 = vmatpush.msra.mxu0 %v404
    %481 = vmatpush.msra.mxu0 %v400
    %482 = vmatpush.msra.mxu0 %v396
    %483 = vmatpush.msra.mxu0 %v392
    %484 = vmatpush.msra.mxu0 %v388
    %485 = vmatpush.msra.mxu0 %v384
    %486 = vmatpush.msra.mxu0 %v380
    %487 = vmatpush.msra.mxu0 %v376
    %488 = vmatpush.msra.mxu0 %v372
    %489 = vmatpush.msra.mxu0 %v368
    %490 = vmatpush.msra.mxu0 %v364
    %491 = vmatmul.f32.gmra.mxu0 %v426
    %v492 = vpop.f32.mrf.mxu0
    %v493 = vadd.f32 0.0, %v492
    %494 = vdwg.mxu0
    %495 = vmatpush.msra.mxu0 %v425
    %496 = vmatpush.msra.mxu0 %v421
    %497 = vmatpush.msra.mxu0 %v417
    %498 = vmatpush.msra.mxu0 %v413
    %499 = vmatpush.msra.mxu0 %v409
    %500 = vmatpush.msra.mxu0 %v405
    %501 = vmatpush.msra.mxu0 %v401
    %502 = vmatpush.msra.mxu0 %v397
    %503 = vmatpush.msra.mxu0 %v393
    %504 = vmatpush.msra.mxu0 %v389
    %505 = vmatpush.msra.mxu0 %v385
    %506 = vmatpush.msra.mxu0 %v381
    %507 = vmatpush.msra.mxu0 %v377
    %508 = vmatpush.msra.mxu0 %v373
    %509 = vmatpush.msra.mxu0 %v369
    %510 = vmatpush.msra.mxu0 %v365
    %511 = vmatmul.f32.gmra.mxu0 %v426
    %v512 = vpop.f32.mrf.mxu0
    %v513 = vadd.f32 0.0, %v512
    %514 = vdwg.mxu0
    %v515 = vadd.f32 %v431, %v453
    %v516 = vadd.f32 %v432, %v473
    %v517 = vadd.f32 %v433, %v493
    %v518 = vadd.f32 %v434, %v513
    %v519 = vxor.u32 %v515, 2147483648
    %v520 = vxor.u32 %v516, 2147483648
    %v521 = vxor.u32 %v517, 2147483648
    %v522 = vmul.f32 %v519, 1.442695
    %v523 = vpow.pop %v522
    %v524 = vmul.f32 %v520, 1.442695
    %v525 = vpow.pop %v524
    %v526 = vmul.f32 %v521, 1.442695
    %v527 = vpow.pop %v526
    %v528 = vadd.f32 %v523, 1.0
    %v529 = vadd.f32 %v525, 1.0
    %v530 = vadd.f32 %v527, 1.0
    %v531 = vrcp.pop %v528
    %v532 = vmul.f32 %v528, %v531
    %v533 = vsub.f32 1.0, %v532
    %v534 = vmul.f32 %v531, %v533
    %v535 = vadd.f32 %v531, %v534
    %vm536 = vweird.f32 %v528
    %vm537 = vweird.f32 %v531
    %vm538 = vmor %vm536, %vm537
    %v539 = vsel %vm538, %v531, %v535
    %v540 = vand.u32 2147483647, %v528
    %vm541 = vcmp.eq.f32.partialorder %v540, 8.507059e+37
    %v542 = vand.u32 %v528, 2147483648
    %v543 = vor.u32 1.1754944e-38, %v542
    %v544 = vsel %vm541, %v543, %v539
    %v545 = vmul.f32 1.0, %v544
    %v546 = vrcp.pop %v529
    %v547 = vmul.f32 %v529, %v546
    %v548 = vsub.f32 1.0, %v547
    %v549 = vmul.f32 %v546, %v548
    %v550 = vadd.f32 %v546, %v549
    %vm551 = vweird.f32 %v529
    %vm552 = vweird.f32 %v546
    %vm553 = vmor %vm551, %vm552
    %v554 = vsel %vm553, %v546, %v550
    %v555 = vand.u32 2147483647, %v529
    %vm556 = vcmp.eq.f32.partialorder %v555, 8.507059e+37
    %v557 = vand.u32 %v529, 2147483648
    %v558 = vor.u32 1.1754944e-38, %v557
    %v559 = vsel %vm556, %v558, %v554
    %v560 = vmul.f32 1.0, %v559
    %v561 = vrcp.pop %v530
    %v562 = vmul.f32 %v530, %v561
    %v563 = vsub.f32 1.0, %v562
    %v564 = vmul.f32 %v561, %v563
    %v565 = vadd.f32 %v561, %v564
    %vm566 = vweird.f32 %v530
    %vm567 = vweird.f32 %v561
    %vm568 = vmor %vm566, %vm567
    %v569 = vsel %vm568, %v561, %v565
    %v570 = vand.u32 2147483647, %v530
    %vm571 = vcmp.eq.f32.partialorder %v570, 8.507059e+37
    %v572 = vand.u32 %v530, 2147483648
    %v573 = vor.u32 1.1754944e-38, %v572
    %v574 = vsel %vm571, %v573, %v569
    %v575 = vmul.f32 1.0, %v574
    %v576 = vtanh.pop %v518
    %v577 = vmul.f32 %v560, %v427
    %v578 = vmul.f32 %v545, %v576
    %v579 = vadd.f32 %v577, %v578
    %v580 = vtanh.pop %v579
    %v581 = vmul.f32 %v575, %v580
    %582 = vst [vmem:[#allocation6] sm:$0xff] %v581
    %s583 = smul.u32 1, 4
    %s584 = smul.addr %s583, 8
    %s585 = scalar_lea.vmem [#allocation7], %s584
    %v586 = vld [vmem:[%s585] sm:$0xff]
    %v587 = vld [vmem:[%s585 + $0x8] sm:$0xff]
    %v588 = vld [vmem:[%s585 + $0x10] sm:$0xff]
    %v589 = vld [vmem:[%s585 + $0x18] sm:$0xff]
    %590 = vmatpush.msra.mxu0 %v422
    %591 = vmatpush.msra.mxu0 %v418
    %592 = vmatpush.msra.mxu0 %v414
    %593 = vmatpush.msra.mxu0 %v410
    %594 = vmatpush.msra.mxu0 %v406
    %595 = vmatpush.msra.mxu0 %v402
    %596 = vmatpush.msra.mxu0 %v398
    %597 = vmatpush.msra.mxu0 %v394
    %598 = vmatpush.msra.mxu0 %v390
    %599 = vmatpush.msra.mxu0 %v386
    %600 = vmatpush.msra.mxu0 %v382
    %601 = vmatpush.msra.mxu0 %v378
    %602 = vmatpush.msra.mxu0 %v374
    %603 = vmatpush.msra.mxu0 %v370
    %604 = vmatpush.msra.mxu0 %v366
    %605 = vmatpush.msra.mxu0 %v362
    %606 = vmatmul.f32.gmra.mxu0 %v581
    %v607 = vpop.f32.mrf.mxu0
    %v608 = vadd.f32 0.0, %v607
    %609 = vdwg.mxu0
    %610 = vmatpush.msra.mxu0 %v423
    %611 = vmatpush.msra.mxu0 %v419
    %612 = vmatpush.msra.mxu0 %v415
    %613 = vmatpush.msra.mxu0 %v411
    %614 = vmatpush.msra.mxu0 %v407
    %615 = vmatpush.msra.mxu0 %v403
    %616 = vmatpush.msra.mxu0 %v399
    %617 = vmatpush.msra.mxu0 %v395
    %618 = vmatpush.msra.mxu0 %v391
    %619 = vmatpush.msra.mxu0 %v387
    %620 = vmatpush.msra.mxu0 %v383
    %621 = vmatpush.msra.mxu0 %v379
    %622 = vmatpush.msra.mxu0 %v375
    %623 = vmatpush.msra.mxu0 %v371
    %624 = vmatpush.msra.mxu0 %v367
    %625 = vmatpush.msra.mxu0 %v363
    %626 = vmatmul.f32.gmra.mxu0 %v581
    %v627 = vpop.f32.mrf.mxu0
    %v628 = vadd.f32 0.0, %v627
    %629 = vdwg.mxu0
    %630 = vmatpush.msra.mxu0 %v424
    %631 = vmatpush.msra.mxu0 %v420
    %632 = vmatpush.msra.mxu0 %v416
    %633 = vmatpush.msra.mxu0 %v412
    %634 = vmatpush.msra.mxu0 %v408
    %635 = vmatpush.msra.mxu0 %v404
    %636 = vmatpush.msra.mxu0 %v400
    %637 = vmatpush.msra.mxu0 %v396
    %638 = vmatpush.msra.mxu0 %v392
    %639 = vmatpush.msra.mxu0 %v388
    %640 = vmatpush.msra.mxu0 %v384
    %641 = vmatpush.msra.mxu0 %v380
    %642 = vmatpush.msra.mxu0 %v376
    %643 = vmatpush.msra.mxu0 %v372
    %644 = vmatpush.msra.mxu0 %v368
    %645 = vmatpush.msra.mxu0 %v364
    %646 = vmatmul.f32.gmra.mxu0 %v581
    %v647 = vpop.f32.mrf.mxu0
    %v648 = vadd.f32 0.0, %v647
    %649 = vdwg.mxu0
    %650 = vmatpush.msra.mxu0 %v425
    %651 = vmatpush.msra.mxu0 %v421
    %652 = vmatpush.msra.mxu0 %v417
    %653 = vmatpush.msra.mxu0 %v413
    %654 = vmatpush.msra.mxu0 %v409
    %655 = vmatpush.msra.mxu0 %v405
    %656 = vmatpush.msra.mxu0 %v401
    %657 = vmatpush.msra.mxu0 %v397
    %658 = vmatpush.msra.mxu0 %v393
    %659 = vmatpush.msra.mxu0 %v389
    %660 = vmatpush.msra.mxu0 %v385
    %661 = vmatpush.msra.mxu0 %v381
    %662 = vmatpush.msra.mxu0 %v377
    %663 = vmatpush.msra.mxu0 %v373
    %664 = vmatpush.msra.mxu0 %v369
    %665 = vmatpush.msra.mxu0 %v365
    %666 = vmatmul.f32.gmra.mxu0 %v581
    %v667 = vpop.f32.mrf.mxu0
    %v668 = vadd.f32 0.0, %v667
    %669 = vdwg.mxu0
    %v670 = vadd.f32 %v586, %v608
    %v671 = vadd.f32 %v587, %v628
    %v672 = vadd.f32 %v588, %v648
    %v673 = vadd.f32 %v589, %v668
    %v674 = vxor.u32 %v670, 2147483648
    %v675 = vxor.u32 %v671, 2147483648
    %v676 = vxor.u32 %v672, 2147483648
    %v677 = vmul.f32 %v674, 1.442695
    %v678 = vpow.pop %v677
    %v679 = vmul.f32 %v675, 1.442695
    %v680 = vpow.pop %v679
    %v681 = vmul.f32 %v676, 1.442695
    %v682 = vpow.pop %v681
    %v683 = vadd.f32 %v678, 1.0
    %v684 = vadd.f32 %v680, 1.0
    %v685 = vadd.f32 %v682, 1.0
    %v686 = vrcp.pop %v683
    %v687 = vmul.f32 %v683, %v686
    %v688 = vsub.f32 1.0, %v687
    %v689 = vmul.f32 %v686, %v688
    %v690 = vadd.f32 %v686, %v689
    %vm691 = vweird.f32 %v683
    %vm692 = vweird.f32 %v686
    %vm693 = vmor %vm691, %vm692
    %v694 = vsel %vm693, %v686, %v690
    %v695 = vand.u32 2147483647, %v683
    %vm696 = vcmp.eq.f32.partialorder %v695, 8.507059e+37
    %v697 = vand.u32 %v683, 2147483648
    %v698 = vor.u32 1.1754944e-38, %v697
    %v699 = vsel %vm696, %v698, %v694
    %v700 = vmul.f32 1.0, %v699
    %v701 = vrcp.pop %v684
    %v702 = vmul.f32 %v684, %v701
    %v703 = vsub.f32 1.0, %v702
    %v704 = vmul.f32 %v701, %v703
    %v705 = vadd.f32 %v701, %v704
    %vm706 = vweird.f32 %v684
    %vm707 = vweird.f32 %v701
    %vm708 = vmor %vm706, %vm707
    %v709 = vsel %vm708, %v701, %v705
    %v710 = vand.u32 2147483647, %v684
    %vm711 = vcmp.eq.f32.partialorder %v710, 8.507059e+37
    %v712 = vand.u32 %v684, 2147483648
    %v713 = vor.u32 1.1754944e-38, %v712
    %v714 = vsel %vm711, %v713, %v709
    %v715 = vmul.f32 1.0, %v714
    %v716 = vrcp.pop %v685
    %v717 = vmul.f32 %v685, %v716
    %v718 = vsub.f32 1.0, %v717
    %v719 = vmul.f32 %v716, %v718
    %v720 = vadd.f32 %v716, %v719
    %vm721 = vweird.f32 %v685
    %vm722 = vweird.f32 %v716
    %vm723 = vmor %vm721, %vm722
    %v724 = vsel %vm723, %v716, %v720
    %v725 = vand.u32 2147483647, %v685
    %vm726 = vcmp.eq.f32.partialorder %v725, 8.507059e+37
    %v727 = vand.u32 %v685, 2147483648
    %v728 = vor.u32 1.1754944e-38, %v727
    %v729 = vsel %vm726, %v728, %v724
    %v730 = vmul.f32 1.0, %v729
    %v731 = vtanh.pop %v673
    %v732 = vmul.f32 %v715, %v579
    %v733 = vmul.f32 %v700, %v731
    %v734 = vadd.f32 %v732, %v733
    %v735 = vtanh.pop %v734
    %v736 = vmul.f32 %v730, %v735
    %s737 = scalar_lea.vmem [#allocation6], 8
    %738 = vst [vmem:[%s737] sm:$0xff] %v736
    %s739 = smul.u32 2, 4
    %s740 = smul.addr %s739, 8
    %s741 = scalar_lea.vmem [#allocation7], %s740
    %v742 = vld [vmem:[%s741] sm:$0xff]
    %v743 = vld [vmem:[%s741 + $0x8] sm:$0xff]
    %v744 = vld [vmem:[%s741 + $0x10] sm:$0xff]
    %v745 = vld [vmem:[%s741 + $0x18] sm:$0xff]
    %746 = vmatpush.msra.mxu0 %v422
    %747 = vmatpush.msra.mxu0 %v418
    %748 = vmatpush.msra.mxu0 %v414
    %749 = vmatpush.msra.mxu0 %v410
    %750 = vmatpush.msra.mxu0 %v406
    %751 = vmatpush.msra.mxu0 %v402
    %752 = vmatpush.msra.mxu0 %v398
    %753 = vmatpush.msra.mxu0 %v394
    %754 = vmatpush.msra.mxu0 %v390
    %755 = vmatpush.msra.mxu0 %v386
    %756 = vmatpush.msra.mxu0 %v382
    %757 = vmatpush.msra.mxu0 %v378
    %758 = vmatpush.msra.mxu0 %v374
    %759 = vmatpush.msra.mxu0 %v370
    %760 = vmatpush.msra.mxu0 %v366
    %761 = vmatpush.msra.mxu0 %v362
    %762 = vmatmul.f32.gmra.mxu0 %v736
    %v763 = vpop.f32.mrf.mxu0
    %v764 = vadd.f32 0.0, %v763
    %765 = vdwg.mxu0
    %766 = vmatpush.msra.mxu0 %v423
    %767 = vmatpush.msra.mxu0 %v419
    %768 = vmatpush.msra.mxu0 %v415
    %769 = vmatpush.msra.mxu0 %v411
    %770 = vmatpush.msra.mxu0 %v407
    %771 = vmatpush.msra.mxu0 %v403
    %772 = vmatpush.msra.mxu0 %v399
    %773 = vmatpush.msra.mxu0 %v395
    %774 = vmatpush.msra.mxu0 %v391
    %775 = vmatpush.msra.mxu0 %v387
    %776 = vmatpush.msra.mxu0 %v383
    %777 = vmatpush.msra.mxu0 %v379
    %778 = vmatpush.msra.mxu0 %v375
    %779 = vmatpush.msra.mxu0 %v371
    %780 = vmatpush.msra.mxu0 %v367
    %781 = vmatpush.msra.mxu0 %v363
    %782 = vmatmul.f32.gmra.mxu0 %v736
    %v783 = vpop.f32.mrf.mxu0
    %v784 = vadd.f32 0.0, %v783
    %785 = vdwg.mxu0
    %786 = vmatpush.msra.mxu0 %v424
    %787 = vmatpush.msra.mxu0 %v420
    %788 = vmatpush.msra.mxu0 %v416
    %789 = vmatpush.msra.mxu0 %v412
    %790 = vmatpush.msra.mxu0 %v408
    %791 = vmatpush.msra.mxu0 %v404
    %792 = vmatpush.msra.mxu0 %v400
    %793 = vmatpush.msra.mxu0 %v396
    %794 = vmatpush.msra.mxu0 %v392
    %795 = vmatpush.msra.mxu0 %v388
    %796 = vmatpush.msra.mxu0 %v384
    %797 = vmatpush.msra.mxu0 %v380
    %798 = vmatpush.msra.mxu0 %v376
    %799 = vmatpush.msra.mxu0 %v372
    %800 = vmatpush.msra.mxu0 %v368
    %801 = vmatpush.msra.mxu0 %v364
    %802 = vmatmul.f32.gmra.mxu0 %v736
    %v803 = vpop.f32.mrf.mxu0
    %v804 = vadd.f32 0.0, %v803
    %805 = vdwg.mxu0
    %806 = vmatpush.msra.mxu0 %v425
    %807 = vmatpush.msra.mxu0 %v421
    %808 = vmatpush.msra.mxu0 %v417
    %809 = vmatpush.msra.mxu0 %v413
    %810 = vmatpush.msra.mxu0 %v409
    %811 = vmatpush.msra.mxu0 %v405
    %812 = vmatpush.msra.mxu0 %v401
    %813 = vmatpush.msra.mxu0 %v397
    %814 = vmatpush.msra.mxu0 %v393
    %815 = vmatpush.msra.mxu0 %v389
    %816 = vmatpush.msra.mxu0 %v385
    %817 = vmatpush.msra.mxu0 %v381
    %818 = vmatpush.msra.mxu0 %v377
    %819 = vmatpush.msra.mxu0 %v373
    %820 = vmatpush.msra.mxu0 %v369
    %821 = vmatpush.msra.mxu0 %v365
    %822 = vmatmul.f32.gmra.mxu0 %v736
    %v823 = vpop.f32.mrf.mxu0
    %v824 = vadd.f32 0.0, %v823
    %825 = vdwg.mxu0
    %v826 = vadd.f32 %v742, %v764
    %v827 = vadd.f32 %v743, %v784
    %v828 = vadd.f32 %v744, %v804
    %v829 = vadd.f32 %v745, %v824
    %v830 = vxor.u32 %v826, 2147483648
    %v831 = vxor.u32 %v827, 2147483648
    %v832 = vxor.u32 %v828, 2147483648
    %v833 = vmul.f32 %v830, 1.442695
    %v834 = vpow.pop %v833
    %v835 = vmul.f32 %v831, 1.442695
    %v836 = vpow.pop %v835
    %v837 = vmul.f32 %v832, 1.442695
    %v838 = vpow.pop %v837
    %v839 = vadd.f32 %v834, 1.0
    %v840 = vadd.f32 %v836, 1.0
    %v841 = vadd.f32 %v838, 1.0
    %v842 = vrcp.pop %v839
    %v843 = vmul.f32 %v839, %v842
    %v844 = vsub.f32 1.0, %v843
    %v845 = vmul.f32 %v842, %v844
    %v846 = vadd.f32 %v842, %v845
    %vm847 = vweird.f32 %v839
    %vm848 = vweird.f32 %v842
    %vm849 = vmor %vm847, %vm848
    %v850 = vsel %vm849, %v842, %v846
    %v851 = vand.u32 2147483647, %v839
    %vm852 = vcmp.eq.f32.partialorder %v851, 8.507059e+37
    %v853 = vand.u32 %v839, 2147483648
    %v854 = vor.u32 1.1754944e-38, %v853
    %v855 = vsel %vm852, %v854, %v850
    %v856 = vmul.f32 1.0, %v855
    %v857 = vrcp.pop %v840
    %v858 = vmul.f32 %v840, %v857
    %v859 = vsub.f32 1.0, %v858
    %v860 = vmul.f32 %v857, %v859
    %v861 = vadd.f32 %v857, %v860
    %vm862 = vweird.f32 %v840
    %vm863 = vweird.f32 %v857
    %vm864 = vmor %vm862, %vm863
    %v865 = vsel %vm864, %v857, %v861
    %v866 = vand.u32 2147483647, %v840
    %vm867 = vcmp.eq.f32.partialorder %v866, 8.507059e+37
    %v868 = vand.u32 %v840, 2147483648
    %v869 = vor.u32 1.1754944e-38, %v868
    %v870 = vsel %vm867, %v869, %v865
    %v871 = vmul.f32 1.0, %v870
    %v872 = vrcp.pop %v841
    %v873 = vmul.f32 %v841, %v872
    %v874 = vsub.f32 1.0, %v873
    %v875 = vmul.f32 %v872, %v874
    %v876 = vadd.f32 %v872, %v875
    %vm877 = vweird.f32 %v841
    %vm878 = vweird.f32 %v872
    %vm879 = vmor %vm877, %vm878
    %v880 = vsel %vm879, %v872, %v876
    %v881 = vand.u32 2147483647, %v841
    %vm882 = vcmp.eq.f32.partialorder %v881, 8.507059e+37
    %v883 = vand.u32 %v841, 2147483648
    %v884 = vor.u32 1.1754944e-38, %v883
    %v885 = vsel %vm882, %v884, %v880
    %v886 = vmul.f32 1.0, %v885
    %v887 = vtanh.pop %v829
    %v888 = vmul.f32 %v871, %v734
    %v889 = vmul.f32 %v856, %v887
    %v890 = vadd.f32 %v888, %v889
    %v891 = vtanh.pop %v890
    %v892 = vmul.f32 %v886, %v891
    %s893 = scalar_lea.vmem [#allocation6], 16
    %894 = vst [vmem:[%s893] sm:$0xff] %v892
    %s895 = smul.u32 3, 4
    %s896 = smul.addr %s895, 8
    %s897 = scalar_lea.vmem [#allocation7], %s896
    %v898 = vld [vmem:[%s897] sm:$0xff]
    %v899 = vld [vmem:[%s897 + $0x8] sm:$0xff]
    %v900 = vld [vmem:[%s897 + $0x10] sm:$0xff]
    %v901 = vld [vmem:[%s897 + $0x18] sm:$0xff]
    %902 = vmatpush.msra.mxu0 %v422
    %903 = vmatpush.msra.mxu0 %v418
    %904 = vmatpush.msra.mxu0 %v414
    %905 = vmatpush.msra.mxu0 %v410
    %906 = vmatpush.msra.mxu0 %v406
    %907 = vmatpush.msra.mxu0 %v402
    %908 = vmatpush.msra.mxu0 %v398
    %909 = vmatpush.msra.mxu0 %v394
    %910 = vmatpush.msra.mxu0 %v390
    %911 = vmatpush.msra.mxu0 %v386
    %912 = vmatpush.msra.mxu0 %v382
    %913 = vmatpush.msra.mxu0 %v378
    %914 = vmatpush.msra.mxu0 %v374
    %915 = vmatpush.msra.mxu0 %v370
    %916 = vmatpush.msra.mxu0 %v366
    %917 = vmatpush.msra.mxu0 %v362
    %918 = vmatmul.f32.gmra.mxu0 %v892
    %v919 = vpop.f32.mrf.mxu0
    %v920 = vadd.f32 0.0, %v919
    %921 = vdwg.mxu0
    %922 = vmatpush.msra.mxu0 %v423
    %923 = vmatpush.msra.mxu0 %v419
    %924 = vmatpush.msra.mxu0 %v415
    %925 = vmatpush.msra.mxu0 %v411
    %926 = vmatpush.msra.mxu0 %v407
    %927 = vmatpush.msra.mxu0 %v403
    %928 = vmatpush.msra.mxu0 %v399
    %929 = vmatpush.msra.mxu0 %v395
    %930 = vmatpush.msra.mxu0 %v391
    %931 = vmatpush.msra.mxu0 %v387
    %932 = vmatpush.msra.mxu0 %v383
    %933 = vmatpush.msra.mxu0 %v379
    %934 = vmatpush.msra.mxu0 %v375
    %935 = vmatpush.msra.mxu0 %v371
    %936 = vmatpush.msra.mxu0 %v367
    %937 = vmatpush.msra.mxu0 %v363
    %938 = vmatmul.f32.gmra.mxu0 %v892
    %v939 = vpop.f32.mrf.mxu0
    %v940 = vadd.f32 0.0, %v939
    %941 = vdwg.mxu0
    %942 = vmatpush.msra.mxu0 %v424
    %943 = vmatpush.msra.mxu0 %v420
    %944 = vmatpush.msra.mxu0 %v416
    %945 = vmatpush.msra.mxu0 %v412
    %946 = vmatpush.msra.mxu0 %v408
    %947 = vmatpush.msra.mxu0 %v404
    %948 = vmatpush.msra.mxu0 %v400
    %949 = vmatpush.msra.mxu0 %v396
    %950 = vmatpush.msra.mxu0 %v392
    %951 = vmatpush.msra.mxu0 %v388
    %952 = vmatpush.msra.mxu0 %v384
    %953 = vmatpush.msra.mxu0 %v380
    %954 = vmatpush.msra.mxu0 %v376
    %955 = vmatpush.msra.mxu0 %v372
    %956 = vmatpush.msra.mxu0 %v368
    %957 = vmatpush.msra.mxu0 %v364
    %958 = vmatmul.f32.gmra.mxu0 %v892
    %v959 = vpop.f32.mrf.mxu0
    %v960 = vadd.f32 0.0, %v959
    %961 = vdwg.mxu0
    %962 = vmatpush.msra.mxu0 %v425
    %963 = vmatpush.msra.mxu0 %v421
    %964 = vmatpush.msra.mxu0 %v417
    %965 = vmatpush.msra.mxu0 %v413
    %966 = vmatpush.msra.mxu0 %v409
    %967 = vmatpush.msra.mxu0 %v405
    %968 = vmatpush.msra.mxu0 %v401
    %969 = vmatpush.msra.mxu0 %v397
    %970 = vmatpush.msra.mxu0 %v393
    %971 = vmatpush.msra.mxu0 %v389
    %972 = vmatpush.msra.mxu0 %v385
    %973 = vmatpush.msra.mxu0 %v381
    %974 = vmatpush.msra.mxu0 %v377
    %975 = vmatpush.msra.mxu0 %v373
    %976 = vmatpush.msra.mxu0 %v369
    %977 = vmatpush.msra.mxu0 %v365
    %978 = vmatmul.f32.gmra.mxu0 %v892
    %v979 = vpop.f32.mrf.mxu0
    %v980 = vadd.f32 0.0, %v979
    %981 = vdwg.mxu0
    %v982 = vadd.f32 %v898, %v920
    %v983 = vadd.f32 %v899, %v940
    %v984 = vadd.f32 %v900, %v960
    %v985 = vadd.f32 %v901, %v980
    %v986 = vxor.u32 %v982, 2147483648
    %v987 = vxor.u32 %v983, 2147483648
    %v988 = vxor.u32 %v984, 2147483648
    %v989 = vmul.f32 %v986, 1.442695
    %v990 = vpow.pop %v989
    %v991 = vmul.f32 %v987, 1.442695
    %v992 = vpow.pop %v991
    %v993 = vmul.f32 %v988, 1.442695
    %v994 = vpow.pop %v993
    %v995 = vadd.f32 %v990, 1.0
    %v996 = vadd.f32 %v992, 1.0
    %v997 = vadd.f32 %v994, 1.0
    %v998 = vrcp.pop %v995
    %v999 = vmul.f32 %v995, %v998
    %v1000 = vsub.f32 1.0, %v999
    %v1001 = vmul.f32 %v998, %v1000
    %v1002 = vadd.f32 %v998, %v1001
    %vm1003 = vweird.f32 %v995
    %vm1004 = vweird.f32 %v998
    %vm1005 = vmor %vm1003, %vm1004
    %v1006 = vsel %vm1005, %v998, %v1002
    %v1007 = vand.u32 2147483647, %v995
    %vm1008 = vcmp.eq.f32.partialorder %v1007, 8.507059e+37
    %v1009 = vand.u32 %v995, 2147483648
    %v1010 = vor.u32 1.1754944e-38, %v1009
    %v1011 = vsel %vm1008, %v1010, %v1006
    %v1012 = vmul.f32 1.0, %v1011
    %v1013 = vrcp.pop %v996
    %v1014 = vmul.f32 %v996, %v1013
    %v1015 = vsub.f32 1.0, %v1014
    %v1016 = vmul.f32 %v1013, %v1015
    %v1017 = vadd.f32 %v1013, %v1016
    %vm1018 = vweird.f32 %v996
    %vm1019 = vweird.f32 %v1013
    %vm1020 = vmor %vm1018, %vm1019
    %v1021 = vsel %vm1020, %v1013, %v1017
    %v1022 = vand.u32 2147483647, %v996
    %vm1023 = vcmp.eq.f32.partialorder %v1022, 8.507059e+37
    %v1024 = vand.u32 %v996, 2147483648
    %v1025 = vor.u32 1.1754944e-38, %v1024
    %v1026 = vsel %vm1023, %v1025, %v1021
    %v1027 = vmul.f32 1.0, %v1026
    %v1028 = vrcp.pop %v997
    %v1029 = vmul.f32 %v997, %v1028
    %v1030 = vsub.f32 1.0, %v1029
    %v1031 = vmul.f32 %v1028, %v1030
    %v1032 = vadd.f32 %v1028, %v1031
    %vm1033 = vweird.f32 %v997
    %vm1034 = vweird.f32 %v1028
    %vm1035 = vmor %vm1033, %vm1034
    %v1036 = vsel %vm1035, %v1028, %v1032
    %v1037 = vand.u32 2147483647, %v997
    %vm1038 = vcmp.eq.f32.partialorder %v1037, 8.507059e+37
    %v1039 = vand.u32 %v997, 2147483648
    %v1040 = vor.u32 1.1754944e-38, %v1039
    %v1041 = vsel %vm1038, %v1040, %v1036
    %v1042 = vmul.f32 1.0, %v1041
    %v1043 = vtanh.pop %v985
    %v1044 = vmul.f32 %v1027, %v890
    %v1045 = vmul.f32 %v1012, %v1043
    %v1046 = vadd.f32 %v1044, %v1045
    %v1047 = vtanh.pop %v1046
    %v1048 = vmul.f32 %v1042, %v1047
    %s1049 = scalar_lea.vmem [#allocation6], 24
    %1050 = vst [vmem:[%s1049] sm:$0xff] %v1048
    %s1051 = smul.u32 4, 4
    %s1052 = smul.addr %s1051, 8
    %s1053 = scalar_lea.vmem [#allocation7], %s1052
    %v1054 = vld [vmem:[%s1053] sm:$0xff]
    %v1055 = vld [vmem:[%s1053 + $0x8] sm:$0xff]
    %v1056 = vld [vmem:[%s1053 + $0x10] sm:$0xff]
    %v1057 = vld [vmem:[%s1053 + $0x18] sm:$0xff]
    %1058 = vmatpush.msra.mxu0 %v422
    %1059 = vmatpush.msra.mxu0 %v418
    %1060 = vmatpush.msra.mxu0 %v414
    %1061 = vmatpush.msra.mxu0 %v410
    %1062 = vmatpush.msra.mxu0 %v406
    %1063 = vmatpush.msra.mxu0 %v402
    %1064 = vmatpush.msra.mxu0 %v398
    %1065 = vmatpush.msra.mxu0 %v394
    %1066 = vmatpush.msra.mxu0 %v390
    %1067 = vmatpush.msra.mxu0 %v386
    %1068 = vmatpush.msra.mxu0 %v382
    %1069 = vmatpush.msra.mxu0 %v378
    %1070 = vmatpush.msra.mxu0 %v374
    %1071 = vmatpush.msra.mxu0 %v370
    %1072 = vmatpush.msra.mxu0 %v366
    %1073 = vmatpush.msra.mxu0 %v362
    %1074 = vmatmul.f32.gmra.mxu0 %v1048
    %v1075 = vpop.f32.mrf.mxu0
    %v1076 = vadd.f32 0.0, %v1075
    %1077 = vdwg.mxu0
    %1078 = vmatpush.msra.mxu0 %v423
    %1079 = vmatpush.msra.mxu0 %v419
    %1080 = vmatpush.msra.mxu0 %v415
    %1081 = vmatpush.msra.mxu0 %v411
    %1082 = vmatpush.msra.mxu0 %v407
    %1083 = vmatpush.msra.mxu0 %v403
    %1084 = vmatpush.msra.mxu0 %v399
    %1085 = vmatpush.msra.mxu0 %v395
    %1086 = vmatpush.msra.mxu0 %v391
    %1087 = vmatpush.msra.mxu0 %v387
    %1088 = vmatpush.msra.mxu0 %v383
    %1089 = vmatpush.msra.mxu0 %v379
    %1090 = vmatpush.msra.mxu0 %v375
    %1091 = vmatpush.msra.mxu0 %v371
    %1092 = vmatpush.msra.mxu0 %v367
    %1093 = vmatpush.msra.mxu0 %v363
    %1094 = vmatmul.f32.gmra.mxu0 %v1048
    %v1095 = vpop.f32.mrf.mxu0
    %v1096 = vadd.f32 0.0, %v1095
    %1097 = vdwg.mxu0
    %1098 = vmatpush.msra.mxu0 %v424
    %1099 = vmatpush.msra.mxu0 %v420
    %1100 = vmatpush.msra.mxu0 %v416
    %1101 = vmatpush.msra.mxu0 %v412
    %1102 = vmatpush.msra.mxu0 %v408
    %1103 = vmatpush.msra.mxu0 %v404
    %1104 = vmatpush.msra.mxu0 %v400
    %1105 = vmatpush.msra.mxu0 %v396
    %1106 = vmatpush.msra.mxu0 %v392
    %1107 = vmatpush.msra.mxu0 %v388
    %1108 = vmatpush.msra.mxu0 %v384
    %1109 = vmatpush.msra.mxu0 %v380
    %1110 = vmatpush.msra.mxu0 %v376
    %1111 = vmatpush.msra.mxu0 %v372
    %1112 = vmatpush.msra.mxu0 %v368
    %1113 = vmatpush.msra.mxu0 %v364
    %1114 = vmatmul.f32.gmra.mxu0 %v1048
    %v1115 = vpop.f32.mrf.mxu0
    %v1116 = vadd.f32 0.0, %v1115
    %1117 = vdwg.mxu0
    %1118 = vmatpush.msra.mxu0 %v425
    %1119 = vmatpush.msra.mxu0 %v421
    %1120 = vmatpush.msra.mxu0 %v417
    %1121 = vmatpush.msra.mxu0 %v413
    %1122 = vmatpush.msra.mxu0 %v409
    %1123 = vmatpush.msra.mxu0 %v405
    %1124 = vmatpush.msra.mxu0 %v401
    %1125 = vmatpush.msra.mxu0 %v397
    %1126 = vmatpush.msra.mxu0 %v393
    %1127 = vmatpush.msra.mxu0 %v389
    %1128 = vmatpush.msra.mxu0 %v385
    %1129 = vmatpush.msra.mxu0 %v381
    %1130 = vmatpush.msra.mxu0 %v377
    %1131 = vmatpush.msra.mxu0 %v373
    %1132 = vmatpush.msra.mxu0 %v369
    %1133 = vmatpush.msra.mxu0 %v365
    %1134 = vmatmul.f32.gmra.mxu0 %v1048
    %v1135 = vpop.f32.mrf.mxu0
    %v1136 = vadd.f32 0.0, %v1135
    %1137 = vdwg.mxu0
    %v1138 = vadd.f32 %v1054, %v1076
    %v1139 = vadd.f32 %v1055, %v1096
    %v1140 = vadd.f32 %v1056, %v1116
    %v1141 = vadd.f32 %v1057, %v1136
    %v1142 = vxor.u32 %v1138, 2147483648
    %v1143 = vxor.u32 %v1139, 2147483648
    %v1144 = vxor.u32 %v1140, 2147483648
    %v1145 = vmul.f32 %v1142, 1.442695
    %v1146 = vpow.pop %v1145
    %v1147 = vmul.f32 %v1143, 1.442695
    %v1148 = vpow.pop %v1147
    %v1149 = vmul.f32 %v1144, 1.442695
    %v1150 = vpow.pop %v1149
    %v1151 = vadd.f32 %v1146, 1.0
    %v1152 = vadd.f32 %v1148, 1.0
    %v1153 = vadd.f32 %v1150, 1.0
    %v1154 = vrcp.pop %v1151
    %v1155 = vmul.f32 %v1151, %v1154
    %v1156 = vsub.f32 1.0, %v1155
    %v1157 = vmul.f32 %v1154, %v1156
    %v1158 = vadd.f32 %v1154, %v1157
    %vm1159 = vweird.f32 %v1151
    %vm1160 = vweird.f32 %v1154
    %vm1161 = vmor %vm1159, %vm1160
    %v1162 = vsel %vm1161, %v1154, %v1158
    %v1163 = vand.u32 2147483647, %v1151
    %vm1164 = vcmp.eq.f32.partialorder %v1163, 8.507059e+37
    %v1165 = vand.u32 %v1151, 2147483648
    %v1166 = vor.u32 1.1754944e-38, %v1165
    %v1167 = vsel %vm1164, %v1166, %v1162
    %v1168 = vmul.f32 1.0, %v1167
    %v1169 = vrcp.pop %v1152
    %v1170 = vmul.f32 %v1152, %v1169
    %v1171 = vsub.f32 1.0, %v1170
    %v1172 = vmul.f32 %v1169, %v1171
    %v1173 = vadd.f32 %v1169, %v1172
    %vm1174 = vweird.f32 %v1152
    %vm1175 = vweird.f32 %v1169
    %vm1176 = vmor %vm1174, %vm1175
    %v1177 = vsel %vm1176, %v1169, %v1173
    %v1178 = vand.u32 2147483647, %v1152
    %vm1179 = vcmp.eq.f32.partialorder %v1178, 8.507059e+37
    %v1180 = vand.u32 %v1152, 2147483648
    %v1181 = vor.u32 1.1754944e-38, %v1180
    %v1182 = vsel %vm1179, %v1181, %v1177
    %v1183 = vmul.f32 1.0, %v1182
    %v1184 = vrcp.pop %v1153
    %v1185 = vmul.f32 %v1153, %v1184
    %v1186 = vsub.f32 1.0, %v1185
    %v1187 = vmul.f32 %v1184, %v1186
    %v1188 = vadd.f32 %v1184, %v1187
    %vm1189 = vweird.f32 %v1153
    %vm1190 = vweird.f32 %v1184
    %vm1191 = vmor %vm1189, %vm1190
    %v1192 = vsel %vm1191, %v1184, %v1188
    %v1193 = vand.u32 2147483647, %v1153
    %vm1194 = vcmp.eq.f32.partialorder %v1193, 8.507059e+37
    %v1195 = vand.u32 %v1153, 2147483648
    %v1196 = vor.u32 1.1754944e-38, %v1195
    %v1197 = vsel %vm1194, %v1196, %v1192
    %v1198 = vmul.f32 1.0, %v1197
    %v1199 = vtanh.pop %v1141
    %v1200 = vmul.f32 %v1183, %v1046
    %v1201 = vmul.f32 %v1168, %v1199
    %v1202 = vadd.f32 %v1200, %v1201
    %v1203 = vtanh.pop %v1202
    %v1204 = vmul.f32 %v1198, %v1203
    %s1205 = scalar_lea.vmem [#allocation6], 32
    %1206 = vst [vmem:[%s1205] sm:$0xff] %v1204
    %s1207 = smul.u32 5, 4
    %s1208 = smul.addr %s1207, 8
    %s1209 = scalar_lea.vmem [#allocation7], %s1208
    %v1210 = vld [vmem:[%s1209] sm:$0xff]
    %v1211 = vld [vmem:[%s1209 + $0x8] sm:$0xff]
    %v1212 = vld [vmem:[%s1209 + $0x10] sm:$0xff]
    %v1213 = vld [vmem:[%s1209 + $0x18] sm:$0xff]
    %1214 = vmatpush.msra.mxu0 %v422
    %1215 = vmatpush.msra.mxu0 %v418
    %1216 = vmatpush.msra.mxu0 %v414
    %1217 = vmatpush.msra.mxu0 %v410
    %1218 = vmatpush.msra.mxu0 %v406
    %1219 = vmatpush.msra.mxu0 %v402
    %1220 = vmatpush.msra.mxu0 %v398
    %1221 = vmatpush.msra.mxu0 %v394
    %1222 = vmatpush.msra.mxu0 %v390
    %1223 = vmatpush.msra.mxu0 %v386
    %1224 = vmatpush.msra.mxu0 %v382
    %1225 = vmatpush.msra.mxu0 %v378
    %1226 = vmatpush.msra.mxu0 %v374
    %1227 = vmatpush.msra.mxu0 %v370
    %1228 = vmatpush.msra.mxu0 %v366
    %1229 = vmatpush.msra.mxu0 %v362
    %1230 = vmatmul.f32.gmra.mxu0 %v1204
    %v1231 = vpop.f32.mrf.mxu0
    %v1232 = vadd.f32 0.0, %v1231
    %1233 = vdwg.mxu0
    %1234 = vmatpush.msra.mxu0 %v423
    %1235 = vmatpush.msra.mxu0 %v419
    %1236 = vmatpush.msra.mxu0 %v415
    %1237 = vmatpush.msra.mxu0 %v411
    %1238 = vmatpush.msra.mxu0 %v407
    %1239 = vmatpush.msra.mxu0 %v403
    %1240 = vmatpush.msra.mxu0 %v399
    %1241 = vmatpush.msra.mxu0 %v395
    %1242 = vmatpush.msra.mxu0 %v391
    %1243 = vmatpush.msra.mxu0 %v387
    %1244 = vmatpush.msra.mxu0 %v383
    %1245 = vmatpush.msra.mxu0 %v379
    %1246 = vmatpush.msra.mxu0 %v375
    %1247 = vmatpush.msra.mxu0 %v371
    %1248 = vmatpush.msra.mxu0 %v367
    %1249 = vmatpush.msra.mxu0 %v363
    %1250 = vmatmul.f32.gmra.mxu0 %v1204
    %v1251 = vpop.f32.mrf.mxu0
    %v1252 = vadd.f32 0.0, %v1251
    %1253 = vdwg.mxu0
    %1254 = vmatpush.msra.mxu0 %v424
    %1255 = vmatpush.msra.mxu0 %v420
    %1256 = vmatpush.msra.mxu0 %v416
    %1257 = vmatpush.msra.mxu0 %v412
    %1258 = vmatpush.msra.mxu0 %v408
    %1259 = vmatpush.msra.mxu0 %v404
    %1260 = vmatpush.msra.mxu0 %v400
    %1261 = vmatpush.msra.mxu0 %v396
    %1262 = vmatpush.msra.mxu0 %v392
    %1263 = vmatpush.msra.mxu0 %v388
    %1264 = vmatpush.msra.mxu0 %v384
    %1265 = vmatpush.msra.mxu0 %v380
    %1266 = vmatpush.msra.mxu0 %v376
    %1267 = vmatpush.msra.mxu0 %v372
    %1268 = vmatpush.msra.mxu0 %v368
    %1269 = vmatpush.msra.mxu0 %v364
    %1270 = vmatmul.f32.gmra.mxu0 %v1204
    %v1271 = vpop.f32.mrf.mxu0
    %v1272 = vadd.f32 0.0, %v1271
    %1273 = vdwg.mxu0
    %1274 = vmatpush.msra.mxu0 %v425
    %1275 = vmatpush.msra.mxu0 %v421
    %1276 = vmatpush.msra.mxu0 %v417
    %1277 = vmatpush.msra.mxu0 %v413
    %1278 = vmatpush.msra.mxu0 %v409
    %1279 = vmatpush.msra.mxu0 %v405
    %1280 = vmatpush.msra.mxu0 %v401
    %1281 = vmatpush.msra.mxu0 %v397
    %1282 = vmatpush.msra.mxu0 %v393
    %1283 = vmatpush.msra.mxu0 %v389
    %1284 = vmatpush.msra.mxu0 %v385
    %1285 = vmatpush.msra.mxu0 %v381
    %1286 = vmatpush.msra.mxu0 %v377
    %1287 = vmatpush.msra.mxu0 %v373
    %1288 = vmatpush.msra.mxu0 %v369
    %1289 = vmatpush.msra.mxu0 %v365
    %1290 = vmatmul.f32.gmra.mxu0 %v1204
    %v1291 = vpop.f32.mrf.mxu0
    %v1292 = vadd.f32 0.0, %v1291
    %1293 = vdwg.mxu0
    %v1294 = vadd.f32 %v1210, %v1232
    %v1295 = vadd.f32 %v1211, %v1252
    %v1296 = vadd.f32 %v1212, %v1272
    %v1297 = vadd.f32 %v1213, %v1292
    %v1298 = vxor.u32 %v1294, 2147483648
    %v1299 = vxor.u32 %v1295, 2147483648
    %v1300 = vxor.u32 %v1296, 2147483648
    %v1301 = vmul.f32 %v1298, 1.442695
    %v1302 = vpow.pop %v1301
    %v1303 = vmul.f32 %v1299, 1.442695
    %v1304 = vpow.pop %v1303
    %v1305 = vmul.f32 %v1300, 1.442695
    %v1306 = vpow.pop %v1305
    %v1307 = vadd.f32 %v1302, 1.0
    %v1308 = vadd.f32 %v1304, 1.0
    %v1309 = vadd.f32 %v1306, 1.0
    %v1310 = vrcp.pop %v1307
    %v1311 = vmul.f32 %v1307, %v1310
    %v1312 = vsub.f32 1.0, %v1311
    %v1313 = vmul.f32 %v1310, %v1312
    %v1314 = vadd.f32 %v1310, %v1313
    %vm1315 = vweird.f32 %v1307
    %vm1316 = vweird.f32 %v1310
    %vm1317 = vmor %vm1315, %vm1316
    %v1318 = vsel %vm1317, %v1310, %v1314
    %v1319 = vand.u32 2147483647, %v1307
    %vm1320 = vcmp.eq.f32.partialorder %v1319, 8.507059e+37
    %v1321 = vand.u32 %v1307, 2147483648
    %v1322 = vor.u32 1.1754944e-38, %v1321
    %v1323 = vsel %vm1320, %v1322, %v1318
    %v1324 = vmul.f32 1.0, %v1323
    %v1325 = vrcp.pop %v1308
    %v1326 = vmul.f32 %v1308, %v1325
    %v1327 = vsub.f32 1.0, %v1326
    %v1328 = vmul.f32 %v1325, %v1327
    %v1329 = vadd.f32 %v1325, %v1328
    %vm1330 = vweird.f32 %v1308
    %vm1331 = vweird.f32 %v1325
    %vm1332 = vmor %vm1330, %vm1331
    %v1333 = vsel %vm1332, %v1325, %v1329
    %v1334 = vand.u32 2147483647, %v1308
    %vm1335 = vcmp.eq.f32.partialorder %v1334, 8.507059e+37
    %v1336 = vand.u32 %v1308, 2147483648
    %v1337 = vor.u32 1.1754944e-38, %v1336
    %v1338 = vsel %vm1335, %v1337, %v1333
    %v1339 = vmul.f32 1.0, %v1338
    %v1340 = vrcp.pop %v1309
    %v1341 = vmul.f32 %v1309, %v1340
    %v1342 = vsub.f32 1.0, %v1341
    %v1343 = vmul.f32 %v1340, %v1342
    %v1344 = vadd.f32 %v1340, %v1343
    %vm1345 = vweird.f32 %v1309
    %vm1346 = vweird.f32 %v1340
    %vm1347 = vmor %vm1345, %vm1346
    %v1348 = vsel %vm1347, %v1340, %v1344
    %v1349 = vand.u32 2147483647, %v1309
    %vm1350 = vcmp.eq.f32.partialorder %v1349, 8.507059e+37
    %v1351 = vand.u32 %v1309, 2147483648
    %v1352 = vor.u32 1.1754944e-38, %v1351
    %v1353 = vsel %vm1350, %v1352, %v1348
    %v1354 = vmul.f32 1.0, %v1353
    %v1355 = vtanh.pop %v1297
    %v1356 = vmul.f32 %v1339, %v1202
    %v1357 = vmul.f32 %v1324, %v1355
    %v1358 = vadd.f32 %v1356, %v1357
    %v1359 = vtanh.pop %v1358
    %v1360 = vmul.f32 %v1354, %v1359
    %s1361 = scalar_lea.vmem [#allocation6], 40
    %1362 = vst [vmem:[%s1361] sm:$0xff] %v1360
    %s1363 = smul.u32 6, 4
    %s1364 = smul.addr %s1363, 8
    %s1365 = scalar_lea.vmem [#allocation7], %s1364
    %v1366 = vld [vmem:[%s1365] sm:$0xff]
    %v1367 = vld [vmem:[%s1365 + $0x8] sm:$0xff]
    %v1368 = vld [vmem:[%s1365 + $0x10] sm:$0xff]
    %v1369 = vld [vmem:[%s1365 + $0x18] sm:$0xff]
    %1370 = vmatpush.msra.mxu0 %v422
    %1371 = vmatpush.msra.mxu0 %v418
    %1372 = vmatpush.msra.mxu0 %v414
    %1373 = vmatpush.msra.mxu0 %v410
    %1374 = vmatpush.msra.mxu0 %v406
    %1375 = vmatpush.msra.mxu0 %v402
    %1376 = vmatpush.msra.mxu0 %v398
    %1377 = vmatpush.msra.mxu0 %v394
    %1378 = vmatpush.msra.mxu0 %v390
    %1379 = vmatpush.msra.mxu0 %v386
    %1380 = vmatpush.msra.mxu0 %v382
    %1381 = vmatpush.msra.mxu0 %v378
    %1382 = vmatpush.msra.mxu0 %v374
    %1383 = vmatpush.msra.mxu0 %v370
    %1384 = vmatpush.msra.mxu0 %v366
    %1385 = vmatpush.msra.mxu0 %v362
    %1386 = vmatmul.f32.gmra.mxu0 %v1360
    %v1387 = vpop.f32.mrf.mxu0
    %v1388 = vadd.f32 0.0, %v1387
    %1389 = vdwg.mxu0
    %1390 = vmatpush.msra.mxu0 %v423
    %1391 = vmatpush.msra.mxu0 %v419
    %1392 = vmatpush.msra.mxu0 %v415
    %1393 = vmatpush.msra.mxu0 %v411
    %1394 = vmatpush.msra.mxu0 %v407
    %1395 = vmatpush.msra.mxu0 %v403
    %1396 = vmatpush.msra.mxu0 %v399
    %1397 = vmatpush.msra.mxu0 %v395
    %1398 = vmatpush.msra.mxu0 %v391
    %1399 = vmatpush.msra.mxu0 %v387
    %1400 = vmatpush.msra.mxu0 %v383
    %1401 = vmatpush.msra.mxu0 %v379
    %1402 = vmatpush.msra.mxu0 %v375
    %1403 = vmatpush.msra.mxu0 %v371
    %1404 = vmatpush.msra.mxu0 %v367
    %1405 = vmatpush.msra.mxu0 %v363
    %1406 = vmatmul.f32.gmra.mxu0 %v1360
    %v1407 = vpop.f32.mrf.mxu0
    %v1408 = vadd.f32 0.0, %v1407
    %1409 = vdwg.mxu0
    %1410 = vmatpush.msra.mxu0 %v424
    %1411 = vmatpush.msra.mxu0 %v420
    %1412 = vmatpush.msra.mxu0 %v416
    %1413 = vmatpush.msra.mxu0 %v412
    %1414 = vmatpush.msra.mxu0 %v408
    %1415 = vmatpush.msra.mxu0 %v404
    %1416 = vmatpush.msra.mxu0 %v400
    %1417 = vmatpush.msra.mxu0 %v396
    %1418 = vmatpush.msra.mxu0 %v392
    %1419 = vmatpush.msra.mxu0 %v388
    %1420 = vmatpush.msra.mxu0 %v384
    %1421 = vmatpush.msra.mxu0 %v380
    %1422 = vmatpush.msra.mxu0 %v376
    %1423 = vmatpush.msra.mxu0 %v372
    %1424 = vmatpush.msra.mxu0 %v368
    %1425 = vmatpush.msra.mxu0 %v364
    %1426 = vmatmul.f32.gmra.mxu0 %v1360
    %v1427 = vpop.f32.mrf.mxu0
    %v1428 = vadd.f32 0.0, %v1427
    %1429 = vdwg.mxu0
    %1430 = vmatpush.msra.mxu0 %v425
    %1431 = vmatpush.msra.mxu0 %v421
    %1432 = vmatpush.msra.mxu0 %v417
    %1433 = vmatpush.msra.mxu0 %v413
    %1434 = vmatpush.msra.mxu0 %v409
    %1435 = vmatpush.msra.mxu0 %v405
    %1436 = vmatpush.msra.mxu0 %v401
    %1437 = vmatpush.msra.mxu0 %v397
    %1438 = vmatpush.msra.mxu0 %v393
    %1439 = vmatpush.msra.mxu0 %v389
    %1440 = vmatpush.msra.mxu0 %v385
    %1441 = vmatpush.msra.mxu0 %v381
    %1442 = vmatpush.msra.mxu0 %v377
    %1443 = vmatpush.msra.mxu0 %v373
    %1444 = vmatpush.msra.mxu0 %v369
    %1445 = vmatpush.msra.mxu0 %v365
    %1446 = vmatmul.f32.gmra.mxu0 %v1360
    %v1447 = vpop.f32.mrf.mxu0
    %v1448 = vadd.f32 0.0, %v1447
    %1449 = vdwg.mxu0
    %v1450 = vadd.f32 %v1366, %v1388
    %v1451 = vadd.f32 %v1367, %v1408
    %v1452 = vadd.f32 %v1368, %v1428
    %v1453 = vadd.f32 %v1369, %v1448
    %v1454 = vxor.u32 %v1450, 2147483648
    %v1455 = vxor.u32 %v1451, 2147483648
    %v1456 = vxor.u32 %v1452, 2147483648
    %v1457 = vmul.f32 %v1454, 1.442695
    %v1458 = vpow.pop %v1457
    %v1459 = vmul.f32 %v1455, 1.442695
    %v1460 = vpow.pop %v1459
    %v1461 = vmul.f32 %v1456, 1.442695
    %v1462 = vpow.pop %v1461
    %v1463 = vadd.f32 %v1458, 1.0
    %v1464 = vadd.f32 %v1460, 1.0
    %v1465 = vadd.f32 %v1462, 1.0
    %v1466 = vrcp.pop %v1463
    %v1467 = vmul.f32 %v1463, %v1466
    %v1468 = vsub.f32 1.0, %v1467
    %v1469 = vmul.f32 %v1466, %v1468
    %v1470 = vadd.f32 %v1466, %v1469
    %vm1471 = vweird.f32 %v1463
    %vm1472 = vweird.f32 %v1466
    %vm1473 = vmor %vm1471, %vm1472
    %v1474 = vsel %vm1473, %v1466, %v1470
    %v1475 = vand.u32 2147483647, %v1463
    %vm1476 = vcmp.eq.f32.partialorder %v1475, 8.507059e+37
    %v1477 = vand.u32 %v1463, 2147483648
    %v1478 = vor.u32 1.1754944e-38, %v1477
    %v1479 = vsel %vm1476, %v1478, %v1474
    %v1480 = vmul.f32 1.0, %v1479
    %v1481 = vrcp.pop %v1464
    %v1482 = vmul.f32 %v1464, %v1481
    %v1483 = vsub.f32 1.0, %v1482
    %v1484 = vmul.f32 %v1481, %v1483
    %v1485 = vadd.f32 %v1481, %v1484
    %vm1486 = vweird.f32 %v1464
    %vm1487 = vweird.f32 %v1481
    %vm1488 = vmor %vm1486, %vm1487
    %v1489 = vsel %vm1488, %v1481, %v1485
    %v1490 = vand.u32 2147483647, %v1464
    %vm1491 = vcmp.eq.f32.partialorder %v1490, 8.507059e+37
    %v1492 = vand.u32 %v1464, 2147483648
    %v1493 = vor.u32 1.1754944e-38, %v1492
    %v1494 = vsel %vm1491, %v1493, %v1489
    %v1495 = vmul.f32 1.0, %v1494
    %v1496 = vrcp.pop %v1465
    %v1497 = vmul.f32 %v1465, %v1496
    %v1498 = vsub.f32 1.0, %v1497
    %v1499 = vmul.f32 %v1496, %v1498
    %v1500 = vadd.f32 %v1496, %v1499
    %vm1501 = vweird.f32 %v1465
    %vm1502 = vweird.f32 %v1496
    %vm1503 = vmor %vm1501, %vm1502
    %v1504 = vsel %vm1503, %v1496, %v1500
    %v1505 = vand.u32 2147483647, %v1465
    %vm1506 = vcmp.eq.f32.partialorder %v1505, 8.507059e+37
    %v1507 = vand.u32 %v1465, 2147483648
    %v1508 = vor.u32 1.1754944e-38, %v1507
    %v1509 = vsel %vm1506, %v1508, %v1504
    %v1510 = vmul.f32 1.0, %v1509
    %v1511 = vtanh.pop %v1453
    %v1512 = vmul.f32 %v1495, %v1358
    %v1513 = vmul.f32 %v1480, %v1511
    %v1514 = vadd.f32 %v1512, %v1513
    %v1515 = vtanh.pop %v1514
    %v1516 = vmul.f32 %v1510, %v1515
    %s1517 = scalar_lea.vmem [#allocation6], 48
    %1518 = vst [vmem:[%s1517] sm:$0xff] %v1516
    %s1519 = smul.u32 7, 4
    %s1520 = smul.addr %s1519, 8
    %s1521 = scalar_lea.vmem [#allocation7], %s1520
    %v1522 = vld [vmem:[%s1521] sm:$0xff]
    %v1523 = vld [vmem:[%s1521 + $0x8] sm:$0xff]
    %v1524 = vld [vmem:[%s1521 + $0x10] sm:$0xff]
    %v1525 = vld [vmem:[%s1521 + $0x18] sm:$0xff]
    %1526 = vmatpush.msra.mxu0 %v422
    %1527 = vmatpush.msra.mxu0 %v418
    %1528 = vmatpush.msra.mxu0 %v414
    %1529 = vmatpush.msra.mxu0 %v410
    %1530 = vmatpush.msra.mxu0 %v406
    %1531 = vmatpush.msra.mxu0 %v402
    %1532 = vmatpush.msra.mxu0 %v398
    %1533 = vmatpush.msra.mxu0 %v394
    %1534 = vmatpush.msra.mxu0 %v390
    %1535 = vmatpush.msra.mxu0 %v386
    %1536 = vmatpush.msra.mxu0 %v382
    %1537 = vmatpush.msra.mxu0 %v378
    %1538 = vmatpush.msra.mxu0 %v374
    %1539 = vmatpush.msra.mxu0 %v370
    %1540 = vmatpush.msra.mxu0 %v366
    %1541 = vmatpush.msra.mxu0 %v362
    %1542 = vmatmul.f32.gmra.mxu0 %v1516
    %v1543 = vpop.f32.mrf.mxu0
    %v1544 = vadd.f32 0.0, %v1543
    %1545 = vdwg.mxu0
    %1546 = vmatpush.msra.mxu0 %v423
    %1547 = vmatpush.msra.mxu0 %v419
    %1548 = vmatpush.msra.mxu0 %v415
    %1549 = vmatpush.msra.mxu0 %v411
    %1550 = vmatpush.msra.mxu0 %v407
    %1551 = vmatpush.msra.mxu0 %v403
    %1552 = vmatpush.msra.mxu0 %v399
    %1553 = vmatpush.msra.mxu0 %v395
    %1554 = vmatpush.msra.mxu0 %v391
    %1555 = vmatpush.msra.mxu0 %v387
    %1556 = vmatpush.msra.mxu0 %v383
    %1557 = vmatpush.msra.mxu0 %v379
    %1558 = vmatpush.msra.mxu0 %v375
    %1559 = vmatpush.msra.mxu0 %v371
    %1560 = vmatpush.msra.mxu0 %v367
    %1561 = vmatpush.msra.mxu0 %v363
    %1562 = vmatmul.f32.gmra.mxu0 %v1516
    %v1563 = vpop.f32.mrf.mxu0
    %v1564 = vadd.f32 0.0, %v1563
    %1565 = vdwg.mxu0
    %1566 = vmatpush.msra.mxu0 %v424
    %1567 = vmatpush.msra.mxu0 %v420
    %1568 = vmatpush.msra.mxu0 %v416
    %1569 = vmatpush.msra.mxu0 %v412
    %1570 = vmatpush.msra.mxu0 %v408
    %1571 = vmatpush.msra.mxu0 %v404
    %1572 = vmatpush.msra.mxu0 %v400
    %1573 = vmatpush.msra.mxu0 %v396
    %1574 = vmatpush.msra.mxu0 %v392
    %1575 = vmatpush.msra.mxu0 %v388
    %1576 = vmatpush.msra.mxu0 %v384
    %1577 = vmatpush.msra.mxu0 %v380
    %1578 = vmatpush.msra.mxu0 %v376
    %1579 = vmatpush.msra.mxu0 %v372
    %1580 = vmatpush.msra.mxu0 %v368
    %1581 = vmatpush.msra.mxu0 %v364
    %1582 = vmatmul.f32.gmra.mxu0 %v1516
    %v1583 = vpop.f32.mrf.mxu0
    %v1584 = vadd.f32 0.0, %v1583
    %1585 = vdwg.mxu0
    %1586 = vmatpush.msra.mxu0 %v425
    %1587 = vmatpush.msra.mxu0 %v421
    %1588 = vmatpush.msra.mxu0 %v417
    %1589 = vmatpush.msra.mxu0 %v413
    %1590 = vmatpush.msra.mxu0 %v409
    %1591 = vmatpush.msra.mxu0 %v405
    %1592 = vmatpush.msra.mxu0 %v401
    %1593 = vmatpush.msra.mxu0 %v397
    %1594 = vmatpush.msra.mxu0 %v393
    %1595 = vmatpush.msra.mxu0 %v389
    %1596 = vmatpush.msra.mxu0 %v385
    %1597 = vmatpush.msra.mxu0 %v381
    %1598 = vmatpush.msra.mxu0 %v377
    %1599 = vmatpush.msra.mxu0 %v373
    %1600 = vmatpush.msra.mxu0 %v369
    %1601 = vmatpush.msra.mxu0 %v365
    %1602 = vmatmul.f32.gmra.mxu0 %v1516
    %v1603 = vpop.f32.mrf.mxu0
    %v1604 = vadd.f32 0.0, %v1603
    %1605 = vdwg.mxu0
    %v1606 = vadd.f32 %v1522, %v1544
    %v1607 = vadd.f32 %v1523, %v1564
    %v1608 = vadd.f32 %v1524, %v1584
    %v1609 = vadd.f32 %v1525, %v1604
    %v1610 = vxor.u32 %v1606, 2147483648
    %v1611 = vxor.u32 %v1607, 2147483648
    %v1612 = vxor.u32 %v1608, 2147483648
    %v1613 = vmul.f32 %v1610, 1.442695
    %v1614 = vpow.pop %v1613
    %v1615 = vmul.f32 %v1611, 1.442695
    %v1616 = vpow.pop %v1615
    %v1617 = vmul.f32 %v1612, 1.442695
    %v1618 = vpow.pop %v1617
    %v1619 = vadd.f32 %v1614, 1.0
    %v1620 = vadd.f32 %v1616, 1.0
    %v1621 = vadd.f32 %v1618, 1.0
    %v1622 = vrcp.pop %v1619
    %v1623 = vmul.f32 %v1619, %v1622
    %v1624 = vsub.f32 1.0, %v1623
    %v1625 = vmul.f32 %v1622, %v1624
    %v1626 = vadd.f32 %v1622, %v1625
    %vm1627 = vweird.f32 %v1619
    %vm1628 = vweird.f32 %v1622
    %vm1629 = vmor %vm1627, %vm1628
    %v1630 = vsel %vm1629, %v1622, %v1626
    %v1631 = vand.u32 2147483647, %v1619
    %vm1632 = vcmp.eq.f32.partialorder %v1631, 8.507059e+37
    %v1633 = vand.u32 %v1619, 2147483648
    %v1634 = vor.u32 1.1754944e-38, %v1633
    %v1635 = vsel %vm1632, %v1634, %v1630
    %v1636 = vmul.f32 1.0, %v1635
    %v1637 = vrcp.pop %v1620
    %v1638 = vmul.f32 %v1620, %v1637
    %v1639 = vsub.f32 1.0, %v1638
    %v1640 = vmul.f32 %v1637, %v1639
    %v1641 = vadd.f32 %v1637, %v1640
    %vm1642 = vweird.f32 %v1620
    %vm1643 = vweird.f32 %v1637
    %vm1644 = vmor %vm1642, %vm1643
    %v1645 = vsel %vm1644, %v1637, %v1641
    %v1646 = vand.u32 2147483647, %v1620
    %vm1647 = vcmp.eq.f32.partialorder %v1646, 8.507059e+37
    %v1648 = vand.u32 %v1620, 2147483648
    %v1649 = vor.u32 1.1754944e-38, %v1648
    %v1650 = vsel %vm1647, %v1649, %v1645
    %v1651 = vmul.f32 1.0, %v1650
    %v1652 = vrcp.pop %v1621
    %v1653 = vmul.f32 %v1621, %v1652
    %v1654 = vsub.f32 1.0, %v1653
    %v1655 = vmul.f32 %v1652, %v1654
    %v1656 = vadd.f32 %v1652, %v1655
    %vm1657 = vweird.f32 %v1621
    %vm1658 = vweird.f32 %v1652
    %vm1659 = vmor %vm1657, %vm1658
    %v1660 = vsel %vm1659, %v1652, %v1656
    %v1661 = vand.u32 2147483647, %v1621
    %vm1662 = vcmp.eq.f32.partialorder %v1661, 8.507059e+37
    %v1663 = vand.u32 %v1621, 2147483648
    %v1664 = vor.u32 1.1754944e-38, %v1663
    %v1665 = vsel %vm1662, %v1664, %v1660
    %v1666 = vmul.f32 1.0, %v1665
    %v1667 = vtanh.pop %v1609
    %v1668 = vmul.f32 %v1651, %v1514
    %v1669 = vmul.f32 %v1636, %v1667
    %v1670 = vadd.f32 %v1668, %v1669
    %v1671 = vtanh.pop %v1670
    %v1672 = vmul.f32 %v1666, %v1671
    %s1673 = scalar_lea.vmem [#allocation6], 56
    %1674 = vst [vmem:[%s1673] sm:$0xff] %v1672
    %1675 = vst [vmem:[#allocation2] sm:$0xff] %v1672
    %1676 = vst [vmem:[#allocation3] sm:$0xff] %v1670
    %v1677 = vld [vmem:[#allocation6] sm:$0xff]
    %v1678 = vld [vmem:[#allocation6 + $0x8] sm:$0xff]
    %v1679 = vld [vmem:[#allocation6 + $0x10] sm:$0xff]
    %v1680 = vld [vmem:[#allocation6 + $0x18] sm:$0xff]
    %v1681 = vld [vmem:[#allocation6 + $0x20] sm:$0xff]
    %v1682 = vld [vmem:[#allocation6 + $0x28] sm:$0xff]
    %v1683 = vld [vmem:[#allocation6 + $0x30] sm:$0xff]
    %v1684 = vld [vmem:[#allocation6 + $0x38] sm:$0xff]
    %v1685 = vld [vmem:[#allocation10] sm:$0xff]
    %v1686 = vld [vmem:[#allocation10 + $0x8] sm:$0xff]
    %v1687 = vld [vmem:[#allocation10 + $0x10] sm:$0xff]
    %v1688 = vld [vmem:[#allocation10 + $0x18] sm:$0xff]
    %v1689 = vld [vmem:[#allocation10 + $0x20] sm:$0xff]
    %v1690 = vld [vmem:[#allocation10 + $0x28] sm:$0xff]
    %v1691 = vld [vmem:[#allocation10 + $0x30] sm:$0xff]
    %v1692 = vld [vmem:[#allocation10 + $0x38] sm:$0xff]
    %v1693 = vld [vmem:[#allocation10 + $0x40] sm:$0xff]
    %v1694 = vld [vmem:[#allocation10 + $0x48] sm:$0xff]
    %v1695 = vld [vmem:[#allocation10 + $0x50] sm:$0xff]
    %v1696 = vld [vmem:[#allocation10 + $0x58] sm:$0xff]
    %v1697 = vld [vmem:[#allocation10 + $0x60] sm:$0xff]
    %v1698 = vld [vmem:[#allocation10 + $0x68] sm:$0xff]
    %v1699 = vld [vmem:[#allocation10 + $0x70] sm:$0xff]
    %v1700 = vld [vmem:[#allocation10 + $0x78] sm:$0xff]
    %v1701 = vld [vmem:[#allocation10 + $0x80] sm:$0xff]
    %v1702 = vld [vmem:[#allocation10 + $0x88] sm:$0xff]
    %v1703 = vld [vmem:[#allocation10 + $0x90] sm:$0xff]
    %v1704 = vld [vmem:[#allocation10 + $0x98] sm:$0xff]
    %v1705 = vld [vmem:[#allocation10 + $0xa0] sm:$0xff]
    %v1706 = vld [vmem:[#allocation10 + $0xa8] sm:$0xff]
    %v1707 = vld [vmem:[#allocation10 + $0xb0] sm:$0xff]
    %v1708 = vld [vmem:[#allocation10 + $0xb8] sm:$0xff]
    %v1709 = vld [vmem:[#allocation10 + $0xc0] sm:$0xff]
    %v1710 = vld [vmem:[#allocation10 + $0xc8] sm:$0xff]
    %v1711 = vld [vmem:[#allocation10 + $0xd0] sm:$0xff]
    %v1712 = vld [vmem:[#allocation10 + $0xd8] sm:$0xff]
    %v1713 = vld [vmem:[#allocation10 + $0xe0] sm:$0xff]
    %v1714 = vld [vmem:[#allocation10 + $0xe8] sm:$0xff]
    %v1715 = vld [vmem:[#allocation10 + $0xf0] sm:$0xff]
    %v1716 = vld [vmem:[#allocation10 + $0xf8] sm:$0xff]
    %v1717 = vld [vmem:[#allocation10 + $0x100] sm:$0xff]
    %v1718 = vld [vmem:[#allocation10 + $0x108] sm:$0xff]
    %v1719 = vld [vmem:[#allocation10 + $0x110] sm:$0xff]
    %v1720 = vld [vmem:[#allocation10 + $0x118] sm:$0xff]
    %v1721 = vld [vmem:[#allocation10 + $0x120] sm:$0xff]
    %v1722 = vld [vmem:[#allocation10 + $0x128] sm:$0xff]
    %v1723 = vld [vmem:[#allocation10 + $0x130] sm:$0xff]
    %v1724 = vld [vmem:[#allocation10 + $0x138] sm:$0xff]
    %v1725 = vld [vmem:[#allocation10 + $0x140] sm:$0xff]
    %v1726 = vld [vmem:[#allocation10 + $0x148] sm:$0xff]
    %v1727 = vld [vmem:[#allocation10 + $0x150] sm:$0xff]
    %v1728 = vld [vmem:[#allocation10 + $0x158] sm:$0xff]
    %v1729 = vld [vmem:[#allocation10 + $0x160] sm:$0xff]
    %v1730 = vld [vmem:[#allocation10 + $0x168] sm:$0xff]
    %v1731 = vld [vmem:[#allocation10 + $0x170] sm:$0xff]
    %v1732 = vld [vmem:[#allocation10 + $0x178] sm:$0xff]
    %v1733 = vld [vmem:[#allocation10 + $0x180] sm:$0xff]
    %v1734 = vld [vmem:[#allocation10 + $0x188] sm:$0xff]
    %v1735 = vld [vmem:[#allocation10 + $0x190] sm:$0xff]
    %v1736 = vld [vmem:[#allocation10 + $0x198] sm:$0xff]
    %v1737 = vld [vmem:[#allocation10 + $0x1a0] sm:$0xff]
    %v1738 = vld [vmem:[#allocation10 + $0x1a8] sm:$0xff]
    %v1739 = vld [vmem:[#allocation10 + $0x1b0] sm:$0xff]
    %v1740 = vld [vmem:[#allocation10 + $0x1b8] sm:$0xff]
    %v1741 = vld [vmem:[#allocation10 + $0x1c0] sm:$0xff]
    %v1742 = vld [vmem:[#allocation10 + $0x1c8] sm:$0xff]
    %v1743 = vld [vmem:[#allocation10 + $0x1d0] sm:$0xff]
    %v1744 = vld [vmem:[#allocation10 + $0x1d8] sm:$0xff]
    %v1745 = vld [vmem:[#allocation10 + $0x1e0] sm:$0xff]
    %v1746 = vld [vmem:[#allocation10 + $0x1e8] sm:$0xff]
    %v1747 = vld [vmem:[#allocation10 + $0x1f0] sm:$0xff]
    %v1748 = vld [vmem:[#allocation10 + $0x1f8] sm:$0xff]
    %v1749 = vld [vmem:[%s6] sm:$0xf]
    %v1751 = vperm.slane %v1749, 0
    %v1752 = vperm.slane %v1749, 1
    %v1753 = vperm.slane %v1749, 2
    %v1754 = vperm.slane %v1749, 3
    %1759 = vmatpush.msra.mxu0 %v1745
    %1760 = vmatpush.msra.mxu0 %v1741
    %1761 = vmatpush.msra.mxu0 %v1737
    %1762 = vmatpush.msra.mxu0 %v1733
    %1763 = vmatpush.msra.mxu0 %v1729
    %1764 = vmatpush.msra.mxu0 %v1725
    %1765 = vmatpush.msra.mxu0 %v1721
    %1766 = vmatpush.msra.mxu0 %v1717
    %1767 = vmatpush.msra.mxu0 %v1713
    %1768 = vmatpush.msra.mxu0 %v1709
    %1769 = vmatpush.msra.mxu0 %v1705
    %1770 = vmatpush.msra.mxu0 %v1701
    %1771 = vmatpush.msra.mxu0 %v1697
    %1772 = vmatpush.msra.mxu0 %v1693
    %1773 = vmatpush.msra.mxu0 %v1689
    %1774 = vmatpush.msra.mxu0 %v1685
    %1775 = vmatmul.f32.gmra.mxu0 %v1677
    %v1776 = vpop.f32.mrf.mxu0
    %v1777 = vadd.f32 %v1751, %v1776
    %1778 = vmatmul.f32.gmra.mxu0 %v1678
    %v1779 = vpop.f32.mrf.mxu0
    %v1780 = vadd.f32 %v1751, %v1779
    %1781 = vmatmul.f32.gmra.mxu0 %v1679
    %v1782 = vpop.f32.mrf.mxu0
    %v1783 = vadd.f32 %v1751, %v1782
    %1784 = vmatmul.f32.gmra.mxu0 %v1680
    %v1785 = vpop.f32.mrf.mxu0
    %v1786 = vadd.f32 %v1751, %v1785
    %1787 = vmatmul.f32.gmra.mxu0 %v1681
    %v1788 = vpop.f32.mrf.mxu0
    %v1789 = vadd.f32 %v1751, %v1788
    %1790 = vmatmul.f32.gmra.mxu0 %v1682
    %v1791 = vpop.f32.mrf.mxu0
    %v1792 = vadd.f32 %v1751, %v1791
    %1793 = vmatmul.f32.gmra.mxu0 %v1683
    %v1794 = vpop.f32.mrf.mxu0
    %v1795 = vadd.f32 %v1751, %v1794
    %1796 = vmatmul.f32.gmra.mxu0 %v1684
    %v1797 = vpop.f32.mrf.mxu0
    %v1798 = vadd.f32 %v1751, %v1797
    %1799 = vdwg.mxu0
    %1800 = vmatpush.msra.mxu0 %v1746
    %1801 = vmatpush.msra.mxu0 %v1742
    %1802 = vmatpush.msra.mxu0 %v1738
    %1803 = vmatpush.msra.mxu0 %v1734
    %1804 = vmatpush.msra.mxu0 %v1730
    %1805 = vmatpush.msra.mxu0 %v1726
    %1806 = vmatpush.msra.mxu0 %v1722
    %1807 = vmatpush.msra.mxu0 %v1718
    %1808 = vmatpush.msra.mxu0 %v1714
    %1809 = vmatpush.msra.mxu0 %v1710
    %1810 = vmatpush.msra.mxu0 %v1706
    %1811 = vmatpush.msra.mxu0 %v1702
    %1812 = vmatpush.msra.mxu0 %v1698
    %1813 = vmatpush.msra.mxu0 %v1694
    %1814 = vmatpush.msra.mxu0 %v1690
    %1815 = vmatpush.msra.mxu0 %v1686
    %1816 = vmatmul.f32.gmra.mxu0 %v1677
    %v1817 = vpop.f32.mrf.mxu0
    %v1818 = vadd.f32 %v1752, %v1817
    %1819 = vmatmul.f32.gmra.mxu0 %v1678
    %v1820 = vpop.f32.mrf.mxu0
    %v1821 = vadd.f32 %v1752, %v1820
    %1822 = vmatmul.f32.gmra.mxu0 %v1679
    %v1823 = vpop.f32.mrf.mxu0
    %v1824 = vadd.f32 %v1752, %v1823
    %1825 = vmatmul.f32.gmra.mxu0 %v1680
    %v1826 = vpop.f32.mrf.mxu0
    %v1827 = vadd.f32 %v1752, %v1826
    %1828 = vmatmul.f32.gmra.mxu0 %v1681
    %v1829 = vpop.f32.mrf.mxu0
    %v1830 = vadd.f32 %v1752, %v1829
    %1831 = vmatmul.f32.gmra.mxu0 %v1682
    %v1832 = vpop.f32.mrf.mxu0
    %v1833 = vadd.f32 %v1752, %v1832
    %1834 = vmatmul.f32.gmra.mxu0 %v1683
    %v1835 = vpop.f32.mrf.mxu0
    %v1836 = vadd.f32 %v1752, %v1835
    %1837 = vmatmul.f32.gmra.mxu0 %v1684
    %v1838 = vpop.f32.mrf.mxu0
    %v1839 = vadd.f32 %v1752, %v1838
    %1840 = vdwg.mxu0
    %1841 = vmatpush.msra.mxu0 %v1747
    %1842 = vmatpush.msra.mxu0 %v1743
    %1843 = vmatpush.msra.mxu0 %v1739
    %1844 = vmatpush.msra.mxu0 %v1735
    %1845 = vmatpush.msra.mxu0 %v1731
    %1846 = vmatpush.msra.mxu0 %v1727
    %1847 = vmatpush.msra.mxu0 %v1723
    %1848 = vmatpush.msra.mxu0 %v1719
    %1849 = vmatpush.msra.mxu0 %v1715
    %1850 = vmatpush.msra.mxu0 %v1711
    %1851 = vmatpush.msra.mxu0 %v1707
    %1852 = vmatpush.msra.mxu0 %v1703
    %1853 = vmatpush.msra.mxu0 %v1699
    %1854 = vmatpush.msra.mxu0 %v1695
    %1855 = vmatpush.msra.mxu0 %v1691
    %1856 = vmatpush.msra.mxu0 %v1687
    %1857 = vmatmul.f32.gmra.mxu0 %v1677
    %v1858 = vpop.f32.mrf.mxu0
    %v1859 = vadd.f32 %v1753, %v1858
    %1860 = vmatmul.f32.gmra.mxu0 %v1678
    %v1861 = vpop.f32.mrf.mxu0
    %v1862 = vadd.f32 %v1753, %v1861
    %1863 = vmatmul.f32.gmra.mxu0 %v1679
    %v1864 = vpop.f32.mrf.mxu0
    %v1865 = vadd.f32 %v1753, %v1864
    %1866 = vmatmul.f32.gmra.mxu0 %v1680
    %v1867 = vpop.f32.mrf.mxu0
    %v1868 = vadd.f32 %v1753, %v1867
    %1869 = vmatmul.f32.gmra.mxu0 %v1681
    %v1870 = vpop.f32.mrf.mxu0
    %v1871 = vadd.f32 %v1753, %v1870
    %1872 = vmatmul.f32.gmra.mxu0 %v1682
    %v1873 = vpop.f32.mrf.mxu0
    %v1874 = vadd.f32 %v1753, %v1873
    %1875 = vmatmul.f32.gmra.mxu0 %v1683
    %v1876 = vpop.f32.mrf.mxu0
    %v1877 = vadd.f32 %v1753, %v1876
    %1878 = vmatmul.f32.gmra.mxu0 %v1684
    %v1879 = vpop.f32.mrf.mxu0
    %v1880 = vadd.f32 %v1753, %v1879
    %1881 = vdwg.mxu0
    %1882 = vmatpush.msra.mxu0 %v1748
    %1883 = vmatpush.msra.mxu0 %v1744
    %1884 = vmatpush.msra.mxu0 %v1740
    %1885 = vmatpush.msra.mxu0 %v1736
    %1886 = vmatpush.msra.mxu0 %v1732
    %1887 = vmatpush.msra.mxu0 %v1728
    %1888 = vmatpush.msra.mxu0 %v1724
    %1889 = vmatpush.msra.mxu0 %v1720
    %1890 = vmatpush.msra.mxu0 %v1716
    %1891 = vmatpush.msra.mxu0 %v1712
    %1892 = vmatpush.msra.mxu0 %v1708
    %1893 = vmatpush.msra.mxu0 %v1704
    %1894 = vmatpush.msra.mxu0 %v1700
    %1895 = vmatpush.msra.mxu0 %v1696
    %1896 = vmatpush.msra.mxu0 %v1692
    %1897 = vmatpush.msra.mxu0 %v1688
    %1898 = vmatmul.f32.gmra.mxu0 %v1677
    %v1899 = vpop.f32.mrf.mxu0
    %v1900 = vadd.f32 %v1754, %v1899
    %1901 = vmatmul.f32.gmra.mxu0 %v1678
    %v1902 = vpop.f32.mrf.mxu0
    %v1903 = vadd.f32 %v1754, %v1902
    %1904 = vmatmul.f32.gmra.mxu0 %v1679
    %v1905 = vpop.f32.mrf.mxu0
    %v1906 = vadd.f32 %v1754, %v1905
    %1907 = vmatmul.f32.gmra.mxu0 %v1680
    %v1908 = vpop.f32.mrf.mxu0
    %v1909 = vadd.f32 %v1754, %v1908
    %1910 = vmatmul.f32.gmra.mxu0 %v1681
    %v1911 = vpop.f32.mrf.mxu0
    %v1912 = vadd.f32 %v1754, %v1911
    %1913 = vmatmul.f32.gmra.mxu0 %v1682
    %v1914 = vpop.f32.mrf.mxu0
    %v1915 = vadd.f32 %v1754, %v1914
    %1916 = vmatmul.f32.gmra.mxu0 %v1683
    %v1917 = vpop.f32.mrf.mxu0
    %v1918 = vadd.f32 %v1754, %v1917
    %1919 = vmatmul.f32.gmra.mxu0 %v1684
    %v1920 = vpop.f32.mrf.mxu0
    %v1921 = vadd.f32 %v1754, %v1920
    %1922 = vdwg.mxu0
    %1923 = vst [vmem:[#allocation7] sm:$0xff] %v1777
    %1924 = vst [vmem:[#allocation7 + $0x8] sm:$0xff] %v1818
    %1925 = vst [vmem:[#allocation7 + $0x10] sm:$0xff] %v1859
    %1926 = vst [vmem:[#allocation7 + $0x18] sm:$0xff] %v1900
    %1927 = vst [vmem:[#allocation7 + $0x20] sm:$0xff] %v1780
    %1928 = vst [vmem:[#allocation7 + $0x28] sm:$0xff] %v1821
    %1929 = vst [vmem:[#allocation7 + $0x30] sm:$0xff] %v1862
    %1930 = vst [vmem:[#allocation7 + $0x38] sm:$0xff] %v1903
    %1931 = vst [vmem:[#allocation7 + $0x40] sm:$0xff] %v1783
    %1932 = vst [vmem:[#allocation7 + $0x48] sm:$0xff] %v1824
    %1933 = vst [vmem:[#allocation7 + $0x50] sm:$0xff] %v1865
    %1934 = vst [vmem:[#allocation7 + $0x58] sm:$0xff] %v1906
    %1935 = vst [vmem:[#allocation7 + $0x60] sm:$0xff] %v1786
    %1936 = vst [vmem:[#allocation7 + $0x68] sm:$0xff] %v1827
    %1937 = vst [vmem:[#allocation7 + $0x70] sm:$0xff] %v1868
    %1938 = vst [vmem:[#allocation7 + $0x78] sm:$0xff] %v1909
    %1939 = vst [vmem:[#allocation7 + $0x80] sm:$0xff] %v1789
    %1940 = vst [vmem:[#allocation7 + $0x88] sm:$0xff] %v1830
    %1941 = vst [vmem:[#allocation7 + $0x90] sm:$0xff] %v1871
    %1942 = vst [vmem:[#allocation7 + $0x98] sm:$0xff] %v1912
    %1943 = vst [vmem:[#allocation7 + $0xa0] sm:$0xff] %v1792
    %1944 = vst [vmem:[#allocation7 + $0xa8] sm:$0xff] %v1833
    %1945 = vst [vmem:[#allocation7 + $0xb0] sm:$0xff] %v1874
    %1946 = vst [vmem:[#allocation7 + $0xb8] sm:$0xff] %v1915
    %1947 = vst [vmem:[#allocation7 + $0xc0] sm:$0xff] %v1795
    %1948 = vst [vmem:[#allocation7 + $0xc8] sm:$0xff] %v1836
    %1949 = vst [vmem:[#allocation7 + $0xd0] sm:$0xff] %v1877
    %1950 = vst [vmem:[#allocation7 + $0xd8] sm:$0xff] %v1918
    %1951 = vst [vmem:[#allocation7 + $0xe0] sm:$0xff] %v1798
    %1952 = vst [vmem:[#allocation7 + $0xe8] sm:$0xff] %v1839
    %1953 = vst [vmem:[#allocation7 + $0xf0] sm:$0xff] %v1880
    %1954 = vst [vmem:[#allocation7 + $0xf8] sm:$0xff] %v1921
    %v1955 = vld [vmem:[#allocation12] sm:$0xff]
    %v1956 = vld [vmem:[#allocation12 + $0x8] sm:$0xff]
    %v1957 = vld [vmem:[#allocation12 + $0x10] sm:$0xff]
    %v1958 = vld [vmem:[#allocation12 + $0x18] sm:$0xff]
    %v1959 = vld [vmem:[#allocation12 + $0x20] sm:$0xff]
    %v1960 = vld [vmem:[#allocation12 + $0x28] sm:$0xff]
    %v1961 = vld [vmem:[#allocation12 + $0x30] sm:$0xff]
    %v1962 = vld [vmem:[#allocation12 + $0x38] sm:$0xff]
    %v1963 = vld [vmem:[#allocation12 + $0x40] sm:$0xff]
    %v1964 = vld [vmem:[#allocation12 + $0x48] sm:$0xff]
    %v1965 = vld [vmem:[#allocation12 + $0x50] sm:$0xff]
    %v1966 = vld [vmem:[#allocation12 + $0x58] sm:$0xff]
    %v1967 = vld [vmem:[#allocation12 + $0x60] sm:$0xff]
    %v1968 = vld [vmem:[#allocation12 + $0x68] sm:$0xff]
    %v1969 = vld [vmem:[#allocation12 + $0x70] sm:$0xff]
    %v1970 = vld [vmem:[#allocation12 + $0x78] sm:$0xff]
    %v1971 = vld [vmem:[#allocation12 + $0x80] sm:$0xff]
    %v1972 = vld [vmem:[#allocation12 + $0x88] sm:$0xff]
    %v1973 = vld [vmem:[#allocation12 + $0x90] sm:$0xff]
    %v1974 = vld [vmem:[#allocation12 + $0x98] sm:$0xff]
    %v1975 = vld [vmem:[#allocation12 + $0xa0] sm:$0xff]
    %v1976 = vld [vmem:[#allocation12 + $0xa8] sm:$0xff]
    %v1977 = vld [vmem:[#allocation12 + $0xb0] sm:$0xff]
    %v1978 = vld [vmem:[#allocation12 + $0xb8] sm:$0xff]
    %v1979 = vld [vmem:[#allocation12 + $0xc0] sm:$0xff]
    %v1980 = vld [vmem:[#allocation12 + $0xc8] sm:$0xff]
    %v1981 = vld [vmem:[#allocation12 + $0xd0] sm:$0xff]
    %v1982 = vld [vmem:[#allocation12 + $0xd8] sm:$0xff]
    %v1983 = vld [vmem:[#allocation12 + $0xe0] sm:$0xff]
    %v1984 = vld [vmem:[#allocation12 + $0xe8] sm:$0xff]
    %v1985 = vld [vmem:[#allocation12 + $0xf0] sm:$0xff]
    %v1986 = vld [vmem:[#allocation12 + $0xf8] sm:$0xff]
    %v1987 = vld [vmem:[#allocation12 + $0x100] sm:$0xff]
    %v1988 = vld [vmem:[#allocation12 + $0x108] sm:$0xff]
    %v1989 = vld [vmem:[#allocation12 + $0x110] sm:$0xff]
    %v1990 = vld [vmem:[#allocation12 + $0x118] sm:$0xff]
    %v1991 = vld [vmem:[#allocation12 + $0x120] sm:$0xff]
    %v1992 = vld [vmem:[#allocation12 + $0x128] sm:$0xff]
    %v1993 = vld [vmem:[#allocation12 + $0x130] sm:$0xff]
    %v1994 = vld [vmem:[#allocation12 + $0x138] sm:$0xff]
    %v1995 = vld [vmem:[#allocation12 + $0x140] sm:$0xff]
    %v1996 = vld [vmem:[#allocation12 + $0x148] sm:$0xff]
    %v1997 = vld [vmem:[#allocation12 + $0x150] sm:$0xff]
    %v1998 = vld [vmem:[#allocation12 + $0x158] sm:$0xff]
    %v1999 = vld [vmem:[#allocation12 + $0x160] sm:$0xff]
    %v2000 = vld [vmem:[#allocation12 + $0x168] sm:$0xff]
    %v2001 = vld [vmem:[#allocation12 + $0x170] sm:$0xff]
    %v2002 = vld [vmem:[#allocation12 + $0x178] sm:$0xff]
    %v2003 = vld [vmem:[#allocation12 + $0x180] sm:$0xff]
    %v2004 = vld [vmem:[#allocation12 + $0x188] sm:$0xff]
    %v2005 = vld [vmem:[#allocation12 + $0x190] sm:$0xff]
    %v2006 = vld [vmem:[#allocation12 + $0x198] sm:$0xff]
    %v2007 = vld [vmem:[#allocation12 + $0x1a0] sm:$0xff]
    %v2008 = vld [vmem:[#allocation12 + $0x1a8] sm:$0xff]
    %v2009 = vld [vmem:[#allocation12 + $0x1b0] sm:$0xff]
    %v2010 = vld [vmem:[#allocation12 + $0x1b8] sm:$0xff]
    %v2011 = vld [vmem:[#allocation12 + $0x1c0] sm:$0xff]
    %v2012 = vld [vmem:[#allocation12 + $0x1c8] sm:$0xff]
    %v2013 = vld [vmem:[#allocation12 + $0x1d0] sm:$0xff]
    %v2014 = vld [vmem:[#allocation12 + $0x1d8] sm:$0xff]
    %v2015 = vld [vmem:[#allocation12 + $0x1e0] sm:$0xff]
    %v2016 = vld [vmem:[#allocation12 + $0x1e8] sm:$0xff]
    %v2017 = vld [vmem:[#allocation12 + $0x1f0] sm:$0xff]
    %v2018 = vld [vmem:[#allocation12 + $0x1f8] sm:$0xff]
    %v2019 = vld [vmem:[#allocation4] sm:$0xff]
    %v2020 = vld [vmem:[#allocation5] sm:$0xff]
    %v2021 = vld [vmem:[%s430] sm:$0xff]
    %v2022 = vld [vmem:[%s430 + $0x8] sm:$0xff]
    %v2023 = vld [vmem:[%s430 + $0x10] sm:$0xff]
    %v2024 = vld [vmem:[%s430 + $0x18] sm:$0xff]
    %2025 = vmatpush.msra.mxu0 %v2015
    %2026 = vmatpush.msra.mxu0 %v2011
    %2027 = vmatpush.msra.mxu0 %v2007
    %2028 = vmatpush.msra.mxu0 %v2003
    %2029 = vmatpush.msra.mxu0 %v1999
    %2030 = vmatpush.msra.mxu0 %v1995
    %2031 = vmatpush.msra.mxu0 %v1991
    %2032 = vmatpush.msra.mxu0 %v1987
    %2033 = vmatpush.msra.mxu0 %v1983
    %2034 = vmatpush.msra.mxu0 %v1979
    %2035 = vmatpush.msra.mxu0 %v1975
    %2036 = vmatpush.msra.mxu0 %v1971
    %2037 = vmatpush.msra.mxu0 %v1967
    %2038 = vmatpush.msra.mxu0 %v1963
    %2039 = vmatpush.msra.mxu0 %v1959
    %2040 = vmatpush.msra.mxu0 %v1955
    %2041 = vmatmul.f32.gmra.mxu0 %v2019
    %v2042 = vpop.f32.mrf.mxu0
    %v2043 = vadd.f32 0.0, %v2042
    %2044 = vdwg.mxu0
    %2045 = vmatpush.msra.mxu0 %v2016
    %2046 = vmatpush.msra.mxu0 %v2012
    %2047 = vmatpush.msra.mxu0 %v2008
    %2048 = vmatpush.msra.mxu0 %v2004
    %2049 = vmatpush.msra.mxu0 %v2000
    %2050 = vmatpush.msra.mxu0 %v1996
    %2051 = vmatpush.msra.mxu0 %v1992
    %2052 = vmatpush.msra.mxu0 %v1988
    %2053 = vmatpush.msra.mxu0 %v1984
    %2054 = vmatpush.msra.mxu0 %v1980
    %2055 = vmatpush.msra.mxu0 %v1976
    %2056 = vmatpush.msra.mxu0 %v1972
    %2057 = vmatpush.msra.mxu0 %v1968
    %2058 = vmatpush.msra.mxu0 %v1964
    %2059 = vmatpush.msra.mxu0 %v1960
    %2060 = vmatpush.msra.mxu0 %v1956
    %2061 = vmatmul.f32.gmra.mxu0 %v2019
    %v2062 = vpop.f32.mrf.mxu0
    %v2063 = vadd.f32 0.0, %v2062
    %2064 = vdwg.mxu0
    %2065 = vmatpush.msra.mxu0 %v2017
    %2066 = vmatpush.msra.mxu0 %v2013
    %2067 = vmatpush.msra.mxu0 %v2009
    %2068 = vmatpush.msra.mxu0 %v2005
    %2069 = vmatpush.msra.mxu0 %v2001
    %2070 = vmatpush.msra.mxu0 %v1997
    %2071 = vmatpush.msra.mxu0 %v1993
    %2072 = vmatpush.msra.mxu0 %v1989
    %2073 = vmatpush.msra.mxu0 %v1985
    %2074 = vmatpush.msra.mxu0 %v1981
    %2075 = vmatpush.msra.mxu0 %v1977
    %2076 = vmatpush.msra.mxu0 %v1973
    %2077 = vmatpush.msra.mxu0 %v1969
    %2078 = vmatpush.msra.mxu0 %v1965
    %2079 = vmatpush.msra.mxu0 %v1961
    %2080 = vmatpush.msra.mxu0 %v1957
    %2081 = vmatmul.f32.gmra.mxu0 %v2019
    %v2082 = vpop.f32.mrf.mxu0
    %v2083 = vadd.f32 0.0, %v2082
    %2084 = vdwg.mxu0
    %2085 = vmatpush.msra.mxu0 %v2018
    %2086 = vmatpush.msra.mxu0 %v2014
    %2087 = vmatpush.msra.mxu0 %v2010
    %2088 = vmatpush.msra.mxu0 %v2006
    %2089 = vmatpush.msra.mxu0 %v2002
    %2090 = vmatpush.msra.mxu0 %v1998
    %2091 = vmatpush.msra.mxu0 %v1994
    %2092 = vmatpush.msra.mxu0 %v1990
    %2093 = vmatpush.msra.mxu0 %v1986
    %2094 = vmatpush.msra.mxu0 %v1982
    %2095 = vmatpush.msra.mxu0 %v1978
    %2096 = vmatpush.msra.mxu0 %v1974
    %2097 = vmatpush.msra.mxu0 %v1970
    %2098 = vmatpush.msra.mxu0 %v1966
    %2099 = vmatpush.msra.mxu0 %v1962
    %2100 = vmatpush.msra.mxu0 %v1958
    %2101 = vmatmul.f32.gmra.mxu0 %v2019
    %v2102 = vpop.f32.mrf.mxu0
    %v2103 = vadd.f32 0.0, %v2102
    %2104 = vdwg.mxu0
    %v2105 = vadd.f32 %v2021, %v2043
    %v2106 = vadd.f32 %v2022, %v2063
    %v2107 = vadd.f32 %v2023, %v2083
    %v2108 = vadd.f32 %v2024, %v2103
    %v2109 = vxor.u32 %v2105, 2147483648
    %v2110 = vxor.u32 %v2106, 2147483648
    %v2111 = vxor.u32 %v2107, 2147483648
    %v2112 = vmul.f32 %v2109, 1.442695
    %v2113 = vpow.pop %v2112
    %v2114 = vmul.f32 %v2110, 1.442695
    %v2115 = vpow.pop %v2114
    %v2116 = vmul.f32 %v2111, 1.442695
    %v2117 = vpow.pop %v2116
    %v2118 = vadd.f32 %v2113, 1.0
    %v2119 = vadd.f32 %v2115, 1.0
    %v2120 = vadd.f32 %v2117, 1.0
    %v2121 = vrcp.pop %v2118
    %v2122 = vmul.f32 %v2118, %v2121
    %v2123 = vsub.f32 1.0, %v2122
    %v2124 = vmul.f32 %v2121, %v2123
    %v2125 = vadd.f32 %v2121, %v2124
    %vm2126 = vweird.f32 %v2118
    %vm2127 = vweird.f32 %v2121
    %vm2128 = vmor %vm2126, %vm2127
    %v2129 = vsel %vm2128, %v2121, %v2125
    %v2130 = vand.u32 2147483647, %v2118
    %vm2131 = vcmp.eq.f32.partialorder %v2130, 8.507059e+37
    %v2132 = vand.u32 %v2118, 2147483648
    %v2133 = vor.u32 1.1754944e-38, %v2132
    %v2134 = vsel %vm2131, %v2133, %v2129
    %v2135 = vmul.f32 1.0, %v2134
    %v2136 = vrcp.pop %v2119
    %v2137 = vmul.f32 %v2119, %v2136
    %v2138 = vsub.f32 1.0, %v2137
    %v2139 = vmul.f32 %v2136, %v2138
    %v2140 = vadd.f32 %v2136, %v2139
    %vm2141 = vweird.f32 %v2119
    %vm2142 = vweird.f32 %v2136
    %vm2143 = vmor %vm2141, %vm2142
    %v2144 = vsel %vm2143, %v2136, %v2140
    %v2145 = vand.u32 2147483647, %v2119
    %vm2146 = vcmp.eq.f32.partialorder %v2145, 8.507059e+37
    %v2147 = vand.u32 %v2119, 2147483648
    %v2148 = vor.u32 1.1754944e-38, %v2147
    %v2149 = vsel %vm2146, %v2148, %v2144
    %v2150 = vmul.f32 1.0, %v2149
    %v2151 = vrcp.pop %v2120
    %v2152 = vmul.f32 %v2120, %v2151
    %v2153 = vsub.f32 1.0, %v2152
    %v2154 = vmul.f32 %v2151, %v2153
    %v2155 = vadd.f32 %v2151, %v2154
    %vm2156 = vweird.f32 %v2120
    %vm2157 = vweird.f32 %v2151
    %vm2158 = vmor %vm2156, %vm2157
    %v2159 = vsel %vm2158, %v2151, %v2155
    %v2160 = vand.u32 2147483647, %v2120
    %vm2161 = vcmp.eq.f32.partialorder %v2160, 8.507059e+37
    %v2162 = vand.u32 %v2120, 2147483648
    %v2163 = vor.u32 1.1754944e-38, %v2162
    %v2164 = vsel %vm2161, %v2163, %v2159
    %v2165 = vmul.f32 1.0, %v2164
    %v2166 = vtanh.pop %v2108
    %v2167 = vmul.f32 %v2150, %v2020
    %v2168 = vmul.f32 %v2135, %v2166
    %v2169 = vadd.f32 %v2167, %v2168
    %v2170 = vtanh.pop %v2169
    %v2171 = vmul.f32 %v2165, %v2170
    %v2172 = vld [vmem:[%s585] sm:$0xff]
    %v2173 = vld [vmem:[%s585 + $0x8] sm:$0xff]
    %v2174 = vld [vmem:[%s585 + $0x10] sm:$0xff]
    %v2175 = vld [vmem:[%s585 + $0x18] sm:$0xff]
    %2176 = vmatpush.msra.mxu0 %v2015
    %2177 = vmatpush.msra.mxu0 %v2011
    %2178 = vmatpush.msra.mxu0 %v2007
    %2179 = vmatpush.msra.mxu0 %v2003
    %2180 = vmatpush.msra.mxu0 %v1999
    %2181 = vmatpush.msra.mxu0 %v1995
    %2182 = vmatpush.msra.mxu0 %v1991
    %2183 = vmatpush.msra.mxu0 %v1987
    %2184 = vmatpush.msra.mxu0 %v1983
    %2185 = vmatpush.msra.mxu0 %v1979
    %2186 = vmatpush.msra.mxu0 %v1975
    %2187 = vmatpush.msra.mxu0 %v1971
    %2188 = vmatpush.msra.mxu0 %v1967
    %2189 = vmatpush.msra.mxu0 %v1963
    %2190 = vmatpush.msra.mxu0 %v1959
    %2191 = vmatpush.msra.mxu0 %v1955
    %2192 = vmatmul.f32.gmra.mxu0 %v2171
    %v2193 = vpop.f32.mrf.mxu0
    %v2194 = vadd.f32 0.0, %v2193
    %2195 = vdwg.mxu0
    %2196 = vmatpush.msra.mxu0 %v2016
    %2197 = vmatpush.msra.mxu0 %v2012
    %2198 = vmatpush.msra.mxu0 %v2008
    %2199 = vmatpush.msra.mxu0 %v2004
    %2200 = vmatpush.msra.mxu0 %v2000
    %2201 = vmatpush.msra.mxu0 %v1996
    %2202 = vmatpush.msra.mxu0 %v1992
    %2203 = vmatpush.msra.mxu0 %v1988
    %2204 = vmatpush.msra.mxu0 %v1984
    %2205 = vmatpush.msra.mxu0 %v1980
    %2206 = vmatpush.msra.mxu0 %v1976
    %2207 = vmatpush.msra.mxu0 %v1972
    %2208 = vmatpush.msra.mxu0 %v1968
    %2209 = vmatpush.msra.mxu0 %v1964
    %2210 = vmatpush.msra.mxu0 %v1960
    %2211 = vmatpush.msra.mxu0 %v1956
    %2212 = vmatmul.f32.gmra.mxu0 %v2171
    %v2213 = vpop.f32.mrf.mxu0
    %v2214 = vadd.f32 0.0, %v2213
    %2215 = vdwg.mxu0
    %2216 = vmatpush.msra.mxu0 %v2017
    %2217 = vmatpush.msra.mxu0 %v2013
    %2218 = vmatpush.msra.mxu0 %v2009
    %2219 = vmatpush.msra.mxu0 %v2005
    %2220 = vmatpush.msra.mxu0 %v2001
    %2221 = vmatpush.msra.mxu0 %v1997
    %2222 = vmatpush.msra.mxu0 %v1993
    %2223 = vmatpush.msra.mxu0 %v1989
    %2224 = vmatpush.msra.mxu0 %v1985
    %2225 = vmatpush.msra.mxu0 %v1981
    %2226 = vmatpush.msra.mxu0 %v1977
    %2227 = vmatpush.msra.mxu0 %v1973
    %2228 = vmatpush.msra.mxu0 %v1969
    %2229 = vmatpush.msra.mxu0 %v1965
    %2230 = vmatpush.msra.mxu0 %v1961
    %2231 = vmatpush.msra.mxu0 %v1957
    %2232 = vmatmul.f32.gmra.mxu0 %v2171
    %v2233 = vpop.f32.mrf.mxu0
    %v2234 = vadd.f32 0.0, %v2233
    %2235 = vdwg.mxu0
    %2236 = vmatpush.msra.mxu0 %v2018
    %2237 = vmatpush.msra.mxu0 %v2014
    %2238 = vmatpush.msra.mxu0 %v2010
    %2239 = vmatpush.msra.mxu0 %v2006
    %2240 = vmatpush.msra.mxu0 %v2002
    %2241 = vmatpush.msra.mxu0 %v1998
    %2242 = vmatpush.msra.mxu0 %v1994
    %2243 = vmatpush.msra.mxu0 %v1990
    %2244 = vmatpush.msra.mxu0 %v1986
    %2245 = vmatpush.msra.mxu0 %v1982
    %2246 = vmatpush.msra.mxu0 %v1978
    %2247 = vmatpush.msra.mxu0 %v1974
    %2248 = vmatpush.msra.mxu0 %v1970
    %2249 = vmatpush.msra.mxu0 %v1966
    %2250 = vmatpush.msra.mxu0 %v1962
    %2251 = vmatpush.msra.mxu0 %v1958
    %2252 = vmatmul.f32.gmra.mxu0 %v2171
    %v2253 = vpop.f32.mrf.mxu0
    %v2254 = vadd.f32 0.0, %v2253
    %2255 = vdwg.mxu0
    %v2256 = vadd.f32 %v2172, %v2194
    %v2257 = vadd.f32 %v2173, %v2214
    %v2258 = vadd.f32 %v2174, %v2234
    %v2259 = vadd.f32 %v2175, %v2254
    %v2260 = vxor.u32 %v2256, 2147483648
    %v2261 = vxor.u32 %v2257, 2147483648
    %v2262 = vxor.u32 %v2258, 2147483648
    %v2263 = vmul.f32 %v2260, 1.442695
    %v2264 = vpow.pop %v2263
    %v2265 = vmul.f32 %v2261, 1.442695
    %v2266 = vpow.pop %v2265
    %v2267 = vmul.f32 %v2262, 1.442695
    %v2268 = vpow.pop %v2267
    %v2269 = vadd.f32 %v2264, 1.0
    %v2270 = vadd.f32 %v2266, 1.0
    %v2271 = vadd.f32 %v2268, 1.0
    %v2272 = vrcp.pop %v2269
    %v2273 = vmul.f32 %v2269, %v2272
    %v2274 = vsub.f32 1.0, %v2273
    %v2275 = vmul.f32 %v2272, %v2274
    %v2276 = vadd.f32 %v2272, %v2275
    %vm2277 = vweird.f32 %v2269
    %vm2278 = vweird.f32 %v2272
    %vm2279 = vmor %vm2277, %vm2278
    %v2280 = vsel %vm2279, %v2272, %v2276
    %v2281 = vand.u32 2147483647, %v2269
    %vm2282 = vcmp.eq.f32.partialorder %v2281, 8.507059e+37
    %v2283 = vand.u32 %v2269, 2147483648
    %v2284 = vor.u32 1.1754944e-38, %v2283
    %v2285 = vsel %vm2282, %v2284, %v2280
    %v2286 = vmul.f32 1.0, %v2285
    %v2287 = vrcp.pop %v2270
    %v2288 = vmul.f32 %v2270, %v2287
    %v2289 = vsub.f32 1.0, %v2288
    %v2290 = vmul.f32 %v2287, %v2289
    %v2291 = vadd.f32 %v2287, %v2290
    %vm2292 = vweird.f32 %v2270
    %vm2293 = vweird.f32 %v2287
    %vm2294 = vmor %vm2292, %vm2293
    %v2295 = vsel %vm2294, %v2287, %v2291
    %v2296 = vand.u32 2147483647, %v2270
    %vm2297 = vcmp.eq.f32.partialorder %v2296, 8.507059e+37
    %v2298 = vand.u32 %v2270, 2147483648
    %v2299 = vor.u32 1.1754944e-38, %v2298
    %v2300 = vsel %vm2297, %v2299, %v2295
    %v2301 = vmul.f32 1.0, %v2300
    %v2302 = vrcp.pop %v2271
    %v2303 = vmul.f32 %v2271, %v2302
    %v2304 = vsub.f32 1.0, %v2303
    %v2305 = vmul.f32 %v2302, %v2304
    %v2306 = vadd.f32 %v2302, %v2305
    %vm2307 = vweird.f32 %v2271
    %vm2308 = vweird.f32 %v2302
    %vm2309 = vmor %vm2307, %vm2308
    %v2310 = vsel %vm2309, %v2302, %v2306
    %v2311 = vand.u32 2147483647, %v2271
    %vm2312 = vcmp.eq.f32.partialorder %v2311, 8.507059e+37
    %v2313 = vand.u32 %v2271, 2147483648
    %v2314 = vor.u32 1.1754944e-38, %v2313
    %v2315 = vsel %vm2312, %v2314, %v2310
    %v2316 = vmul.f32 1.0, %v2315
    %v2317 = vtanh.pop %v2259
    %v2318 = vmul.f32 %v2301, %v2169
    %v2319 = vmul.f32 %v2286, %v2317
    %v2320 = vadd.f32 %v2318, %v2319
    %v2321 = vtanh.pop %v2320
    %v2322 = vmul.f32 %v2316, %v2321
    %v2323 = vld [vmem:[%s741] sm:$0xff]
    %v2324 = vld [vmem:[%s741 + $0x8] sm:$0xff]
    %v2325 = vld [vmem:[%s741 + $0x10] sm:$0xff]
    %v2326 = vld [vmem:[%s741 + $0x18] sm:$0xff]
    %2327 = vmatpush.msra.mxu0 %v2015
    %2328 = vmatpush.msra.mxu0 %v2011
    %2329 = vmatpush.msra.mxu0 %v2007
    %2330 = vmatpush.msra.mxu0 %v2003
    %2331 = vmatpush.msra.mxu0 %v1999
    %2332 = vmatpush.msra.mxu0 %v1995
    %2333 = vmatpush.msra.mxu0 %v1991
    %2334 = vmatpush.msra.mxu0 %v1987
    %2335 = vmatpush.msra.mxu0 %v1983
    %2336 = vmatpush.msra.mxu0 %v1979
    %2337 = vmatpush.msra.mxu0 %v1975
    %2338 = vmatpush.msra.mxu0 %v1971
    %2339 = vmatpush.msra.mxu0 %v1967
    %2340 = vmatpush.msra.mxu0 %v1963
    %2341 = vmatpush.msra.mxu0 %v1959
    %2342 = vmatpush.msra.mxu0 %v1955
    %2343 = vmatmul.f32.gmra.mxu0 %v2322
    %v2344 = vpop.f32.mrf.mxu0
    %v2345 = vadd.f32 0.0, %v2344
    %2346 = vdwg.mxu0
    %2347 = vmatpush.msra.mxu0 %v2016
    %2348 = vmatpush.msra.mxu0 %v2012
    %2349 = vmatpush.msra.mxu0 %v2008
    %2350 = vmatpush.msra.mxu0 %v2004
    %2351 = vmatpush.msra.mxu0 %v2000
    %2352 = vmatpush.msra.mxu0 %v1996
    %2353 = vmatpush.msra.mxu0 %v1992
    %2354 = vmatpush.msra.mxu0 %v1988
    %2355 = vmatpush.msra.mxu0 %v1984
    %2356 = vmatpush.msra.mxu0 %v1980
    %2357 = vmatpush.msra.mxu0 %v1976
    %2358 = vmatpush.msra.mxu0 %v1972
    %2359 = vmatpush.msra.mxu0 %v1968
    %2360 = vmatpush.msra.mxu0 %v1964
    %2361 = vmatpush.msra.mxu0 %v1960
    %2362 = vmatpush.msra.mxu0 %v1956
    %2363 = vmatmul.f32.gmra.mxu0 %v2322
    %v2364 = vpop.f32.mrf.mxu0
    %v2365 = vadd.f32 0.0, %v2364
    %2366 = vdwg.mxu0
    %2367 = vmatpush.msra.mxu0 %v2017
    %2368 = vmatpush.msra.mxu0 %v2013
    %2369 = vmatpush.msra.mxu0 %v2009
    %2370 = vmatpush.msra.mxu0 %v2005
    %2371 = vmatpush.msra.mxu0 %v2001
    %2372 = vmatpush.msra.mxu0 %v1997
    %2373 = vmatpush.msra.mxu0 %v1993
    %2374 = vmatpush.msra.mxu0 %v1989
    %2375 = vmatpush.msra.mxu0 %v1985
    %2376 = vmatpush.msra.mxu0 %v1981
    %2377 = vmatpush.msra.mxu0 %v1977
    %2378 = vmatpush.msra.mxu0 %v1973
    %2379 = vmatpush.msra.mxu0 %v1969
    %2380 = vmatpush.msra.mxu0 %v1965
    %2381 = vmatpush.msra.mxu0 %v1961
    %2382 = vmatpush.msra.mxu0 %v1957
    %2383 = vmatmul.f32.gmra.mxu0 %v2322
    %v2384 = vpop.f32.mrf.mxu0
    %v2385 = vadd.f32 0.0, %v2384
    %2386 = vdwg.mxu0
    %2387 = vmatpush.msra.mxu0 %v2018
    %2388 = vmatpush.msra.mxu0 %v2014
    %2389 = vmatpush.msra.mxu0 %v2010
    %2390 = vmatpush.msra.mxu0 %v2006
    %2391 = vmatpush.msra.mxu0 %v2002
    %2392 = vmatpush.msra.mxu0 %v1998
    %2393 = vmatpush.msra.mxu0 %v1994
    %2394 = vmatpush.msra.mxu0 %v1990
    %2395 = vmatpush.msra.mxu0 %v1986
    %2396 = vmatpush.msra.mxu0 %v1982
    %2397 = vmatpush.msra.mxu0 %v1978
    %2398 = vmatpush.msra.mxu0 %v1974
    %2399 = vmatpush.msra.mxu0 %v1970
    %2400 = vmatpush.msra.mxu0 %v1966
    %2401 = vmatpush.msra.mxu0 %v1962
    %2402 = vmatpush.msra.mxu0 %v1958
    %2403 = vmatmul.f32.gmra.mxu0 %v2322
    %v2404 = vpop.f32.mrf.mxu0
    %v2405 = vadd.f32 0.0, %v2404
    %2406 = vdwg.mxu0
    %v2407 = vadd.f32 %v2323, %v2345
    %v2408 = vadd.f32 %v2324, %v2365
    %v2409 = vadd.f32 %v2325, %v2385
    %v2410 = vadd.f32 %v2326, %v2405
    %v2411 = vxor.u32 %v2407, 2147483648
    %v2412 = vxor.u32 %v2408, 2147483648
    %v2413 = vxor.u32 %v2409, 2147483648
    %v2414 = vmul.f32 %v2411, 1.442695
    %v2415 = vpow.pop %v2414
    %v2416 = vmul.f32 %v2412, 1.442695
    %v2417 = vpow.pop %v2416
    %v2418 = vmul.f32 %v2413, 1.442695
    %v2419 = vpow.pop %v2418
    %v2420 = vadd.f32 %v2415, 1.0
    %v2421 = vadd.f32 %v2417, 1.0
    %v2422 = vadd.f32 %v2419, 1.0
    %v2423 = vrcp.pop %v2420
    %v2424 = vmul.f32 %v2420, %v2423
    %v2425 = vsub.f32 1.0, %v2424
    %v2426 = vmul.f32 %v2423, %v2425
    %v2427 = vadd.f32 %v2423, %v2426
    %vm2428 = vweird.f32 %v2420
    %vm2429 = vweird.f32 %v2423
    %vm2430 = vmor %vm2428, %vm2429
    %v2431 = vsel %vm2430, %v2423, %v2427
    %v2432 = vand.u32 2147483647, %v2420
    %vm2433 = vcmp.eq.f32.partialorder %v2432, 8.507059e+37
    %v2434 = vand.u32 %v2420, 2147483648
    %v2435 = vor.u32 1.1754944e-38, %v2434
    %v2436 = vsel %vm2433, %v2435, %v2431
    %v2437 = vmul.f32 1.0, %v2436
    %v2438 = vrcp.pop %v2421
    %v2439 = vmul.f32 %v2421, %v2438
    %v2440 = vsub.f32 1.0, %v2439
    %v2441 = vmul.f32 %v2438, %v2440
    %v2442 = vadd.f32 %v2438, %v2441
    %vm2443 = vweird.f32 %v2421
    %vm2444 = vweird.f32 %v2438
    %vm2445 = vmor %vm2443, %vm2444
    %v2446 = vsel %vm2445, %v2438, %v2442
    %v2447 = vand.u32 2147483647, %v2421
    %vm2448 = vcmp.eq.f32.partialorder %v2447, 8.507059e+37
    %v2449 = vand.u32 %v2421, 2147483648
    %v2450 = vor.u32 1.1754944e-38, %v2449
    %v2451 = vsel %vm2448, %v2450, %v2446
    %v2452 = vmul.f32 1.0, %v2451
    %v2453 = vrcp.pop %v2422
    %v2454 = vmul.f32 %v2422, %v2453
    %v2455 = vsub.f32 1.0, %v2454
    %v2456 = vmul.f32 %v2453, %v2455
    %v2457 = vadd.f32 %v2453, %v2456
    %vm2458 = vweird.f32 %v2422
    %vm2459 = vweird.f32 %v2453
    %vm2460 = vmor %vm2458, %vm2459
    %v2461 = vsel %vm2460, %v2453, %v2457
    %v2462 = vand.u32 2147483647, %v2422
    %vm2463 = vcmp.eq.f32.partialorder %v2462, 8.507059e+37
    %v2464 = vand.u32 %v2422, 2147483648
    %v2465 = vor.u32 1.1754944e-38, %v2464
    %v2466 = vsel %vm2463, %v2465, %v2461
    %v2467 = vmul.f32 1.0, %v2466
    %v2468 = vtanh.pop %v2410
    %v2469 = vmul.f32 %v2452, %v2320
    %v2470 = vmul.f32 %v2437, %v2468
    %v2471 = vadd.f32 %v2469, %v2470
    %v2472 = vtanh.pop %v2471
    %v2473 = vmul.f32 %v2467, %v2472
    %v2474 = vld [vmem:[%s897] sm:$0xff]
    %v2475 = vld [vmem:[%s897 + $0x8] sm:$0xff]
    %v2476 = vld [vmem:[%s897 + $0x10] sm:$0xff]
    %v2477 = vld [vmem:[%s897 + $0x18] sm:$0xff]
    %2478 = vmatpush.msra.mxu0 %v2015
    %2479 = vmatpush.msra.mxu0 %v2011
    %2480 = vmatpush.msra.mxu0 %v2007
    %2481 = vmatpush.msra.mxu0 %v2003
    %2482 = vmatpush.msra.mxu0 %v1999
    %2483 = vmatpush.msra.mxu0 %v1995
    %2484 = vmatpush.msra.mxu0 %v1991
    %2485 = vmatpush.msra.mxu0 %v1987
    %2486 = vmatpush.msra.mxu0 %v1983
    %2487 = vmatpush.msra.mxu0 %v1979
    %2488 = vmatpush.msra.mxu0 %v1975
    %2489 = vmatpush.msra.mxu0 %v1971
    %2490 = vmatpush.msra.mxu0 %v1967
    %2491 = vmatpush.msra.mxu0 %v1963
    %2492 = vmatpush.msra.mxu0 %v1959
    %2493 = vmatpush.msra.mxu0 %v1955
    %2494 = vmatmul.f32.gmra.mxu0 %v2473
    %v2495 = vpop.f32.mrf.mxu0
    %v2496 = vadd.f32 0.0, %v2495
    %2497 = vdwg.mxu0
    %2498 = vmatpush.msra.mxu0 %v2016
    %2499 = vmatpush.msra.mxu0 %v2012
    %2500 = vmatpush.msra.mxu0 %v2008
    %2501 = vmatpush.msra.mxu0 %v2004
    %2502 = vmatpush.msra.mxu0 %v2000
    %2503 = vmatpush.msra.mxu0 %v1996
    %2504 = vmatpush.msra.mxu0 %v1992
    %2505 = vmatpush.msra.mxu0 %v1988
    %2506 = vmatpush.msra.mxu0 %v1984
    %2507 = vmatpush.msra.mxu0 %v1980
    %2508 = vmatpush.msra.mxu0 %v1976
    %2509 = vmatpush.msra.mxu0 %v1972
    %2510 = vmatpush.msra.mxu0 %v1968
    %2511 = vmatpush.msra.mxu0 %v1964
    %2512 = vmatpush.msra.mxu0 %v1960
    %2513 = vmatpush.msra.mxu0 %v1956
    %2514 = vmatmul.f32.gmra.mxu0 %v2473
    %v2515 = vpop.f32.mrf.mxu0
    %v2516 = vadd.f32 0.0, %v2515
    %2517 = vdwg.mxu0
    %2518 = vmatpush.msra.mxu0 %v2017
    %2519 = vmatpush.msra.mxu0 %v2013
    %2520 = vmatpush.msra.mxu0 %v2009
    %2521 = vmatpush.msra.mxu0 %v2005
    %2522 = vmatpush.msra.mxu0 %v2001
    %2523 = vmatpush.msra.mxu0 %v1997
    %2524 = vmatpush.msra.mxu0 %v1993
    %2525 = vmatpush.msra.mxu0 %v1989
    %2526 = vmatpush.msra.mxu0 %v1985
    %2527 = vmatpush.msra.mxu0 %v1981
    %2528 = vmatpush.msra.mxu0 %v1977
    %2529 = vmatpush.msra.mxu0 %v1973
    %2530 = vmatpush.msra.mxu0 %v1969
    %2531 = vmatpush.msra.mxu0 %v1965
    %2532 = vmatpush.msra.mxu0 %v1961
    %2533 = vmatpush.msra.mxu0 %v1957
    %2534 = vmatmul.f32.gmra.mxu0 %v2473
    %v2535 = vpop.f32.mrf.mxu0
    %v2536 = vadd.f32 0.0, %v2535
    %2537 = vdwg.mxu0
    %2538 = vmatpush.msra.mxu0 %v2018
    %2539 = vmatpush.msra.mxu0 %v2014
    %2540 = vmatpush.msra.mxu0 %v2010
    %2541 = vmatpush.msra.mxu0 %v2006
    %2542 = vmatpush.msra.mxu0 %v2002
    %2543 = vmatpush.msra.mxu0 %v1998
    %2544 = vmatpush.msra.mxu0 %v1994
    %2545 = vmatpush.msra.mxu0 %v1990
    %2546 = vmatpush.msra.mxu0 %v1986
    %2547 = vmatpush.msra.mxu0 %v1982
    %2548 = vmatpush.msra.mxu0 %v1978
    %2549 = vmatpush.msra.mxu0 %v1974
    %2550 = vmatpush.msra.mxu0 %v1970
    %2551 = vmatpush.msra.mxu0 %v1966
    %2552 = vmatpush.msra.mxu0 %v1962
    %2553 = vmatpush.msra.mxu0 %v1958
    %2554 = vmatmul.f32.gmra.mxu0 %v2473
    %v2555 = vpop.f32.mrf.mxu0
    %v2556 = vadd.f32 0.0, %v2555
    %2557 = vdwg.mxu0
    %v2558 = vadd.f32 %v2474, %v2496
    %v2559 = vadd.f32 %v2475, %v2516
    %v2560 = vadd.f32 %v2476, %v2536
    %v2561 = vadd.f32 %v2477, %v2556
    %v2562 = vxor.u32 %v2558, 2147483648
    %v2563 = vxor.u32 %v2559, 2147483648
    %v2564 = vxor.u32 %v2560, 2147483648
    %v2565 = vmul.f32 %v2562, 1.442695
    %v2566 = vpow.pop %v2565
    %v2567 = vmul.f32 %v2563, 1.442695
    %v2568 = vpow.pop %v2567
    %v2569 = vmul.f32 %v2564, 1.442695
    %v2570 = vpow.pop %v2569
    %v2571 = vadd.f32 %v2566, 1.0
    %v2572 = vadd.f32 %v2568, 1.0
    %v2573 = vadd.f32 %v2570, 1.0
    %v2574 = vrcp.pop %v2571
    %v2575 = vmul.f32 %v2571, %v2574
    %v2576 = vsub.f32 1.0, %v2575
    %v2577 = vmul.f32 %v2574, %v2576
    %v2578 = vadd.f32 %v2574, %v2577
    %vm2579 = vweird.f32 %v2571
    %vm2580 = vweird.f32 %v2574
    %vm2581 = vmor %vm2579, %vm2580
    %v2582 = vsel %vm2581, %v2574, %v2578
    %v2583 = vand.u32 2147483647, %v2571
    %vm2584 = vcmp.eq.f32.partialorder %v2583, 8.507059e+37
    %v2585 = vand.u32 %v2571, 2147483648
    %v2586 = vor.u32 1.1754944e-38, %v2585
    %v2587 = vsel %vm2584, %v2586, %v2582
    %v2588 = vmul.f32 1.0, %v2587
    %v2589 = vrcp.pop %v2572
    %v2590 = vmul.f32 %v2572, %v2589
    %v2591 = vsub.f32 1.0, %v2590
    %v2592 = vmul.f32 %v2589, %v2591
    %v2593 = vadd.f32 %v2589, %v2592
    %vm2594 = vweird.f32 %v2572
    %vm2595 = vweird.f32 %v2589
    %vm2596 = vmor %vm2594, %vm2595
    %v2597 = vsel %vm2596, %v2589, %v2593
    %v2598 = vand.u32 2147483647, %v2572
    %vm2599 = vcmp.eq.f32.partialorder %v2598, 8.507059e+37
    %v2600 = vand.u32 %v2572, 2147483648
    %v2601 = vor.u32 1.1754944e-38, %v2600
    %v2602 = vsel %vm2599, %v2601, %v2597
    %v2603 = vmul.f32 1.0, %v2602
    %v2604 = vrcp.pop %v2573
    %v2605 = vmul.f32 %v2573, %v2604
    %v2606 = vsub.f32 1.0, %v2605
    %v2607 = vmul.f32 %v2604, %v2606
    %v2608 = vadd.f32 %v2604, %v2607
    %vm2609 = vweird.f32 %v2573
    %vm2610 = vweird.f32 %v2604
    %vm2611 = vmor %vm2609, %vm2610
    %v2612 = vsel %vm2611, %v2604, %v2608
    %v2613 = vand.u32 2147483647, %v2573
    %vm2614 = vcmp.eq.f32.partialorder %v2613, 8.507059e+37
    %v2615 = vand.u32 %v2573, 2147483648
    %v2616 = vor.u32 1.1754944e-38, %v2615
    %v2617 = vsel %vm2614, %v2616, %v2612
    %v2618 = vmul.f32 1.0, %v2617
    %v2619 = vtanh.pop %v2561
    %v2620 = vmul.f32 %v2603, %v2471
    %v2621 = vmul.f32 %v2588, %v2619
    %v2622 = vadd.f32 %v2620, %v2621
    %v2623 = vtanh.pop %v2622
    %v2624 = vmul.f32 %v2618, %v2623
    %v2625 = vld [vmem:[%s1053] sm:$0xff]
    %v2626 = vld [vmem:[%s1053 + $0x8] sm:$0xff]
    %v2627 = vld [vmem:[%s1053 + $0x10] sm:$0xff]
    %v2628 = vld [vmem:[%s1053 + $0x18] sm:$0xff]
    %2629 = vmatpush.msra.mxu0 %v2015
    %2630 = vmatpush.msra.mxu0 %v2011
    %2631 = vmatpush.msra.mxu0 %v2007
    %2632 = vmatpush.msra.mxu0 %v2003
    %2633 = vmatpush.msra.mxu0 %v1999
    %2634 = vmatpush.msra.mxu0 %v1995
    %2635 = vmatpush.msra.mxu0 %v1991
    %2636 = vmatpush.msra.mxu0 %v1987
    %2637 = vmatpush.msra.mxu0 %v1983
    %2638 = vmatpush.msra.mxu0 %v1979
    %2639 = vmatpush.msra.mxu0 %v1975
    %2640 = vmatpush.msra.mxu0 %v1971
    %2641 = vmatpush.msra.mxu0 %v1967
    %2642 = vmatpush.msra.mxu0 %v1963
    %2643 = vmatpush.msra.mxu0 %v1959
    %2644 = vmatpush.msra.mxu0 %v1955
    %2645 = vmatmul.f32.gmra.mxu0 %v2624
    %v2646 = vpop.f32.mrf.mxu0
    %v2647 = vadd.f32 0.0, %v2646
    %2648 = vdwg.mxu0
    %2649 = vmatpush.msra.mxu0 %v2016
    %2650 = vmatpush.msra.mxu0 %v2012
    %2651 = vmatpush.msra.mxu0 %v2008
    %2652 = vmatpush.msra.mxu0 %v2004
    %2653 = vmatpush.msra.mxu0 %v2000
    %2654 = vmatpush.msra.mxu0 %v1996
    %2655 = vmatpush.msra.mxu0 %v1992
    %2656 = vmatpush.msra.mxu0 %v1988
    %2657 = vmatpush.msra.mxu0 %v1984
    %2658 = vmatpush.msra.mxu0 %v1980
    %2659 = vmatpush.msra.mxu0 %v1976
    %2660 = vmatpush.msra.mxu0 %v1972
    %2661 = vmatpush.msra.mxu0 %v1968
    %2662 = vmatpush.msra.mxu0 %v1964
    %2663 = vmatpush.msra.mxu0 %v1960
    %2664 = vmatpush.msra.mxu0 %v1956
    %2665 = vmatmul.f32.gmra.mxu0 %v2624
    %v2666 = vpop.f32.mrf.mxu0
    %v2667 = vadd.f32 0.0, %v2666
    %2668 = vdwg.mxu0
    %2669 = vmatpush.msra.mxu0 %v2017
    %2670 = vmatpush.msra.mxu0 %v2013
    %2671 = vmatpush.msra.mxu0 %v2009
    %2672 = vmatpush.msra.mxu0 %v2005
    %2673 = vmatpush.msra.mxu0 %v2001
    %2674 = vmatpush.msra.mxu0 %v1997
    %2675 = vmatpush.msra.mxu0 %v1993
    %2676 = vmatpush.msra.mxu0 %v1989
    %2677 = vmatpush.msra.mxu0 %v1985
    %2678 = vmatpush.msra.mxu0 %v1981
    %2679 = vmatpush.msra.mxu0 %v1977
    %2680 = vmatpush.msra.mxu0 %v1973
    %2681 = vmatpush.msra.mxu0 %v1969
    %2682 = vmatpush.msra.mxu0 %v1965
    %2683 = vmatpush.msra.mxu0 %v1961
    %2684 = vmatpush.msra.mxu0 %v1957
    %2685 = vmatmul.f32.gmra.mxu0 %v2624
    %v2686 = vpop.f32.mrf.mxu0
    %v2687 = vadd.f32 0.0, %v2686
    %2688 = vdwg.mxu0
    %2689 = vmatpush.msra.mxu0 %v2018
    %2690 = vmatpush.msra.mxu0 %v2014
    %2691 = vmatpush.msra.mxu0 %v2010
    %2692 = vmatpush.msra.mxu0 %v2006
    %2693 = vmatpush.msra.mxu0 %v2002
    %2694 = vmatpush.msra.mxu0 %v1998
    %2695 = vmatpush.msra.mxu0 %v1994
    %2696 = vmatpush.msra.mxu0 %v1990
    %2697 = vmatpush.msra.mxu0 %v1986
    %2698 = vmatpush.msra.mxu0 %v1982
    %2699 = vmatpush.msra.mxu0 %v1978
    %2700 = vmatpush.msra.mxu0 %v1974
    %2701 = vmatpush.msra.mxu0 %v1970
    %2702 = vmatpush.msra.mxu0 %v1966
    %2703 = vmatpush.msra.mxu0 %v1962
    %2704 = vmatpush.msra.mxu0 %v1958
    %2705 = vmatmul.f32.gmra.mxu0 %v2624
    %v2706 = vpop.f32.mrf.mxu0
    %v2707 = vadd.f32 0.0, %v2706
    %2708 = vdwg.mxu0
    %v2709 = vadd.f32 %v2625, %v2647
    %v2710 = vadd.f32 %v2626, %v2667
    %v2711 = vadd.f32 %v2627, %v2687
    %v2712 = vadd.f32 %v2628, %v2707
    %v2713 = vxor.u32 %v2709, 2147483648
    %v2714 = vxor.u32 %v2710, 2147483648
    %v2715 = vxor.u32 %v2711, 2147483648
    %v2716 = vmul.f32 %v2713, 1.442695
    %v2717 = vpow.pop %v2716
    %v2718 = vmul.f32 %v2714, 1.442695
    %v2719 = vpow.pop %v2718
    %v2720 = vmul.f32 %v2715, 1.442695
    %v2721 = vpow.pop %v2720
    %v2722 = vadd.f32 %v2717, 1.0
    %v2723 = vadd.f32 %v2719, 1.0
    %v2724 = vadd.f32 %v2721, 1.0
    %v2725 = vrcp.pop %v2722
    %v2726 = vmul.f32 %v2722, %v2725
    %v2727 = vsub.f32 1.0, %v2726
    %v2728 = vmul.f32 %v2725, %v2727
    %v2729 = vadd.f32 %v2725, %v2728
    %vm2730 = vweird.f32 %v2722
    %vm2731 = vweird.f32 %v2725
    %vm2732 = vmor %vm2730, %vm2731
    %v2733 = vsel %vm2732, %v2725, %v2729
    %v2734 = vand.u32 2147483647, %v2722
    %vm2735 = vcmp.eq.f32.partialorder %v2734, 8.507059e+37
    %v2736 = vand.u32 %v2722, 2147483648
    %v2737 = vor.u32 1.1754944e-38, %v2736
    %v2738 = vsel %vm2735, %v2737, %v2733
    %v2739 = vmul.f32 1.0, %v2738
    %v2740 = vrcp.pop %v2723
    %v2741 = vmul.f32 %v2723, %v2740
    %v2742 = vsub.f32 1.0, %v2741
    %v2743 = vmul.f32 %v2740, %v2742
    %v2744 = vadd.f32 %v2740, %v2743
    %vm2745 = vweird.f32 %v2723
    %vm2746 = vweird.f32 %v2740
    %vm2747 = vmor %vm2745, %vm2746
    %v2748 = vsel %vm2747, %v2740, %v2744
    %v2749 = vand.u32 2147483647, %v2723
    %vm2750 = vcmp.eq.f32.partialorder %v2749, 8.507059e+37
    %v2751 = vand.u32 %v2723, 2147483648
    %v2752 = vor.u32 1.1754944e-38, %v2751
    %v2753 = vsel %vm2750, %v2752, %v2748
    %v2754 = vmul.f32 1.0, %v2753
    %v2755 = vrcp.pop %v2724
    %v2756 = vmul.f32 %v2724, %v2755
    %v2757 = vsub.f32 1.0, %v2756
    %v2758 = vmul.f32 %v2755, %v2757
    %v2759 = vadd.f32 %v2755, %v2758
    %vm2760 = vweird.f32 %v2724
    %vm2761 = vweird.f32 %v2755
    %vm2762 = vmor %vm2760, %vm2761
    %v2763 = vsel %vm2762, %v2755, %v2759
    %v2764 = vand.u32 2147483647, %v2724
    %vm2765 = vcmp.eq.f32.partialorder %v2764, 8.507059e+37
    %v2766 = vand.u32 %v2724, 2147483648
    %v2767 = vor.u32 1.1754944e-38, %v2766
    %v2768 = vsel %vm2765, %v2767, %v2763
    %v2769 = vmul.f32 1.0, %v2768
    %v2770 = vtanh.pop %v2712
    %v2771 = vmul.f32 %v2754, %v2622
    %v2772 = vmul.f32 %v2739, %v2770
    %v2773 = vadd.f32 %v2771, %v2772
    %v2774 = vtanh.pop %v2773
    %v2775 = vmul.f32 %v2769, %v2774
    %v2776 = vld [vmem:[%s1209] sm:$0xff]
    %v2777 = vld [vmem:[%s1209 + $0x8] sm:$0xff]
    %v2778 = vld [vmem:[%s1209 + $0x10] sm:$0xff]
    %v2779 = vld [vmem:[%s1209 + $0x18] sm:$0xff]
    %2780 = vmatpush.msra.mxu0 %v2015
    %2781 = vmatpush.msra.mxu0 %v2011
    %2782 = vmatpush.msra.mxu0 %v2007
    %2783 = vmatpush.msra.mxu0 %v2003
    %2784 = vmatpush.msra.mxu0 %v1999
    %2785 = vmatpush.msra.mxu0 %v1995
    %2786 = vmatpush.msra.mxu0 %v1991
    %2787 = vmatpush.msra.mxu0 %v1987
    %2788 = vmatpush.msra.mxu0 %v1983
    %2789 = vmatpush.msra.mxu0 %v1979
    %2790 = vmatpush.msra.mxu0 %v1975
    %2791 = vmatpush.msra.mxu0 %v1971
    %2792 = vmatpush.msra.mxu0 %v1967
    %2793 = vmatpush.msra.mxu0 %v1963
    %2794 = vmatpush.msra.mxu0 %v1959
    %2795 = vmatpush.msra.mxu0 %v1955
    %2796 = vmatmul.f32.gmra.mxu0 %v2775
    %v2797 = vpop.f32.mrf.mxu0
    %v2798 = vadd.f32 0.0, %v2797
    %2799 = vdwg.mxu0
    %2800 = vmatpush.msra.mxu0 %v2016
    %2801 = vmatpush.msra.mxu0 %v2012
    %2802 = vmatpush.msra.mxu0 %v2008
    %2803 = vmatpush.msra.mxu0 %v2004
    %2804 = vmatpush.msra.mxu0 %v2000
    %2805 = vmatpush.msra.mxu0 %v1996
    %2806 = vmatpush.msra.mxu0 %v1992
    %2807 = vmatpush.msra.mxu0 %v1988
    %2808 = vmatpush.msra.mxu0 %v1984
    %2809 = vmatpush.msra.mxu0 %v1980
    %2810 = vmatpush.msra.mxu0 %v1976
    %2811 = vmatpush.msra.mxu0 %v1972
    %2812 = vmatpush.msra.mxu0 %v1968
    %2813 = vmatpush.msra.mxu0 %v1964
    %2814 = vmatpush.msra.mxu0 %v1960
    %2815 = vmatpush.msra.mxu0 %v1956
    %2816 = vmatmul.f32.gmra.mxu0 %v2775
    %v2817 = vpop.f32.mrf.mxu0
    %v2818 = vadd.f32 0.0, %v2817
    %2819 = vdwg.mxu0
    %2820 = vmatpush.msra.mxu0 %v2017
    %2821 = vmatpush.msra.mxu0 %v2013
    %2822 = vmatpush.msra.mxu0 %v2009
    %2823 = vmatpush.msra.mxu0 %v2005
    %2824 = vmatpush.msra.mxu0 %v2001
    %2825 = vmatpush.msra.mxu0 %v1997
    %2826 = vmatpush.msra.mxu0 %v1993
    %2827 = vmatpush.msra.mxu0 %v1989
    %2828 = vmatpush.msra.mxu0 %v1985
    %2829 = vmatpush.msra.mxu0 %v1981
    %2830 = vmatpush.msra.mxu0 %v1977
    %2831 = vmatpush.msra.mxu0 %v1973
    %2832 = vmatpush.msra.mxu0 %v1969
    %2833 = vmatpush.msra.mxu0 %v1965
    %2834 = vmatpush.msra.mxu0 %v1961
    %2835 = vmatpush.msra.mxu0 %v1957
    %2836 = vmatmul.f32.gmra.mxu0 %v2775
    %v2837 = vpop.f32.mrf.mxu0
    %v2838 = vadd.f32 0.0, %v2837
    %2839 = vdwg.mxu0
    %2840 = vmatpush.msra.mxu0 %v2018
    %2841 = vmatpush.msra.mxu0 %v2014
    %2842 = vmatpush.msra.mxu0 %v2010
    %2843 = vmatpush.msra.mxu0 %v2006
    %2844 = vmatpush.msra.mxu0 %v2002
    %2845 = vmatpush.msra.mxu0 %v1998
    %2846 = vmatpush.msra.mxu0 %v1994
    %2847 = vmatpush.msra.mxu0 %v1990
    %2848 = vmatpush.msra.mxu0 %v1986
    %2849 = vmatpush.msra.mxu0 %v1982
    %2850 = vmatpush.msra.mxu0 %v1978
    %2851 = vmatpush.msra.mxu0 %v1974
    %2852 = vmatpush.msra.mxu0 %v1970
    %2853 = vmatpush.msra.mxu0 %v1966
    %2854 = vmatpush.msra.mxu0 %v1962
    %2855 = vmatpush.msra.mxu0 %v1958
    %2856 = vmatmul.f32.gmra.mxu0 %v2775
    %v2857 = vpop.f32.mrf.mxu0
    %v2858 = vadd.f32 0.0, %v2857
    %2859 = vdwg.mxu0
    %v2860 = vadd.f32 %v2776, %v2798
    %v2861 = vadd.f32 %v2777, %v2818
    %v2862 = vadd.f32 %v2778, %v2838
    %v2863 = vadd.f32 %v2779, %v2858
    %v2864 = vxor.u32 %v2860, 2147483648
    %v2865 = vxor.u32 %v2861, 2147483648
    %v2866 = vxor.u32 %v2862, 2147483648
    %v2867 = vmul.f32 %v2864, 1.442695
    %v2868 = vpow.pop %v2867
    %v2869 = vmul.f32 %v2865, 1.442695
    %v2870 = vpow.pop %v2869
    %v2871 = vmul.f32 %v2866, 1.442695
    %v2872 = vpow.pop %v2871
    %v2873 = vadd.f32 %v2868, 1.0
    %v2874 = vadd.f32 %v2870, 1.0
    %v2875 = vadd.f32 %v2872, 1.0
    %v2876 = vrcp.pop %v2873
    %v2877 = vmul.f32 %v2873, %v2876
    %v2878 = vsub.f32 1.0, %v2877
    %v2879 = vmul.f32 %v2876, %v2878
    %v2880 = vadd.f32 %v2876, %v2879
    %vm2881 = vweird.f32 %v2873
    %vm2882 = vweird.f32 %v2876
    %vm2883 = vmor %vm2881, %vm2882
    %v2884 = vsel %vm2883, %v2876, %v2880
    %v2885 = vand.u32 2147483647, %v2873
    %vm2886 = vcmp.eq.f32.partialorder %v2885, 8.507059e+37
    %v2887 = vand.u32 %v2873, 2147483648
    %v2888 = vor.u32 1.1754944e-38, %v2887
    %v2889 = vsel %vm2886, %v2888, %v2884
    %v2890 = vmul.f32 1.0, %v2889
    %v2891 = vrcp.pop %v2874
    %v2892 = vmul.f32 %v2874, %v2891
    %v2893 = vsub.f32 1.0, %v2892
    %v2894 = vmul.f32 %v2891, %v2893
    %v2895 = vadd.f32 %v2891, %v2894
    %vm2896 = vweird.f32 %v2874
    %vm2897 = vweird.f32 %v2891
    %vm2898 = vmor %vm2896, %vm2897
    %v2899 = vsel %vm2898, %v2891, %v2895
    %v2900 = vand.u32 2147483647, %v2874
    %vm2901 = vcmp.eq.f32.partialorder %v2900, 8.507059e+37
    %v2902 = vand.u32 %v2874, 2147483648
    %v2903 = vor.u32 1.1754944e-38, %v2902
    %v2904 = vsel %vm2901, %v2903, %v2899
    %v2905 = vmul.f32 1.0, %v2904
    %v2906 = vrcp.pop %v2875
    %v2907 = vmul.f32 %v2875, %v2906
    %v2908 = vsub.f32 1.0, %v2907
    %v2909 = vmul.f32 %v2906, %v2908
    %v2910 = vadd.f32 %v2906, %v2909
    %vm2911 = vweird.f32 %v2875
    %vm2912 = vweird.f32 %v2906
    %vm2913 = vmor %vm2911, %vm2912
    %v2914 = vsel %vm2913, %v2906, %v2910
    %v2915 = vand.u32 2147483647, %v2875
    %vm2916 = vcmp.eq.f32.partialorder %v2915, 8.507059e+37
    %v2917 = vand.u32 %v2875, 2147483648
    %v2918 = vor.u32 1.1754944e-38, %v2917
    %v2919 = vsel %vm2916, %v2918, %v2914
    %v2920 = vmul.f32 1.0, %v2919
    %v2921 = vtanh.pop %v2863
    %v2922 = vmul.f32 %v2905, %v2773
    %v2923 = vmul.f32 %v2890, %v2921
    %v2924 = vadd.f32 %v2922, %v2923
    %v2925 = vtanh.pop %v2924
    %v2926 = vmul.f32 %v2920, %v2925
    %v2927 = vld [vmem:[%s1365] sm:$0xff]
    %v2928 = vld [vmem:[%s1365 + $0x8] sm:$0xff]
    %v2929 = vld [vmem:[%s1365 + $0x10] sm:$0xff]
    %v2930 = vld [vmem:[%s1365 + $0x18] sm:$0xff]
    %2931 = vmatpush.msra.mxu0 %v2015
    %2932 = vmatpush.msra.mxu0 %v2011
    %2933 = vmatpush.msra.mxu0 %v2007
    %2934 = vmatpush.msra.mxu0 %v2003
    %2935 = vmatpush.msra.mxu0 %v1999
    %2936 = vmatpush.msra.mxu0 %v1995
    %2937 = vmatpush.msra.mxu0 %v1991
    %2938 = vmatpush.msra.mxu0 %v1987
    %2939 = vmatpush.msra.mxu0 %v1983
    %2940 = vmatpush.msra.mxu0 %v1979
    %2941 = vmatpush.msra.mxu0 %v1975
    %2942 = vmatpush.msra.mxu0 %v1971
    %2943 = vmatpush.msra.mxu0 %v1967
    %2944 = vmatpush.msra.mxu0 %v1963
    %2945 = vmatpush.msra.mxu0 %v1959
    %2946 = vmatpush.msra.mxu0 %v1955
    %2947 = vmatmul.f32.gmra.mxu0 %v2926
    %v2948 = vpop.f32.mrf.mxu0
    %v2949 = vadd.f32 0.0, %v2948
    %2950 = vdwg.mxu0
    %2951 = vmatpush.msra.mxu0 %v2016
    %2952 = vmatpush.msra.mxu0 %v2012
    %2953 = vmatpush.msra.mxu0 %v2008
    %2954 = vmatpush.msra.mxu0 %v2004
    %2955 = vmatpush.msra.mxu0 %v2000
    %2956 = vmatpush.msra.mxu0 %v1996
    %2957 = vmatpush.msra.mxu0 %v1992
    %2958 = vmatpush.msra.mxu0 %v1988
    %2959 = vmatpush.msra.mxu0 %v1984
    %2960 = vmatpush.msra.mxu0 %v1980
    %2961 = vmatpush.msra.mxu0 %v1976
    %2962 = vmatpush.msra.mxu0 %v1972
    %2963 = vmatpush.msra.mxu0 %v1968
    %2964 = vmatpush.msra.mxu0 %v1964
    %2965 = vmatpush.msra.mxu0 %v1960
    %2966 = vmatpush.msra.mxu0 %v1956
    %2967 = vmatmul.f32.gmra.mxu0 %v2926
    %v2968 = vpop.f32.mrf.mxu0
    %v2969 = vadd.f32 0.0, %v2968
    %2970 = vdwg.mxu0
    %2971 = vmatpush.msra.mxu0 %v2017
    %2972 = vmatpush.msra.mxu0 %v2013
    %2973 = vmatpush.msra.mxu0 %v2009
    %2974 = vmatpush.msra.mxu0 %v2005
    %2975 = vmatpush.msra.mxu0 %v2001
    %2976 = vmatpush.msra.mxu0 %v1997
    %2977 = vmatpush.msra.mxu0 %v1993
    %2978 = vmatpush.msra.mxu0 %v1989
    %2979 = vmatpush.msra.mxu0 %v1985
    %2980 = vmatpush.msra.mxu0 %v1981
    %2981 = vmatpush.msra.mxu0 %v1977
    %2982 = vmatpush.msra.mxu0 %v1973
    %2983 = vmatpush.msra.mxu0 %v1969
    %2984 = vmatpush.msra.mxu0 %v1965
    %2985 = vmatpush.msra.mxu0 %v1961
    %2986 = vmatpush.msra.mxu0 %v1957
    %2987 = vmatmul.f32.gmra.mxu0 %v2926
    %v2988 = vpop.f32.mrf.mxu0
    %v2989 = vadd.f32 0.0, %v2988
    %2990 = vdwg.mxu0
    %2991 = vmatpush.msra.mxu0 %v2018
    %2992 = vmatpush.msra.mxu0 %v2014
    %2993 = vmatpush.msra.mxu0 %v2010
    %2994 = vmatpush.msra.mxu0 %v2006
    %2995 = vmatpush.msra.mxu0 %v2002
    %2996 = vmatpush.msra.mxu0 %v1998
    %2997 = vmatpush.msra.mxu0 %v1994
    %2998 = vmatpush.msra.mxu0 %v1990
    %2999 = vmatpush.msra.mxu0 %v1986
    %3000 = vmatpush.msra.mxu0 %v1982
    %3001 = vmatpush.msra.mxu0 %v1978
    %3002 = vmatpush.msra.mxu0 %v1974
    %3003 = vmatpush.msra.mxu0 %v1970
    %3004 = vmatpush.msra.mxu0 %v1966
    %3005 = vmatpush.msra.mxu0 %v1962
    %3006 = vmatpush.msra.mxu0 %v1958
    %3007 = vmatmul.f32.gmra.mxu0 %v2926
    %v3008 = vpop.f32.mrf.mxu0
    %v3009 = vadd.f32 0.0, %v3008
    %3010 = vdwg.mxu0
    %v3011 = vadd.f32 %v2927, %v2949
    %v3012 = vadd.f32 %v2928, %v2969
    %v3013 = vadd.f32 %v2929, %v2989
    %v3014 = vadd.f32 %v2930, %v3009
    %v3015 = vxor.u32 %v3011, 2147483648
    %v3016 = vxor.u32 %v3012, 2147483648
    %v3017 = vxor.u32 %v3013, 2147483648
    %v3018 = vmul.f32 %v3015, 1.442695
    %v3019 = vpow.pop %v3018
    %v3020 = vmul.f32 %v3016, 1.442695
    %v3021 = vpow.pop %v3020
    %v3022 = vmul.f32 %v3017, 1.442695
    %v3023 = vpow.pop %v3022
    %v3024 = vadd.f32 %v3019, 1.0
    %v3025 = vadd.f32 %v3021, 1.0
    %v3026 = vadd.f32 %v3023, 1.0
    %v3027 = vrcp.pop %v3024
    %v3028 = vmul.f32 %v3024, %v3027
    %v3029 = vsub.f32 1.0, %v3028
    %v3030 = vmul.f32 %v3027, %v3029
    %v3031 = vadd.f32 %v3027, %v3030
    %vm3032 = vweird.f32 %v3024
    %vm3033 = vweird.f32 %v3027
    %vm3034 = vmor %vm3032, %vm3033
    %v3035 = vsel %vm3034, %v3027, %v3031
    %v3036 = vand.u32 2147483647, %v3024
    %vm3037 = vcmp.eq.f32.partialorder %v3036, 8.507059e+37
    %v3038 = vand.u32 %v3024, 2147483648
    %v3039 = vor.u32 1.1754944e-38, %v3038
    %v3040 = vsel %vm3037, %v3039, %v3035
    %v3041 = vmul.f32 1.0, %v3040
    %v3042 = vrcp.pop %v3025
    %v3043 = vmul.f32 %v3025, %v3042
    %v3044 = vsub.f32 1.0, %v3043
    %v3045 = vmul.f32 %v3042, %v3044
    %v3046 = vadd.f32 %v3042, %v3045
    %vm3047 = vweird.f32 %v3025
    %vm3048 = vweird.f32 %v3042
    %vm3049 = vmor %vm3047, %vm3048
    %v3050 = vsel %vm3049, %v3042, %v3046
    %v3051 = vand.u32 2147483647, %v3025
    %vm3052 = vcmp.eq.f32.partialorder %v3051, 8.507059e+37
    %v3053 = vand.u32 %v3025, 2147483648
    %v3054 = vor.u32 1.1754944e-38, %v3053
    %v3055 = vsel %vm3052, %v3054, %v3050
    %v3056 = vmul.f32 1.0, %v3055
    %v3057 = vrcp.pop %v3026
    %v3058 = vmul.f32 %v3026, %v3057
    %v3059 = vsub.f32 1.0, %v3058
    %v3060 = vmul.f32 %v3057, %v3059
    %v3061 = vadd.f32 %v3057, %v3060
    %vm3062 = vweird.f32 %v3026
    %vm3063 = vweird.f32 %v3057
    %vm3064 = vmor %vm3062, %vm3063
    %v3065 = vsel %vm3064, %v3057, %v3061
    %v3066 = vand.u32 2147483647, %v3026
    %vm3067 = vcmp.eq.f32.partialorder %v3066, 8.507059e+37
    %v3068 = vand.u32 %v3026, 2147483648
    %v3069 = vor.u32 1.1754944e-38, %v3068
    %v3070 = vsel %vm3067, %v3069, %v3065
    %v3071 = vmul.f32 1.0, %v3070
    %v3072 = vtanh.pop %v3014
    %v3073 = vmul.f32 %v3056, %v2924
    %v3074 = vmul.f32 %v3041, %v3072
    %v3075 = vadd.f32 %v3073, %v3074
    %v3076 = vtanh.pop %v3075
    %v3077 = vmul.f32 %v3071, %v3076
    %v3078 = vld [vmem:[%s1521] sm:$0xff]
    %v3079 = vld [vmem:[%s1521 + $0x8] sm:$0xff]
    %v3080 = vld [vmem:[%s1521 + $0x10] sm:$0xff]
    %v3081 = vld [vmem:[%s1521 + $0x18] sm:$0xff]
    %3082 = vmatpush.msra.mxu0 %v2015
    %3083 = vmatpush.msra.mxu0 %v2011
    %3084 = vmatpush.msra.mxu0 %v2007
    %3085 = vmatpush.msra.mxu0 %v2003
    %3086 = vmatpush.msra.mxu0 %v1999
    %3087 = vmatpush.msra.mxu0 %v1995
    %3088 = vmatpush.msra.mxu0 %v1991
    %3089 = vmatpush.msra.mxu0 %v1987
    %3090 = vmatpush.msra.mxu0 %v1983
    %3091 = vmatpush.msra.mxu0 %v1979
    %3092 = vmatpush.msra.mxu0 %v1975
    %3093 = vmatpush.msra.mxu0 %v1971
    %3094 = vmatpush.msra.mxu0 %v1967
    %3095 = vmatpush.msra.mxu0 %v1963
    %3096 = vmatpush.msra.mxu0 %v1959
    %3097 = vmatpush.msra.mxu0 %v1955
    %3098 = vmatmul.f32.gmra.mxu0 %v3077
    %v3099 = vpop.f32.mrf.mxu0
    %v3100 = vadd.f32 0.0, %v3099
    %3101 = vdwg.mxu0
    %3102 = vmatpush.msra.mxu0 %v2016
    %3103 = vmatpush.msra.mxu0 %v2012
    %3104 = vmatpush.msra.mxu0 %v2008
    %3105 = vmatpush.msra.mxu0 %v2004
    %3106 = vmatpush.msra.mxu0 %v2000
    %3107 = vmatpush.msra.mxu0 %v1996
    %3108 = vmatpush.msra.mxu0 %v1992
    %3109 = vmatpush.msra.mxu0 %v1988
    %3110 = vmatpush.msra.mxu0 %v1984
    %3111 = vmatpush.msra.mxu0 %v1980
    %3112 = vmatpush.msra.mxu0 %v1976
    %3113 = vmatpush.msra.mxu0 %v1972
    %3114 = vmatpush.msra.mxu0 %v1968
    %3115 = vmatpush.msra.mxu0 %v1964
    %3116 = vmatpush.msra.mxu0 %v1960
    %3117 = vmatpush.msra.mxu0 %v1956
    %3118 = vmatmul.f32.gmra.mxu0 %v3077
    %v3119 = vpop.f32.mrf.mxu0
    %v3120 = vadd.f32 0.0, %v3119
    %3121 = vdwg.mxu0
    %3122 = vmatpush.msra.mxu0 %v2017
    %3123 = vmatpush.msra.mxu0 %v2013
    %3124 = vmatpush.msra.mxu0 %v2009
    %3125 = vmatpush.msra.mxu0 %v2005
    %3126 = vmatpush.msra.mxu0 %v2001
    %3127 = vmatpush.msra.mxu0 %v1997
    %3128 = vmatpush.msra.mxu0 %v1993
    %3129 = vmatpush.msra.mxu0 %v1989
    %3130 = vmatpush.msra.mxu0 %v1985
    %3131 = vmatpush.msra.mxu0 %v1981
    %3132 = vmatpush.msra.mxu0 %v1977
    %3133 = vmatpush.msra.mxu0 %v1973
    %3134 = vmatpush.msra.mxu0 %v1969
    %3135 = vmatpush.msra.mxu0 %v1965
    %3136 = vmatpush.msra.mxu0 %v1961
    %3137 = vmatpush.msra.mxu0 %v1957
    %3138 = vmatmul.f32.gmra.mxu0 %v3077
    %v3139 = vpop.f32.mrf.mxu0
    %v3140 = vadd.f32 0.0, %v3139
    %3141 = vdwg.mxu0
    %3142 = vmatpush.msra.mxu0 %v2018
    %3143 = vmatpush.msra.mxu0 %v2014
    %3144 = vmatpush.msra.mxu0 %v2010
    %3145 = vmatpush.msra.mxu0 %v2006
    %3146 = vmatpush.msra.mxu0 %v2002
    %3147 = vmatpush.msra.mxu0 %v1998
    %3148 = vmatpush.msra.mxu0 %v1994
    %3149 = vmatpush.msra.mxu0 %v1990
    %3150 = vmatpush.msra.mxu0 %v1986
    %3151 = vmatpush.msra.mxu0 %v1982
    %3152 = vmatpush.msra.mxu0 %v1978
    %3153 = vmatpush.msra.mxu0 %v1974
    %3154 = vmatpush.msra.mxu0 %v1970
    %3155 = vmatpush.msra.mxu0 %v1966
    %3156 = vmatpush.msra.mxu0 %v1962
    %3157 = vmatpush.msra.mxu0 %v1958
    %3158 = vmatmul.f32.gmra.mxu0 %v3077
    %v3159 = vpop.f32.mrf.mxu0
    %v3160 = vadd.f32 0.0, %v3159
    %3161 = vdwg.mxu0
    %v3162 = vadd.f32 %v3078, %v3100
    %v3163 = vadd.f32 %v3079, %v3120
    %v3164 = vadd.f32 %v3080, %v3140
    %v3165 = vadd.f32 %v3081, %v3160
    %v3166 = vxor.u32 %v3162, 2147483648
    %v3167 = vxor.u32 %v3163, 2147483648
    %v3168 = vxor.u32 %v3164, 2147483648
    %v3169 = vmul.f32 %v3166, 1.442695
    %v3170 = vpow.pop %v3169
    %v3171 = vmul.f32 %v3167, 1.442695
    %v3172 = vpow.pop %v3171
    %v3173 = vmul.f32 %v3168, 1.442695
    %v3174 = vpow.pop %v3173
    %v3175 = vadd.f32 %v3170, 1.0
    %v3176 = vadd.f32 %v3172, 1.0
    %v3177 = vadd.f32 %v3174, 1.0
    %v3178 = vrcp.pop %v3175
    %v3179 = vmul.f32 %v3175, %v3178
    %v3180 = vsub.f32 1.0, %v3179
    %v3181 = vmul.f32 %v3178, %v3180
    %v3182 = vadd.f32 %v3178, %v3181
    %vm3183 = vweird.f32 %v3175
    %vm3184 = vweird.f32 %v3178
    %vm3185 = vmor %vm3183, %vm3184
    %v3186 = vsel %vm3185, %v3178, %v3182
    %v3187 = vand.u32 2147483647, %v3175
    %vm3188 = vcmp.eq.f32.partialorder %v3187, 8.507059e+37
    %v3189 = vand.u32 %v3175, 2147483648
    %v3190 = vor.u32 1.1754944e-38, %v3189
    %v3191 = vsel %vm3188, %v3190, %v3186
    %v3192 = vmul.f32 1.0, %v3191
    %v3193 = vrcp.pop %v3176
    %v3194 = vmul.f32 %v3176, %v3193
    %v3195 = vsub.f32 1.0, %v3194
    %v3196 = vmul.f32 %v3193, %v3195
    %v3197 = vadd.f32 %v3193, %v3196
    %vm3198 = vweird.f32 %v3176
    %vm3199 = vweird.f32 %v3193
    %vm3200 = vmor %vm3198, %vm3199
    %v3201 = vsel %vm3200, %v3193, %v3197
    %v3202 = vand.u32 2147483647, %v3176
    %vm3203 = vcmp.eq.f32.partialorder %v3202, 8.507059e+37
    %v3204 = vand.u32 %v3176, 2147483648
    %v3205 = vor.u32 1.1754944e-38, %v3204
    %v3206 = vsel %vm3203, %v3205, %v3201
    %v3207 = vmul.f32 1.0, %v3206
    %v3208 = vrcp.pop %v3177
    %v3209 = vmul.f32 %v3177, %v3208
    %v3210 = vsub.f32 1.0, %v3209
    %v3211 = vmul.f32 %v3208, %v3210
    %v3212 = vadd.f32 %v3208, %v3211
    %vm3213 = vweird.f32 %v3177
    %vm3214 = vweird.f32 %v3208
    %vm3215 = vmor %vm3213, %vm3214
    %v3216 = vsel %vm3215, %v3208, %v3212
    %v3217 = vand.u32 2147483647, %v3177
    %vm3218 = vcmp.eq.f32.partialorder %v3217, 8.507059e+37
    %v3219 = vand.u32 %v3177, 2147483648
    %v3220 = vor.u32 1.1754944e-38, %v3219
    %v3221 = vsel %vm3218, %v3220, %v3216
    %v3222 = vmul.f32 1.0, %v3221
    %v3223 = vtanh.pop %v3165
    %v3224 = vmul.f32 %v3207, %v3075
    %v3225 = vmul.f32 %v3192, %v3223
    %v3226 = vadd.f32 %v3224, %v3225
    %v3227 = vtanh.pop %v3226
    %v3228 = vmul.f32 %v3222, %v3227
    %3229 = vst [vmem:[#allocation4] sm:$0xff] %v3228
    %3230 = vst [vmem:[#allocation5] sm:$0xff] %v3226
    // Predicated region
    $region58: #{lstm_forward.1} parent=1 // pred_check
      %p3231 = pneg %p95
    $region59: #{lstm_forward.1} parent=1 // pred_check_branch
      %3233 = sbr.rel (%p3231) target = $region61
    $region60: #{lstm_forward.1} parent=1 // pred_region
      %v3234 = vld [vmem:[#allocation4] sm:$0xff]
      %v3235 = vld [vmem:[#allocation13] sm:$0xff]
      %v3236 = vld [vmem:[#allocation13 + $0x8] sm:$0xff]
      %v3237 = vld [vmem:[#allocation13 + $0x10] sm:$0xff]
      %v3238 = vld [vmem:[#allocation13 + $0x18] sm:$0xff]
      %v3239 = vld [vmem:[#allocation13 + $0x20] sm:$0xff]
      %v3240 = vld [vmem:[#allocation13 + $0x28] sm:$0xff]
      %v3241 = vld [vmem:[#allocation13 + $0x30] sm:$0xff]
      %v3242 = vld [vmem:[#allocation13 + $0x38] sm:$0xff]
      %v3243 = vld [vmem:[#allocation13 + $0x40] sm:$0xff]
      %v3244 = vld [vmem:[#allocation13 + $0x48] sm:$0xff]
      %v3245 = vld [vmem:[#allocation13 + $0x50] sm:$0xff]
      %v3246 = vld [vmem:[#allocation13 + $0x58] sm:$0xff]
      %v3247 = vld [vmem:[#allocation13 + $0x60] sm:$0xff]
      %v3248 = vld [vmem:[#allocation13 + $0x68] sm:$0xff]
      %v3249 = vld [vmem:[#allocation13 + $0x70] sm:$0xff]
      %v3250 = vld [vmem:[#allocation13 + $0x78] sm:$0xff]
      %v3251 = vld [vmem:[%s8] sm:$0x1]
      %v3253 = vperm.slane %v3251, 0
      %3255 = vmatpush.msra.mxu0 %v3250
      %3256 = vmatpush.msra.mxu0 %v3249
      %3257 = vmatpush.msra.mxu0 %v3248
      %3258 = vmatpush.msra.mxu0 %v3247
      %3259 = vmatpush.msra.mxu0 %v3246
      %3260 = vmatpush.msra.mxu0 %v3245
      %3261 = vmatpush.msra.mxu0 %v3244
      %3262 = vmatpush.msra.mxu0 %v3243
      %3263 = vmatpush.msra.mxu0 %v3242
      %3264 = vmatpush.msra.mxu0 %v3241
      %3265 = vmatpush.msra.mxu0 %v3240
      %3266 = vmatpush.msra.mxu0 %v3239
      %3267 = vmatpush.msra.mxu0 %v3238
      %3268 = vmatpush.msra.mxu0 %v3237
      %3269 = vmatpush.msra.mxu0 %v3236
      %3270 = vmatpush.msra.mxu0 %v3235
      %3271 = vmatmul.f32.gmra.mxu0 %v3234
      %v3272 = vpop.f32.mrf.mxu0
      %v3273 = vadd.f32 %v3253, %v3272
      %3274 = vdwg.mxu0
      %3275 = vst [vmem:[%s9] sm:$0xff] %v3273
    $region61: #{lstm_forward.1} parent=1 // pred_fallthru
      _
    // Predicated region
    $region62: #{lstm_forward.1} parent=1 // pred_check
      _
    $region63: #{lstm_forward.1} parent=1 // pred_check_branch
      %3277 = sbr.rel (0) target = $region65
    $region64: #{lstm_forward.1} parent=1 // pred_region
      _
    $region65: #{lstm_forward.1} parent=1 // pred_fallthru
      _
    // Predicated region
    $region66: #{lstm_forward.1} parent=1 // pred_check
      _
    $region67: #{lstm_forward.1} parent=1 // pred_check_branch
      %3279 = sbr.rel (0) target = $region69
    $region68: #{lstm_forward.1} parent=1 // pred_region
      _
    $region69: #{lstm_forward.1} parent=1 // pred_fallthru
      _
    %3280 = vsyncpa [#allocation9], 1
    %3281 = vsyncpa [#allocation11], 1
    %3282 = vsyncpa [#allocation14], 1

</llo_original>
